<compile_context>
chip_gen: v6e
topology: v6e:2x2x1
jax: 0.10.0
libtpu: 0.0.40
codegen_flags: <defaults>
</compile_context>

<pallas_src>
import functools

import jax
import jax.numpy as jnp
from jax.experimental import pallas as pl
from jax.experimental.pallas import tpu as pltpu

BEST_CONFIG = {
    "num_gcn_layers": 4,
    "num_hidden_layers": 4,
    "GCN_output_per_layer": [100, 420, 140, 140],
    "hidden_neurons_per_layer": [260, 60, 180, 100],
    "dropout_rate": 0.2,
    "activation_function": "relu",
}

NUM_GCN = BEST_CONFIG["num_gcn_layers"]
NUM_DENSE = BEST_CONFIG["num_hidden_layers"]
NRTL_OUT = 3

LANE = 128      # lane width  (last dim)
SUBLANE = 8     # sublane width (second-last dim)


def _round_up(v, m):
    return ((v + m - 1) // m) * m


# ---------------------------------------------------------------------------
# Static layer metadata: padded widths, per-width slab assignment, row offsets.
# ---------------------------------------------------------------------------
def build_layer_meta(num_features):
    widths = ([num_features] + BEST_CONFIG["GCN_output_per_layer"]
              + BEST_CONFIG["hidden_neurons_per_layer"] + [NRTL_OUT])
    layers = []
    for i in range(len(widths) - 1):
        fin, fout = widths[i], widths[i + 1]
        layers.append(dict(fin=fin, fout=fout,
                           fin_p=_round_up(fin, LANE), fout_p=_round_up(fout, LANE)))
    # Group weight matrices by padded output width -> one exact-width slab per group
    # (removes the column-padding waste of a single max-width slab).
    slab_widths = sorted({l["fout_p"] for l in layers})
    rows = {w: 0 for w in slab_widths}
    for lyr in layers:
        w = lyr["fout_p"]
        lyr["slab_id"] = slab_widths.index(w)
        lyr["w_row"] = rows[w]
        rows[w] += lyr["fin_p"]
    slab_rows = [rows[w] for w in slab_widths]
    for i, lyr in enumerate(layers):
        lyr["b_row"] = SUBLANE * i          # 8-row-aligned bias slots
    bias_rows = SUBLANE * len(layers)
    bias_width = max(slab_widths)
    return layers, slab_widths, slab_rows, bias_rows, bias_width


def pack_params(params, num_features, weight_dtype=jnp.bfloat16):
    """Pack all weights into per-width slabs (weight_dtype) + one f32 bias slab.

    Run ONCE per weight set; the returned slabs are reused for every forward call.
    """
    layers, slab_widths, slab_rows, bias_rows, bias_width = build_layer_meta(num_features)
    all_wb = params["gcn"] + params["dense"] + [params["nrtl"]]
    slabs = [jnp.zeros((r, w), weight_dtype) for r, w in zip(slab_rows, slab_widths)]
    bias = jnp.zeros((bias_rows, bias_width), jnp.float32)
    for meta, (w_mat, b_vec) in zip(layers, all_wb):
        sid = meta["slab_id"]
        slabs[sid] = slabs[sid].at[meta["w_row"]:meta["w_row"] + w_mat.shape[0],
                                   :w_mat.shape[1]].set(w_mat.astype(weight_dtype))
        bias = bias.at[meta["b_row"], :b_vec.shape[1]].set(b_vec[0])
    return tuple(slabs), bias


# ---------------------------------------------------------------------------
# Kernel (single fused VMEM-resident block; no grid needed at these sizes).
# ---------------------------------------------------------------------------
def make_kernel(layers, num_weight_slabs, matmul_dtype):
    gcn_layers = layers[:NUM_GCN]
    dense_layers = layers[NUM_GCN:NUM_GCN + NUM_DENSE]
    nrtl_layer = layers[-1]
    use_f32 = (matmul_dtype == jnp.float32)

    def kernel(*refs):
        a_ref, x_ref, pool_ref, scal_ref = refs[0], refs[1], refs[2], refs[3]
        w_refs = refs[4:4 + num_weight_slabs]
        bias_ref = refs[4 + num_weight_slabs]
        out_ref = refs[5 + num_weight_slabs]

        def mm(a, b):
            # bf16 operands are native on every MXU generation; in the f32 path we use
            # the compiler's default MXU precision (no exact-match-to-HIGHEST claim).
            return jnp.dot(a.astype(matmul_dtype), b.astype(matmul_dtype),
                           preferred_element_type=jnp.float32)

        relu = lambda v: jnp.maximum(v, 0.0)

        def w_and_b(meta):
            wref = w_refs[meta["slab_id"]]           # slab width == meta["fout_p"]
            w = wref[meta["w_row"]:meta["w_row"] + meta["fin_p"], :]
            b = bias_ref[meta["b_row"]:meta["b_row"] + 1, 0:meta["fout_p"]]
            return w, b

        a_hat = a_ref[...]
        h = x_ref[...]

        # ---- GCN layers: relu(A_hat @ h @ W + b); association chosen by width ------
        # NOTE: zero-padded node rows pick up relu(b) here; harmless only because the
        # pool matrix's padded columns are exactly zero (add-pool ignores those rows).
        for meta in gcn_layers:
            w, b = w_and_b(meta)
            if meta["fin_p"] < meta["fout_p"]:
                z = mm(mm(a_hat, h), w)              # widening layer: (A h) W
            else:
                z = mm(a_hat, mm(h, w))              # narrowing layer: A (h W)
            h = relu(z + b)

        # ---- global add pool (per graph) + activation -------------------------------
        g = relu(mm(pool_ref[...], h))

        # ---- dense layers (dropout = inference-mode identity) -----------------------
        for meta in dense_layers:
            w, b = w_and_b(meta)
            g = relu(mm(g, w) + b)

        # ---- NRTL coefficient head ---------------------------------------------------
        w, b = w_and_b(nrtl_layer)
        coef = mm(g, w) + b                          # (B_pad, 128); lanes 0..2 valid

        scal = scal_ref[...]
        temp = scal[:, 0:1]
        ma = scal[:, 1:2]
        mw = scal[:, 2:3]

        alpha_raw = coef[:, 0:1]
        b12 = coef[:, 1:2]
        b21 = coef[:, 2:3]

        # Matches the PyTorch reference verbatim: alpha in [0.2, 0.2*(1+0.235)], i.e.
        # [0.2, ~0.247] -- NOT [alpha_min, alpha_max]. Kept as-is to preserve semantics.
        alpha_min, alpha_max = 0.2, 0.47
        alpha = alpha_min * (1.0 + jax.nn.sigmoid(alpha_raw) / 10.0
                             * (alpha_max / alpha_min))

        R = 62.36367
        rt = R * (temp + 273.15)
        if use_f32:
            inv_rt = 1.0 / rt
        else:
            inv_rt = pl.reciprocal(rt, approx=True)  # EUP slot, effectively free
        tau12 = b12 * inv_rt
        tau21 = b21 * inv_rt
        g12 = jnp.exp(-tau12 * alpha)
        g21 = jnp.exp(-tau21 * alpha)
        den21 = ma + mw * g21
        den12 = mw + ma * g12
        lga = mw ** 2 * (tau21 * (g21 / den21) ** 2 + tau12 * g12 / den12 ** 2)
        lgw = ma ** 2 * (tau12 * (g12 / den12) ** 2 + tau21 * g21 / den21 ** 2)

        # Single lane-dense output tile: col 0 = ln_gamma_amine, col 1 = ln_gamma_water.
        lane = jax.lax.broadcasted_iota(jnp.int32, out_ref.shape, 1)
        out_ref[...] = jnp.where(lane == 0, lga, jnp.where(lane == 1, lgw, 0.0))

    return kernel


# ---------------------------------------------------------------------------
# Host wrapper (jitted): pad inputs, one pallas_call, slice the lane-dense output.
# ---------------------------------------------------------------------------
@functools.partial(jax.jit, static_argnames=("matmul_dtype",))
def gnn_activity_coeff(a_hat, x, pool, temperature, mole_frac_amine, mole_frac_water,
                       weight_slabs, bias_slab, matmul_dtype=jnp.bfloat16):
    num_nodes, num_features = x.shape
    num_graphs = pool.shape[0]
    layers, _, _, _, _ = build_layer_meta(num_features)

    n_pad = max(_round_up(num_nodes, LANE), LANE)
    b_pad = max(_round_up(num_graphs, SUBLANE), SUBLANE)
    f_pad = _round_up(num_features, LANE)

    a_p = jnp.zeros((n_pad, n_pad), jnp.float32).at[:num_nodes, :num_nodes].set(a_hat)
    x_p = jnp.zeros((n_pad, f_pad), jnp.float32).at[:num_nodes, :num_features].set(x)
    pool_p = jnp.zeros((b_pad, n_pad), jnp.float32).at[:num_graphs, :num_nodes].set(pool)

    # scalars slab: cols 0/1/2 = temperature / x_amine / x_water; padded graph rows
    # get harmless defaults (25 C, 0.5/0.5) so the NRTL tail stays finite there.
    scal = jnp.zeros((b_pad, LANE), jnp.float32)
    scal = scal.at[:, 0].set(25.0).at[:, 1].set(0.5).at[:, 2].set(0.5)
    scal = scal.at[:num_graphs, 0:1].set(temperature)
    scal = scal.at[:num_graphs, 1:2].set(mole_frac_amine)
    scal = scal.at[:num_graphs, 2:3].set(mole_frac_water)

    vmem = pl.BlockSpec(memory_space=pltpu.MemorySpace.VMEM)
    n_in = 4 + len(weight_slabs) + 1
    out = pl.pallas_call(
        make_kernel(layers, len(weight_slabs), matmul_dtype),
        out_shape=jax.ShapeDtypeStruct((b_pad, LANE), jnp.float32),
        in_specs=[vmem] * n_in,
        out_specs=vmem,
        compiler_params=pltpu.CompilerParams(vmem_limit_bytes=12 * 1024 * 1024),
    )(a_p, x_p, pool_p, scal, *weight_slabs, bias_slab)

    return out[:num_graphs, 0], out[:num_graphs, 1]


# ---------------------------------------------------------------------------
# Graph preprocessing + synthetic parameters (host side).
# ---------------------------------------------------------------------------
def build_normalized_adjacency(edge_index, num_nodes):
    """Dense D^-1/2 (A + I) D^-1/2, matching GCNConv's symmetric normalization."""
    src, dst = edge_index
    A = jnp.zeros((num_nodes, num_nodes), jnp.float32).at[src, dst].set(1.0)
    A_tilde = A + jnp.eye(num_nodes, dtype=jnp.float32)
    deg = A_tilde.sum(axis=1)
    dinv = 1.0 / jnp.sqrt(deg)
    return dinv[:, None] * A_tilde * dinv[None, :]


def build_pool_matrix(batch_mapping, num_graphs):
    """(B, N) one-hot matrix so that pool @ x == global_add_pool(x, batch)."""
    return (batch_mapping[None, :] == jnp.arange(num_graphs)[:, None]).astype(jnp.float32)


def init_params(key, num_features):
    """Deterministic synthetic weights (torch Linear shapes, stored transposed)."""
    params = {"gcn": [], "dense": [], "nrtl": None}
    f_in = num_features
    for f_out in BEST_CONFIG["GCN_output_per_layer"]:
        key, kw, kb = jax.random.split(key, 3)
        w = jax.random.normal(kw, (f_in, f_out), jnp.float32) * (1.0 / jnp.sqrt(f_in))
        b = jax.random.normal(kb, (1, f_out), jnp.float32) * 0.01
        params["gcn"].append((w, b))
        f_in = f_out
    for f_out in BEST_CONFIG["hidden_neurons_per_layer"]:
        key, kw, kb = jax.random.split(key, 3)
        w = jax.random.normal(kw, (f_in, f_out), jnp.float32) * (1.0 / jnp.sqrt(f_in))
        b = jax.random.normal(kb, (1, f_out), jnp.float32) * 0.01
        params["dense"].append((w, b))
        f_in = f_out
    key, kw, kb = jax.random.split(key, 3)
    w = jax.random.normal(kw, (f_in, 3), jnp.float32) * (1.0 / jnp.sqrt(f_in))
    b = jax.random.normal(kb, (1, 3), jnp.float32) * 0.01
    params["nrtl"] = (w, b)
    return params


# ---------------------------------------------------------------------------
# Pure-JAX reference (unpadded, f32, HIGHEST precision) for correctness checking.
# ---------------------------------------------------------------------------
def reference_forward(a_hat, x, pool, temperature, ma, mw, params):
    hi = jax.lax.Precision.HIGHEST
    h = x
    for w, b in params["gcn"]:
        h = jnp.maximum(jnp.dot(a_hat, jnp.dot(h, w, precision=hi), precision=hi) + b, 0.0)
    g = jnp.maximum(jnp.dot(pool, h, precision=hi), 0.0)
    for w, b in params["dense"]:
        g = jnp.maximum(jnp.dot(g, w, precision=hi) + b, 0.0)
    coef = jnp.dot(g, params["nrtl"][0], precision=hi) + params["nrtl"][1]
    alpha_raw, b12, b21 = coef[:, 0:1], coef[:, 1:2], coef[:, 2:3]
    alpha = 0.2 * (1.0 + jax.nn.sigmoid(alpha_raw) / 10.0 * (0.47 / 0.2))
    R = 62.36367
    T = temperature + 273.15
    tau12 = b12 / (R * T)
    tau21 = b21 / (R * T)
    g12 = jnp.exp(-tau12 * alpha)
    g21 = jnp.exp(-tau21 * alpha)
    den21 = ma + mw * g21
    den12 = mw + ma * g12
    lga = mw ** 2 * (tau21 * (g21 / den21) ** 2 + tau12 * g12 / den12 ** 2)
    lgw = ma ** 2 * (tau12 * (g12 / den12) ** 2 + tau21 * g21 / den21 ** 2)
    return lga[:, 0], lgw[:, 0]


if __name__ == "__main__":
    key = jax.random.PRNGKey(0)

    # 16 small chain graphs (8 nodes each) packed block-diagonally into one 128-node
    # tile, so the MXU node dimension is filled with real work instead of zero padding.
    num_features = 16
    nodes_per_graph = 8
    num_graphs = 16
    num_nodes = nodes_per_graph * num_graphs

    src, dst, batch = [], [], []
    for g in range(num_graphs):
        base = g * nodes_per_graph
        for i in range(nodes_per_graph - 1):
            src += [base + i, base + i + 1]
            dst += [base + i + 1, base + i]
        batch += [g] * nodes_per_graph
    edge_index = (jnp.array(src, jnp.int32), jnp.array(dst, jnp.int32))
    batch_mapping = jnp.array(batch, jnp.int32)

    key, kx, kt, km = jax.random.split(key, 4)
    x = jax.random.normal(kx, (num_nodes, num_features), jnp.float32)
    temperature = jax.random.uniform(kt, (num_graphs, 1), jnp.float32,
                                     minval=20.0, maxval=100.0)       # degrees C
    mole_frac_amine = jax.random.uniform(km, (num_graphs, 1), jnp.float32,
                                         minval=0.05, maxval=0.95)
    mole_frac_water = 1.0 - mole_frac_amine

    a_hat = build_normalized_adjacency(edge_index, num_nodes)
    pool = build_pool_matrix(batch_mapping, num_graphs)
    params = init_params(key, num_features)

    # Weights packed ONCE (not per call): bf16 slabs = serving path, f32 = validation.
    w_slabs_bf16, bias_slab = pack_params(params, num_features, jnp.bfloat16)
    w_slabs_f32, _ = pack_params(params, num_features, jnp.float32)

    # TODO(synk): dropout is implemented as inference-mode identity (no RNG masking).
    lga_bf, lgw_bf = gnn_activity_coeff(
        a_hat, x, pool, temperature, mole_frac_amine, mole_frac_water,
        w_slabs_bf16, bias_slab, matmul_dtype=jnp.bfloat16)

    lga_f32, lgw_f32 = gnn_activity_coeff(
        a_hat, x, pool, temperature, mole_frac_amine, mole_frac_water,
        w_slabs_f32, bias_slab, matmul_dtype=jnp.float32)

    jax.block_until_ready((lga_bf, lgw_bf, lga_f32, lgw_f32))
    assert lga_bf.shape == (num_graphs,)
    assert lgw_bf.shape == (num_graphs,)

    ref_a, ref_w = reference_forward(a_hat, x, pool, temperature,
                                     mole_frac_amine, mole_frac_water, params)

    assert bool(jnp.all(jnp.isfinite(lga_bf)))
    assert bool(jnp.all(jnp.isfinite(lgw_bf)))
    # f32 slabs + f32 MXU operands: close to the pure-JAX HIGHEST-precision reference.
    assert bool(jnp.allclose(lga_f32, ref_a, rtol=5e-2, atol=1e-6))
    assert bool(jnp.allclose(lgw_f32, ref_w, rtol=5e-2, atol=1e-6))
    # bf16 serving path (bf16 weights + bf16 MXU operands): looser tolerance.
    assert bool(jnp.allclose(lga_bf, ref_a, rtol=1e-1, atol=1e-5))
    assert bool(jnp.allclose(lgw_bf, ref_w, rtol=1e-1, atol=1e-5))

    print("KERNEL_OK")
</pallas_src>

<mosaic_0001>
module attributes {stable_mosaic.version = 11 : i64} {
  func.func @kernel(%arg0: memref<128x128xf32, #tpu.memory_space<vmem>>, %arg1: memref<128x128xf32, #tpu.memory_space<vmem>>, %arg2: memref<16x128xf32, #tpu.memory_space<vmem>>, %arg3: memref<16x128xf32, #tpu.memory_space<vmem>>, %arg4: memref<896x128xbf16, #tpu.memory_space<vmem>>, %arg5: memref<896x256xbf16, #tpu.memory_space<vmem>>, %arg6: memref<256x384xbf16, #tpu.memory_space<vmem>>, %arg7: memref<128x512xbf16, #tpu.memory_space<vmem>>, %arg8: memref<72x512xf32, #tpu.memory_space<vmem>>, %arg9: memref<16x128xf32, #tpu.memory_space<vmem>>) attributes {dimension_semantics = [], scalar_prefetch = 0 : i64, scratch_operands = 0 : i64, tpu.core_type = #tpu.core_type<tc>} {
    %c0 = arith.constant 0 : index
    %c0_0 = arith.constant 0 : index
    %0 = vector.load %arg0[%c0, %c0_0] : memref<128x128xf32, #tpu.memory_space<vmem>>, vector<128x128xf32>
    %c0_1 = arith.constant 0 : index
    %c0_2 = arith.constant 0 : index
    %1 = vector.load %arg1[%c0_1, %c0_2] : memref<128x128xf32, #tpu.memory_space<vmem>>, vector<128x128xf32>
    %c0_3 = arith.constant 0 : index
    %c0_4 = arith.constant 0 : index
    %2 = vector.load %arg4[%c0_3, %c0_4] : memref<896x128xbf16, #tpu.memory_space<vmem>>, vector<128x128xbf16>
    %c0_5 = arith.constant 0 : index
    %c0_6 = arith.constant 0 : index
    %3 = vector.load %arg8[%c0_5, %c0_6] : memref<72x512xf32, #tpu.memory_space<vmem>>, vector<1x128xf32>
    %4 = arith.truncf %1 : vector<128x128xf32> to vector<128x128xbf16>
    %cst = arith.constant dense<0.000000e+00> : vector<128x128xf32>
    %5 = tpu.matmul %4, %2, %cst {dimension_numbers = #tpu.dot_dimension_numbers<[1], [0], [0], [1], [0, 0, 1, 1], [], []>} : vector<128x128xbf16>, vector<128x128xbf16>, vector<128x128xf32> -> vector<128x128xf32>
    %6 = arith.truncf %0 : vector<128x128xf32> to vector<128x128xbf16>
    %7 = arith.truncf %5 : vector<128x128xf32> to vector<128x128xbf16>
    %cst_7 = arith.constant dense<0.000000e+00> : vector<128x128xf32>
    %8 = tpu.matmul %6, %7, %cst_7 {dimension_numbers = #tpu.dot_dimension_numbers<[1], [0], [0], [1], [0, 0, 1, 1], [], []>} : vector<128x128xbf16>, vector<128x128xbf16>, vector<128x128xf32> -> vector<128x128xf32>
    %9 = vector.broadcast %3 : vector<1x128xf32> to vector<128x128xf32>
    %10 = arith.addf %8, %9 : vector<128x128xf32>
    %cst_8 = arith.constant 0.000000e+00 : f32
    %11 = vector.broadcast %cst_8 : f32 to vector<128x128xf32>
    %12 = arith.maximumf %10, %11 : vector<128x128xf32>
    %c0_9 = arith.constant 0 : index
    %c0_10 = arith.constant 0 : index
    %13 = vector.load %arg7[%c0_9, %c0_10] : memref<128x512xbf16, #tpu.memory_space<vmem>>, vector<128x512xbf16>
    %c8 = arith.constant 8 : index
    %c0_11 = arith.constant 0 : index
    %14 = vector.load %arg8[%c8, %c0_11] : memref<72x512xf32, #tpu.memory_space<vmem>>, vector<1x512xf32>
    %15 = arith.truncf %0 : vector<128x128xf32> to vector<128x128xbf16>
    %16 = arith.truncf %12 : vector<128x128xf32> to vector<128x128xbf16>
    %cst_12 = arith.constant dense<0.000000e+00> : vector<128x128xf32>
    %17 = tpu.matmul %15, %16, %cst_12 {dimension_numbers = #tpu.dot_dimension_numbers<[1], [0], [0], [1], [0, 0, 1, 1], [], []>} : vector<128x128xbf16>, vector<128x128xbf16>, vector<128x128xf32> -> vector<128x128xf32>
    %18 = arith.truncf %17 : vector<128x128xf32> to vector<128x128xbf16>
    %cst_13 = arith.constant dense<0.000000e+00> : vector<128x512xf32>
    %19 = tpu.matmul %18, %13, %cst_13 {dimension_numbers = #tpu.dot_dimension_numbers<[1], [0], [0], [1], [0, 0, 1, 1], [], []>} : vector<128x128xbf16>, vector<128x512xbf16>, vector<128x512xf32> -> vector<128x512xf32>
    %20 = vector.broadcast %14 : vector<1x512xf32> to vector<128x512xf32>
    %21 = arith.addf %19, %20 : vector<128x512xf32>
    %cst_14 = arith.constant 0.000000e+00 : f32
    %22 = vector.broadcast %cst_14 : f32 to vector<128x512xf32>
    %23 = arith.maximumf %21, %22 : vector<128x512xf32>
    %c0_15 = arith.constant 0 : index
    %c0_16 = arith.constant 0 : index
    %24 = vector.load %arg5[%c0_15, %c0_16] : memref<896x256xbf16, #tpu.memory_space<vmem>>, vector<512x256xbf16>
    %c16 = arith.constant 16 : index
    %c0_17 = arith.constant 0 : index
    %25 = vector.load %arg8[%c16, %c0_17] : memref<72x512xf32, #tpu.memory_space<vmem>>, vector<1x256xf32>
    %26 = arith.truncf %23 : vector<128x512xf32> to vector<128x512xbf16>
    %cst_18 = arith.constant dense<0.000000e+00> : vector<128x256xf32>
    %27 = tpu.matmul %26, %24, %cst_18 {dimension_numbers = #tpu.dot_dimension_numbers<[1], [0], [0], [1], [0, 0, 1, 1], [], []>} : vector<128x512xbf16>, vector<512x256xbf16>, vector<128x256xf32> -> vector<128x256xf32>
    %28 = arith.truncf %0 : vector<128x128xf32> to vector<128x128xbf16>
    %29 = arith.truncf %27 : vector<128x256xf32> to vector<128x256xbf16>
    %cst_19 = arith.constant dense<0.000000e+00> : vector<128x256xf32>
    %30 = tpu.matmul %28, %29, %cst_19 {dimension_numbers = #tpu.dot_dimension_numbers<[1], [0], [0], [1], [0, 0, 1, 1], [], []>} : vector<128x128xbf16>, vector<128x256xbf16>, vector<128x256xf32> -> vector<128x256xf32>
    %31 = vector.broadcast %25 : vector<1x256xf32> to vector<128x256xf32>
    %32 = arith.addf %30, %31 : vector<128x256xf32>
    %cst_20 = arith.constant 0.000000e+00 : f32
    %33 = vector.broadcast %cst_20 : f32 to vector<128x256xf32>
    %34 = arith.maximumf %32, %33 : vector<128x256xf32>
    %c512 = arith.constant 512 : index
    %c0_21 = arith.constant 0 : index
    %35 = vector.load %arg5[%c512, %c0_21] : memref<896x256xbf16, #tpu.memory_space<vmem>>, vector<256x256xbf16>
    %c24 = arith.constant 24 : index
    %c0_22 = arith.constant 0 : index
    %36 = vector.load %arg8[%c24, %c0_22] : memref<72x512xf32, #tpu.memory_space<vmem>>, vector<1x256xf32>
    %37 = arith.truncf %34 : vector<128x256xf32> to vector<128x256xbf16>
    %cst_23 = arith.constant dense<0.000000e+00> : vector<128x256xf32>
    %38 = tpu.matmul %37, %35, %cst_23 {dimension_numbers = #tpu.dot_dimension_numbers<[1], [0], [0], [1], [0, 0, 1, 1], [], []>} : vector<128x256xbf16>, vector<256x256xbf16>, vector<128x256xf32> -> vector<128x256xf32>
    %39 = arith.truncf %0 : vector<128x128xf32> to vector<128x128xbf16>
    %40 = arith.truncf %38 : vector<128x256xf32> to vector<128x256xbf16>
    %cst_24 = arith.constant dense<0.000000e+00> : vector<128x256xf32>
    %41 = tpu.matmul %39, %40, %cst_24 {dimension_numbers = #tpu.dot_dimension_numbers<[1], [0], [0], [1], [0, 0, 1, 1], [], []>} : vector<128x128xbf16>, vector<128x256xbf16>, vector<128x256xf32> -> vector<128x256xf32>
    %42 = vector.broadcast %36 : vector<1x256xf32> to vector<128x256xf32>
    %43 = arith.addf %41, %42 : vector<128x256xf32>
    %cst_25 = arith.constant 0.000000e+00 : f32
    %44 = vector.broadcast %cst_25 : f32 to vector<128x256xf32>
    %45 = arith.maximumf %43, %44 : vector<128x256xf32>
    %c0_26 = arith.constant 0 : index
    %c0_27 = arith.constant 0 : index
    %46 = vector.load %arg2[%c0_26, %c0_27] : memref<16x128xf32, #tpu.memory_space<vmem>>, vector<16x128xf32>
    %47 = arith.truncf %46 : vector<16x128xf32> to vector<16x128xbf16>
    %48 = arith.truncf %45 : vector<128x256xf32> to vector<128x256xbf16>
    %cst_28 = arith.constant dense<0.000000e+00> : vector<16x256xf32>
    %49 = tpu.matmul %47, %48, %cst_28 {dimension_numbers = #tpu.dot_dimension_numbers<[1], [0], [0], [1], [0, 0, 1, 1], [], []>} : vector<16x128xbf16>, vector<128x256xbf16>, vector<16x256xf32> -> vector<16x256xf32>
    %cst_29 = arith.constant 0.000000e+00 : f32
    %50 = vector.broadcast %cst_29 : f32 to vector<16x256xf32>
    %51 = arith.maximumf %49, %50 : vector<16x256xf32>
    %c0_30 = arith.constant 0 : index
    %c0_31 = arith.constant 0 : index
    %52 = vector.load %arg6[%c0_30, %c0_31] : memref<256x384xbf16, #tpu.memory_space<vmem>>, vector<256x384xbf16>
    %c32 = arith.constant 32 : index
    %c0_32 = arith.constant 0 : index
    %53 = vector.load %arg8[%c32, %c0_32] : memref<72x512xf32, #tpu.memory_space<vmem>>, vector<1x384xf32>
    %54 = arith.truncf %51 : vector<16x256xf32> to vector<16x256xbf16>
    %cst_33 = arith.constant dense<0.000000e+00> : vector<16x384xf32>
    %55 = tpu.matmul %54, %52, %cst_33 {dimension_numbers = #tpu.dot_dimension_numbers<[1], [0], [0], [1], [0, 0, 1, 1], [], []>} : vector<16x256xbf16>, vector<256x384xbf16>, vector<16x384xf32> -> vector<16x384xf32>
    %56 = vector.broadcast %53 : vector<1x384xf32> to vector<16x384xf32>
    %57 = arith.addf %55, %56 : vector<16x384xf32>
    %cst_34 = arith.constant 0.000000e+00 : f32
    %58 = vector.broadcast %cst_34 : f32 to vector<16x384xf32>
    %59 = arith.maximumf %57, %58 : vector<16x384xf32>
    %c128 = arith.constant 128 : index
    %c0_35 = arith.constant 0 : index
    %60 = vector.load %arg4[%c128, %c0_35] : memref<896x128xbf16, #tpu.memory_space<vmem>>, vector<384x128xbf16>
    %c40 = arith.constant 40 : index
    %c0_36 = arith.constant 0 : index
    %61 = vector.load %arg8[%c40, %c0_36] : memref<72x512xf32, #tpu.memory_space<vmem>>, vector<1x128xf32>
    %62 = arith.truncf %59 : vector<16x384xf32> to vector<16x384xbf16>
    %cst_37 = arith.constant dense<0.000000e+00> : vector<16x128xf32>
    %63 = tpu.matmul %62, %60, %cst_37 {dimension_numbers = #tpu.dot_dimension_numbers<[1], [0], [0], [1], [0, 0, 1, 1], [], []>} : vector<16x384xbf16>, vector<384x128xbf16>, vector<16x128xf32> -> vector<16x128xf32>
    %64 = vector.broadcast %61 : vector<1x128xf32> to vector<16x128xf32>
    %65 = arith.addf %63, %64 : vector<16x128xf32>
    %cst_38 = arith.constant 0.000000e+00 : f32
    %66 = vector.broadcast %cst_38 : f32 to vector<16x128xf32>
    %67 = arith.maximumf %65, %66 : vector<16x128xf32>
    %c768 = arith.constant 768 : index
    %c0_39 = arith.constant 0 : index
    %68 = vector.load %arg5[%c768, %c0_39] : memref<896x256xbf16, #tpu.memory_space<vmem>>, vector<128x256xbf16>
    %c48 = arith.constant 48 : index
    %c0_40 = arith.constant 0 : index
    %69 = vector.load %arg8[%c48, %c0_40] : memref<72x512xf32, #tpu.memory_space<vmem>>, vector<1x256xf32>
    %70 = arith.truncf %67 : vector<16x128xf32> to vector<16x128xbf16>
    %cst_41 = arith.constant dense<0.000000e+00> : vector<16x256xf32>
    %71 = tpu.matmul %70, %68, %cst_41 {dimension_numbers = #tpu.dot_dimension_numbers<[1], [0], [0], [1], [0, 0, 1, 1], [], []>} : vector<16x128xbf16>, vector<128x256xbf16>, vector<16x256xf32> -> vector<16x256xf32>
    %72 = vector.broadcast %69 : vector<1x256xf32> to vector<16x256xf32>
    %73 = arith.addf %71, %72 : vector<16x256xf32>
    %cst_42 = arith.constant 0.000000e+00 : f32
    %74 = vector.broadcast %cst_42 : f32 to vector<16x256xf32>
    %75 = arith.maximumf %73, %74 : vector<16x256xf32>
    %c512_43 = arith.constant 512 : index
    %c0_44 = arith.constant 0 : index
    %76 = vector.load %arg4[%c512_43, %c0_44] : memref<896x128xbf16, #tpu.memory_space<vmem>>, vector<256x128xbf16>
    %c56 = arith.constant 56 : index
    %c0_45 = arith.constant 0 : index
    %77 = vector.load %arg8[%c56, %c0_45] : memref<72x512xf32, #tpu.memory_space<vmem>>, vector<1x128xf32>
    %78 = arith.truncf %75 : vector<16x256xf32> to vector<16x256xbf16>
    %cst_46 = arith.constant dense<0.000000e+00> : vector<16x128xf32>
    %79 = tpu.matmul %78, %76, %cst_46 {dimension_numbers = #tpu.dot_dimension_numbers<[1], [0], [0], [1], [0, 0, 1, 1], [], []>} : vector<16x256xbf16>, vector<256x128xbf16>, vector<16x128xf32> -> vector<16x128xf32>
    %80 = vector.broadcast %77 : vector<1x128xf32> to vector<16x128xf32>
    %81 = arith.addf %79, %80 : vector<16x128xf32>
    %cst_47 = arith.constant 0.000000e+00 : f32
    %82 = vector.broadcast %cst_47 : f32 to vector<16x128xf32>
    %83 = arith.maximumf %81, %82 : vector<16x128xf32>
    %c768_48 = arith.constant 768 : index
    %c0_49 = arith.constant 0 : index
    %84 = vector.load %arg4[%c768_48, %c0_49] : memref<896x128xbf16, #tpu.memory_space<vmem>>, vector<128x128xbf16>
    %c64 = arith.constant 64 : index
    %c0_50 = arith.constant 0 : index
    %85 = vector.load %arg8[%c64, %c0_50] : memref<72x512xf32, #tpu.memory_space<vmem>>, vector<1x128xf32>
    %86 = arith.truncf %83 : vector<16x128xf32> to vector<16x128xbf16>
    %cst_51 = arith.constant dense<0.000000e+00> : vector<16x128xf32>
    %87 = tpu.matmul %86, %84, %cst_51 {dimension_numbers = #tpu.dot_dimension_numbers<[1], [0], [0], [1], [0, 0, 1, 1], [], []>} : vector<16x128xbf16>, vector<128x128xbf16>, vector<16x128xf32> -> vector<16x128xf32>
    %88 = vector.broadcast %85 : vector<1x128xf32> to vector<16x128xf32>
    %89 = arith.addf %87, %88 : vector<16x128xf32>
    %c0_52 = arith.constant 0 : index
    %c0_53 = arith.constant 0 : index
    %90 = vector.load %arg3[%c0_52, %c0_53] : memref<16x128xf32, #tpu.memory_space<vmem>>, vector<16x128xf32>
    %91 = vector.extract_strided_slice %90 {offsets = [0, 0], sizes = [16, 1], strides = [1, 1]} : vector<16x128xf32> to vector<16x1xf32>
    %92 = vector.extract_strided_slice %90 {offsets = [0, 1], sizes = [16, 1], strides = [1, 1]} : vector<16x128xf32> to vector<16x1xf32>
    %93 = vector.extract_strided_slice %90 {offsets = [0, 2], sizes = [16, 1], strides = [1, 1]} : vector<16x128xf32> to vector<16x1xf32>
    %94 = vector.extract_strided_slice %89 {offsets = [0, 0], sizes = [16, 1], strides = [1, 1]} : vector<16x128xf32> to vector<16x1xf32>
    %95 = vector.extract_strided_slice %89 {offsets = [0, 1], sizes = [16, 1], strides = [1, 1]} : vector<16x128xf32> to vector<16x1xf32>
    %96 = vector.extract_strided_slice %89 {offsets = [0, 2], sizes = [16, 1], strides = [1, 1]} : vector<16x128xf32> to vector<16x1xf32>
    %97 = arith.negf %94 : vector<16x1xf32>
    %98 = math.exp %97 : vector<16x1xf32>
    %cst_54 = arith.constant 1.000000e+00 : f32
    %99 = vector.broadcast %cst_54 : f32 to vector<16x1xf32>
    %100 = arith.addf %99, %98 : vector<16x1xf32>
    %101 = arith.divf %99, %100 : vector<16x1xf32>
    %cst_55 = arith.constant 1.000000e+01 : f32
    %102 = vector.broadcast %cst_55 : f32 to vector<16x1xf32>
    %103 = arith.divf %101, %102 : vector<16x1xf32>
    %cst_56 = arith.constant 2.350000e+00 : f32
    %104 = vector.broadcast %cst_56 : f32 to vector<16x1xf32>
    %105 = arith.mulf %103, %104 : vector<16x1xf32>
    %cst_57 = arith.constant 1.000000e+00 : f32
    %106 = vector.broadcast %cst_57 : f32 to vector<16x1xf32>
    %107 = arith.addf %106, %105 : vector<16x1xf32>
    %cst_58 = arith.constant 2.000000e-01 : f32
    %108 = vector.broadcast %cst_58 : f32 to vector<16x1xf32>
    %109 = arith.mulf %108, %107 : vector<16x1xf32>
    %cst_59 = arith.constant 2.731500e+02 : f32
    %110 = vector.broadcast %cst_59 : f32 to vector<16x1xf32>
    %111 = arith.addf %91, %110 : vector<16x1xf32>
    %cst_60 = arith.constant 62.3636703 : f32
    %112 = vector.broadcast %cst_60 : f32 to vector<16x1xf32>
    %113 = arith.mulf %112, %111 : vector<16x1xf32>
    %114 = tpu.reciprocal %113 {approx = true} : vector<16x1xf32> -> vector<16x1xf32>
    %115 = arith.mulf %95, %114 : vector<16x1xf32>
    %116 = arith.mulf %96, %114 : vector<16x1xf32>
    %cst_61 = arith.constant 0.000000e+00 : f32
    %117 = vector.broadcast %cst_61 : f32 to vector<16x1xf32>
    %118 = arith.subf %117, %115 : vector<16x1xf32>
    %119 = arith.mulf %118, %109 : vector<16x1xf32>
    %120 = math.exp %119 : vector<16x1xf32>
    %cst_62 = arith.constant 0.000000e+00 : f32
    %121 = vector.broadcast %cst_62 : f32 to vector<16x1xf32>
    %122 = arith.subf %121, %116 : vector<16x1xf32>
    %123 = arith.mulf %122, %109 : vector<16x1xf32>
    %124 = math.exp %123 : vector<16x1xf32>
    %125 = arith.mulf %93, %124 : vector<16x1xf32>
    %126 = arith.addf %92, %125 : vector<16x1xf32>
    %127 = arith.mulf %92, %120 : vector<16x1xf32>
    %128 = arith.addf %93, %127 : vector<16x1xf32>
    %129 = arith.mulf %93, %93 : vector<16x1xf32>
    %130 = arith.divf %124, %126 : vector<16x1xf32>
    %131 = arith.mulf %130, %130 : vector<16x1xf32>
    %132 = arith.mulf %116, %131 : vector<16x1xf32>
    %133 = arith.mulf %115, %120 : vector<16x1xf32>
    %134 = arith.mulf %128, %128 : vector<16x1xf32>
    %135 = arith.divf %133, %134 : vector<16x1xf32>
    %136 = arith.addf %132, %135 : vector<16x1xf32>
    %137 = arith.mulf %129, %136 : vector<16x1xf32>
    %138 = arith.mulf %92, %92 : vector<16x1xf32>
    %139 = arith.divf %120, %128 : vector<16x1xf32>
    %140 = arith.mulf %139, %139 : vector<16x1xf32>
    %141 = arith.mulf %115, %140 : vector<16x1xf32>
    %142 = arith.mulf %116, %124 : vector<16x1xf32>
    %143 = arith.mulf %126, %126 : vector<16x1xf32>
    %144 = arith.divf %142, %143 : vector<16x1xf32>
    %145 = arith.addf %141, %144 : vector<16x1xf32>
    %146 = arith.mulf %138, %145 : vector<16x1xf32>
    %147 = tpu.iota {dimensions = array<i32: 1>} : vector<16x128xi32>
    %c0_i32 = arith.constant 0 : i32
    %148 = vector.broadcast %c0_i32 : i32 to vector<16x128xi32>
    %149 = arith.cmpi eq, %147, %148 : vector<16x128xi32>
    %c1_i32 = arith.constant 1 : i32
    %150 = vector.broadcast %c1_i32 : i32 to vector<16x128xi32>
    %151 = arith.cmpi eq, %147, %150 : vector<16x128xi32>
    %cst_63 = arith.constant 0.000000e+00 : f32
    %152 = vector.shape_cast %146 : vector<16x1xf32> to vector<16x1xf32>
    %153 = vector.broadcast %152 : vector<16x1xf32> to vector<16x128xf32>
    %154 = vector.broadcast %cst_63 : f32 to vector<16x128xf32>
    %155 = arith.select %151, %153, %154 : vector<16x128xi1>, vector<16x128xf32>
    %156 = vector.shape_cast %137 : vector<16x1xf32> to vector<16x1xf32>
    %157 = vector.broadcast %156 : vector<16x1xf32> to vector<16x128xf32>
    %158 = arith.select %149, %157, %155 : vector<16x128xi1>, vector<16x128xf32>
    %c0_64 = arith.constant 0 : index
    %c0_65 = arith.constant 0 : index
    %159 = vector.load %arg9[%c0_64, %c0_65] : memref<16x128xf32, #tpu.memory_space<vmem>>, vector<16x128xf32>
    tpu.vector_store %arg9[%c0_64, %c0_65], %158 {strides = array<i32>} : memref<16x128xf32, #tpu.memory_space<vmem>>, vector<16x128xf32>,
    return
  }
}

</mosaic_0001>

<llo_original>
// kernel: gnn_activity_coeff.1
$region0: #{gnn_activity_coeff.1}
  #allocation0 [shape = 'u32[]', space=smem, size = 0x4, offset = 0x4, fixed_abs, tag = 'smem constant byte address 0x4 - core index']
  #allocation1 [shape = 'u32[144,128]{1,0:T(1,128)}', space=vmem, size = 0x12000, scoped, tag = 'internal scratch']
  %s0 = inlined_call_operand.vmem [shape: f32[128,128], index: 0, kind: input, shape index: {}]
  %s1 = inlined_call_operand.vmem [shape: f32[128,128], index: 1, kind: input, shape index: {}]
  %s2 = inlined_call_operand.vmem [shape: f32[16,128], index: 2, kind: input, shape index: {}]
  %s3 = inlined_call_operand.vmem [shape: f32[16,128], index: 3, kind: input, shape index: {}]
  %s4 = inlined_call_operand.hbm [shape: bf16[896,128], index: 4, kind: input, shape index: {}]
  %s5 = inlined_call_operand.vmem [shape: bf16[896,256], index: 5, kind: input, shape index: {}]
  %s6 = inlined_call_operand.hbm [shape: bf16[256,384], index: 6, kind: input, shape index: {}]
  %s7 = inlined_call_operand.hbm [shape: bf16[128,512], index: 7, kind: input, shape index: {}]
  %s8 = inlined_call_operand.hbm [shape: f32[72,512], index: 8, kind: input, shape index: {}]
  %s9 = inlined_call_operand.vmem [shape: f32[16,128], index: 9, kind: output, shape index: {}]
  %s10 = sld [smem:[#allocation0]]
  $region62: #{gnn_activity_coeff.1} parent=0
    _
  %s12 = ssub.s32 1, %s10
  %s13 = scalar_select 0, %s12, %s10
  $region1: #{gnn_activity_coeff.1} parent=0
    #allocation2 [shape = 'u8[229376]{0}', space=vmem, size = 0x38000, scoped, tag = 'input window, operand 4, single buffered']
    #allocation3 [shape = 's32[1]{0}', space=sflag, size = 0x4, scoped, tag = 'scoped memory for gnn_activity_coeff.1']
    #allocation4 [shape = 'u8[196608]{0}', space=vmem, size = 0x30000, scoped, tag = 'input window, operand 6, single buffered']
    #allocation5 [shape = 's32[1]{0}', space=sflag, size = 0x4, scoped, tag = 'scoped memory for gnn_activity_coeff.1']
    #allocation6 [shape = 'u8[131072]{0}', space=vmem, size = 0x20000, scoped, tag = 'input window, operand 7, single buffered']
    #allocation7 [shape = 'u8[147456]{0}', space=vmem, size = 0x24000, scoped, tag = 'input window, operand 8, single buffered']
    #allocation8 [shape = 's32[1]{0}', space=sflag, size = 0x4, scoped, tag = 'scoped memory for gnn_activity_coeff.1']
    %14 = vsyncpa [#allocation3], 0
    %15 = vsyncpa [#allocation5], 0
    %16 = vsyncpa [#allocation8], 0
    // Predicated region
    $region2: #{gnn_activity_coeff.1} parent=1 // pred_check
      _
    $region3: #{gnn_activity_coeff.1} parent=1 // pred_check_branch
      %18 = sbr.rel (0) target = $region5
    $region4: #{gnn_activity_coeff.1} parent=1 // pred_region
      _
    $region5: #{gnn_activity_coeff.1} parent=1 // pred_fallthru
      _
    // Predicated region
    $region6: #{gnn_activity_coeff.1} parent=1 // pred_check
      _
    $region7: #{gnn_activity_coeff.1} parent=1 // pred_check_branch
      %20 = sbr.rel (0) target = $region9
    $region8: #{gnn_activity_coeff.1} parent=1 // pred_region
      _
    $region9: #{gnn_activity_coeff.1} parent=1 // pred_fallthru
      _
    // Predicated region
    $region10: #{gnn_activity_coeff.1} parent=1 // pred_check
      _
    $region11: #{gnn_activity_coeff.1} parent=1 // pred_check_branch
      %22 = sbr.rel (0) target = $region13
    $region12: #{gnn_activity_coeff.1} parent=1 // pred_region
      _
    $region13: #{gnn_activity_coeff.1} parent=1 // pred_fallthru
      _
    // Predicated region
    $region14: #{gnn_activity_coeff.1} parent=1 // pred_check
      _
    $region15: #{gnn_activity_coeff.1} parent=1 // pred_check_branch
      %24 = sbr.rel (0) target = $region17
    $region16: #{gnn_activity_coeff.1} parent=1 // pred_region
      _
    $region17: #{gnn_activity_coeff.1} parent=1 // pred_fallthru
      _
    // Predicated region
    $region18: #{gnn_activity_coeff.1} parent=1 // pred_check
      _
    $region19: #{gnn_activity_coeff.1} parent=1 // pred_check_branch
      %26 = sbr.rel (0) target = $region21
    $region20: #{gnn_activity_coeff.1} parent=1 // pred_region
      %s28 = ssub.s32 7168, 7168
      %29 = vsyncadd [#allocation3], %s28
      %s30 = sshll.u32 [#allocation2], 4
      %s31 = int_to_ptr.vmem [resolvable:$true] %s30
      %36 = dma.hbm_to_vmem [thread:$0]  %s4, 7168, %s31, [#allocation3], 64, 64, 4
    $region21: #{gnn_activity_coeff.1} parent=1 // pred_fallthru
      _
    // Predicated region
    $region22: #{gnn_activity_coeff.1} parent=1 // pred_check
      _
    $region23: #{gnn_activity_coeff.1} parent=1 // pred_check_branch
      %38 = sbr.rel (0) target = $region25
    $region24: #{gnn_activity_coeff.1} parent=1 // pred_region
      _
    $region25: #{gnn_activity_coeff.1} parent=1 // pred_fallthru
      _
    // Predicated region
    $region26: #{gnn_activity_coeff.1} parent=1 // pred_check
      _
    $region27: #{gnn_activity_coeff.1} parent=1 // pred_check_branch
      %40 = sbr.rel (0) target = $region29
    $region28: #{gnn_activity_coeff.1} parent=1 // pred_region
      %s42 = ssub.s32 6144, 6144
      %43 = vsyncadd [#allocation5], %s42
      %s44 = sshll.u32 [#allocation4], 4
      %s45 = int_to_ptr.vmem [resolvable:$true] %s44
      %50 = dma.hbm_to_vmem [thread:$0]  %s6, 6144, %s45, [#allocation5], 192, 192, 12
    $region29: #{gnn_activity_coeff.1} parent=1 // pred_fallthru
      _
    // Predicated region
    $region30: #{gnn_activity_coeff.1} parent=1 // pred_check
      _
    $region31: #{gnn_activity_coeff.1} parent=1 // pred_check_branch
      %52 = sbr.rel (0) target = $region33
    $region32: #{gnn_activity_coeff.1} parent=1 // pred_region
      %s54 = ssub.s32 4096, 4096
      %55 = vsyncadd [#allocation5], %s54
      %s56 = sshll.u32 [#allocation6], 4
      %s57 = int_to_ptr.vmem [resolvable:$true] %s56
      %62 = dma.hbm_to_vmem [thread:$0]  %s7, 4096, %s57, [#allocation5], 256, 256, 16
    $region33: #{gnn_activity_coeff.1} parent=1 // pred_fallthru
      _
    // Predicated region
    $region34: #{gnn_activity_coeff.1} parent=1 // pred_check
      _
    $region35: #{gnn_activity_coeff.1} parent=1 // pred_check_branch
      %64 = sbr.rel (0) target = $region37
    $region36: #{gnn_activity_coeff.1} parent=1 // pred_region
      %s66 = ssub.s32 4608, 4608
      %67 = vsyncadd [#allocation8], %s66
      %s68 = sshll.u32 [#allocation7], 4
      %s69 = int_to_ptr.vmem [resolvable:$true] %s68
      %74 = dma.hbm_to_vmem [thread:$0]  %s8, 4608, %s69, [#allocation8], 512, 512, 32
    $region37: #{gnn_activity_coeff.1} parent=1 // pred_fallthru
      _
    // Predicated region
    $region38: #{gnn_activity_coeff.1} parent=1 // pred_check
      _
    $region39: #{gnn_activity_coeff.1} parent=1 // pred_check_branch
      %76 = sbr.rel (0) target = $region41
    $region40: #{gnn_activity_coeff.1} parent=1 // pred_region
      %77 = dma.done [#allocation3], 7168
    $region41: #{gnn_activity_coeff.1} parent=1 // pred_fallthru
      _
    // Predicated region
    $region42: #{gnn_activity_coeff.1} parent=1 // pred_check
      _
    $region43: #{gnn_activity_coeff.1} parent=1 // pred_check_branch
      %79 = sbr.rel (0) target = $region45
    $region44: #{gnn_activity_coeff.1} parent=1 // pred_region
      %80 = dma.done [#allocation5], 6144
    $region45: #{gnn_activity_coeff.1} parent=1 // pred_fallthru
      _
    // Predicated region
    $region46: #{gnn_activity_coeff.1} parent=1 // pred_check
      _
    $region47: #{gnn_activity_coeff.1} parent=1 // pred_check_branch
      %82 = sbr.rel (0) target = $region49
    $region48: #{gnn_activity_coeff.1} parent=1 // pred_region
      %83 = dma.done [#allocation5], 4096
    $region49: #{gnn_activity_coeff.1} parent=1 // pred_fallthru
      _
    // Predicated region
    $region50: #{gnn_activity_coeff.1} parent=1 // pred_check
      _
    $region51: #{gnn_activity_coeff.1} parent=1 // pred_check_branch
      %85 = sbr.rel (0) target = $region53
    $region52: #{gnn_activity_coeff.1} parent=1 // pred_region
      %86 = dma.done [#allocation8], 4608
    $region53: #{gnn_activity_coeff.1} parent=1 // pred_fallthru
      _
    %v88 = vld [vmem:[%s0] sm:$0xff]
    %v89 = vld [vmem:[%s0 + $0x8] sm:$0xff]
    %v90 = vld [vmem:[%s0 + $0x10] sm:$0xff]
    %v91 = vld [vmem:[%s0 + $0x18] sm:$0xff]
    %v92 = vld [vmem:[%s0 + $0x20] sm:$0xff]
    %v93 = vld [vmem:[%s0 + $0x28] sm:$0xff]
    %v94 = vld [vmem:[%s0 + $0x30] sm:$0xff]
    %v95 = vld [vmem:[%s0 + $0x38] sm:$0xff]
    %v96 = vld [vmem:[%s0 + $0x40] sm:$0xff]
    %v97 = vld [vmem:[%s0 + $0x48] sm:$0xff]
    %v98 = vld [vmem:[%s0 + $0x50] sm:$0xff]
    %v99 = vld [vmem:[%s0 + $0x58] sm:$0xff]
    %v100 = vld [vmem:[%s0 + $0x60] sm:$0xff]
    %v101 = vld [vmem:[%s0 + $0x68] sm:$0xff]
    %v102 = vld [vmem:[%s0 + $0x70] sm:$0xff]
    %v103 = vld [vmem:[%s0 + $0x78] sm:$0xff]
    %v104 = vld [vmem:[%s1] sm:$0xff]
    %v105 = vld [vmem:[%s1 + $0x8] sm:$0xff]
    %v106 = vld [vmem:[%s1 + $0x10] sm:$0xff]
    %v107 = vld [vmem:[%s1 + $0x18] sm:$0xff]
    %v108 = vld [vmem:[%s1 + $0x20] sm:$0xff]
    %v109 = vld [vmem:[%s1 + $0x28] sm:$0xff]
    %v110 = vld [vmem:[%s1 + $0x30] sm:$0xff]
    %v111 = vld [vmem:[%s1 + $0x38] sm:$0xff]
    %v112 = vld [vmem:[%s1 + $0x40] sm:$0xff]
    %v113 = vld [vmem:[%s1 + $0x48] sm:$0xff]
    %v114 = vld [vmem:[%s1 + $0x50] sm:$0xff]
    %v115 = vld [vmem:[%s1 + $0x58] sm:$0xff]
    %v116 = vld [vmem:[%s1 + $0x60] sm:$0xff]
    %v117 = vld [vmem:[%s1 + $0x68] sm:$0xff]
    %v118 = vld [vmem:[%s1 + $0x70] sm:$0xff]
    %v119 = vld [vmem:[%s1 + $0x78] sm:$0xff]
    %v120 = vld [vmem:[#allocation2] sm:$0xf]
    %v121 = vld [vmem:[#allocation2 + $0x4] sm:$0xf]
    %v122 = vld [vmem:[#allocation2 + $0x8] sm:$0xf]
    %v123 = vld [vmem:[#allocation2 + $0xc] sm:$0xf]
    %v124 = vld [vmem:[#allocation2 + $0x10] sm:$0xf]
    %v125 = vld [vmem:[#allocation2 + $0x14] sm:$0xf]
    %v126 = vld [vmem:[#allocation2 + $0x18] sm:$0xf]
    %v127 = vld [vmem:[#allocation2 + $0x1c] sm:$0xf]
    %v128 = vld [vmem:[#allocation2 + $0x20] sm:$0xf]
    %v129 = vld [vmem:[#allocation2 + $0x24] sm:$0xf]
    %v130 = vld [vmem:[#allocation2 + $0x28] sm:$0xf]
    %v131 = vld [vmem:[#allocation2 + $0x2c] sm:$0xf]
    %v132 = vld [vmem:[#allocation2 + $0x30] sm:$0xf]
    %v133 = vld [vmem:[#allocation2 + $0x34] sm:$0xf]
    %v134 = vld [vmem:[#allocation2 + $0x38] sm:$0xf]
    %v135 = vld [vmem:[#allocation2 + $0x3c] sm:$0xf]
    %v136 = vld [vmem:[#allocation7] ss:$0 sm:$0xff]
    %v137 = vpack.c.bf16 %v105, %v104
    %v138 = vpack.c.bf16 %v107, %v106
    %v139 = vpack.c.bf16 %v109, %v108
    %v140 = vpack.c.bf16 %v111, %v110
    %v141 = vpack.c.bf16 %v113, %v112
    %v142 = vpack.c.bf16 %v115, %v114
    %v143 = vpack.c.bf16 %v117, %v116
    %v144 = vpack.c.bf16 %v119, %v118
    %v161 = vunpack.c.l.b16 %v120
    %v162 = vunpack.c.l.b16 %v121
    %v163 = vunpack.c.l.b16 %v122
    %v164 = vunpack.c.l.b16 %v123
    %v165 = vunpack.c.l.b16 %v124
    %v166 = vunpack.c.l.b16 %v125
    %v167 = vunpack.c.l.b16 %v126
    %v168 = vunpack.c.l.b16 %v127
    %v169 = vunpack.c.l.b16 %v128
    %v170 = vunpack.c.l.b16 %v129
    %v171 = vunpack.c.l.b16 %v130
    %v172 = vunpack.c.l.b16 %v131
    %v173 = vunpack.c.l.b16 %v132
    %v174 = vunpack.c.l.b16 %v133
    %v175 = vunpack.c.l.b16 %v134
    %v176 = vunpack.c.l.b16 %v135
    %v177 = vpack.c.b16 %v162, %v161
    %v178 = vpack.c.b16 %v164, %v163
    %v179 = vpack.c.b16 %v166, %v165
    %v180 = vpack.c.b16 %v168, %v167
    %v181 = vpack.c.b16 %v170, %v169
    %v182 = vpack.c.b16 %v172, %v171
    %v183 = vpack.c.b16 %v174, %v173
    %v184 = vpack.c.b16 %v176, %v175
    %193 = vmatprep.subr.bf16.mxu0 0
    %194 = vmatpush1.bf16.msra.mxu0 %v184
    %195 = vmatprep.subr.bf16.mxu0 0
    %196 = vmatpush1.bf16.msra.mxu0 %v183
    %197 = vmatprep.subr.bf16.mxu0 0
    %198 = vmatpush1.bf16.msra.mxu0 %v182
    %199 = vmatprep.subr.bf16.mxu0 0
    %200 = vmatpush1.bf16.msra.mxu0 %v181
    %201 = vmatprep.subr.bf16.mxu0 0
    %202 = vmatpush1.bf16.msra.mxu0 %v180
    %203 = vmatprep.subr.bf16.mxu0 0
    %204 = vmatpush1.bf16.msra.mxu0 %v179
    %205 = vmatprep.subr.bf16.mxu0 0
    %206 = vmatpush1.bf16.msra.mxu0 %v178
    %207 = vmatprep.subr.bf16.mxu0 0
    %208 = vmatpush1.bf16.msra.mxu0 %v177
    %209 = vmatprep.subr.bf16.mxu0 0
    %210 = vmatpush2.bf16.msra.mxu0 0
    %211 = vmatprep.subr.bf16.mxu0 0
    %212 = vmatpush2.bf16.msra.mxu0 0
    %213 = vmatprep.subr.bf16.mxu0 0
    %214 = vmatpush2.bf16.msra.mxu0 0
    %215 = vmatprep.subr.bf16.mxu0 0
    %216 = vmatpush2.bf16.msra.mxu0 0
    %217 = vmatprep.subr.bf16.mxu0 0
    %218 = vmatpush2.bf16.msra.mxu0 0
    %219 = vmatprep.subr.bf16.mxu0 0
    %220 = vmatpush2.bf16.msra.mxu0 0
    %221 = vmatprep.subr.bf16.mxu0 0
    %222 = vmatpush2.bf16.msra.mxu0 0
    %223 = vmatprep.subr.bf16.mxu0 0
    %224 = vmatpush2.bf16.msra.mxu0 0
    %225 = vmatprep.mubr.bf16.mxu0 0
    %226 = vmatmul.mubr.bf16.gmra.mxu0 %v137
    %v227 = vpop.f32.mrf.mxu0
    %v228 = vadd.f32 0.0, %v227
    %v229 = vpop.f32.mrf.mxu0
    %v230 = vpop.f32.mrf.mxu0
    %v231 = vadd.f32 0.0, %v230
    %v232 = vpop.f32.mrf.mxu0
    %233 = vmatprep.mubr.bf16.mxu0 0
    %234 = vmatmul.mubr.bf16.gmra.mxu0 %v138
    %v235 = vpop.f32.mrf.mxu0
    %v236 = vadd.f32 0.0, %v235
    %v237 = vpop.f32.mrf.mxu0
    %v238 = vpop.f32.mrf.mxu0
    %v239 = vadd.f32 0.0, %v238
    %v240 = vpop.f32.mrf.mxu0
    %241 = vmatprep.mubr.bf16.mxu0 0
    %242 = vmatmul.mubr.bf16.gmra.mxu0 %v139
    %v243 = vpop.f32.mrf.mxu0
    %v244 = vadd.f32 0.0, %v243
    %v245 = vpop.f32.mrf.mxu0
    %v246 = vpop.f32.mrf.mxu0
    %v247 = vadd.f32 0.0, %v246
    %v248 = vpop.f32.mrf.mxu0
    %249 = vmatprep.mubr.bf16.mxu0 0
    %250 = vmatmul.mubr.bf16.gmra.mxu0 %v140
    %v251 = vpop.f32.mrf.mxu0
    %v252 = vadd.f32 0.0, %v251
    %v253 = vpop.f32.mrf.mxu0
    %v254 = vpop.f32.mrf.mxu0
    %v255 = vadd.f32 0.0, %v254
    %v256 = vpop.f32.mrf.mxu0
    %257 = vmatprep.mubr.bf16.mxu0 0
    %258 = vmatmul.mubr.bf16.gmra.mxu0 %v141
    %v259 = vpop.f32.mrf.mxu0
    %v260 = vadd.f32 0.0, %v259
    %v261 = vpop.f32.mrf.mxu0
    %v262 = vpop.f32.mrf.mxu0
    %v263 = vadd.f32 0.0, %v262
    %v264 = vpop.f32.mrf.mxu0
    %265 = vmatprep.mubr.bf16.mxu0 0
    %266 = vmatmul.mubr.bf16.gmra.mxu0 %v142
    %v267 = vpop.f32.mrf.mxu0
    %v268 = vadd.f32 0.0, %v267
    %v269 = vpop.f32.mrf.mxu0
    %v270 = vpop.f32.mrf.mxu0
    %v271 = vadd.f32 0.0, %v270
    %v272 = vpop.f32.mrf.mxu0
    %273 = vmatprep.mubr.bf16.mxu0 0
    %274 = vmatmul.mubr.bf16.gmra.mxu0 %v143
    %v275 = vpop.f32.mrf.mxu0
    %v276 = vadd.f32 0.0, %v275
    %v277 = vpop.f32.mrf.mxu0
    %v278 = vpop.f32.mrf.mxu0
    %v279 = vadd.f32 0.0, %v278
    %v280 = vpop.f32.mrf.mxu0
    %281 = vmatprep.mubr.bf16.mxu0 0
    %282 = vmatmul.mubr.bf16.gmra.mxu0 %v144
    %v283 = vpop.f32.mrf.mxu0
    %v284 = vadd.f32 0.0, %v283
    %v285 = vpop.f32.mrf.mxu0
    %v286 = vpop.f32.mrf.mxu0
    %v287 = vadd.f32 0.0, %v286
    %v288 = vpop.f32.mrf.mxu0
    %289 = vdwg.mxu0
    %v290 = vpack.c.bf16 %v89, %v88
    %v291 = vpack.c.bf16 %v91, %v90
    %v292 = vpack.c.bf16 %v93, %v92
    %v293 = vpack.c.bf16 %v95, %v94
    %v294 = vpack.c.bf16 %v97, %v96
    %v295 = vpack.c.bf16 %v99, %v98
    %v296 = vpack.c.bf16 %v101, %v100
    %v297 = vpack.c.bf16 %v103, %v102
    %v298 = vpack.c.bf16 %v231, %v228
    %v299 = vpack.c.bf16 %v239, %v236
    %v300 = vpack.c.bf16 %v247, %v244
    %v301 = vpack.c.bf16 %v255, %v252
    %v302 = vpack.c.bf16 %v263, %v260
    %v303 = vpack.c.bf16 %v271, %v268
    %v304 = vpack.c.bf16 %v279, %v276
    %v305 = vpack.c.bf16 %v287, %v284
    %306 = vmatprep.subr.bf16.mxu0 0
    %307 = vmatpush1.bf16.msra.mxu0 %v305
    %308 = vmatprep.subr.bf16.mxu0 0
    %309 = vmatpush1.bf16.msra.mxu0 %v304
    %310 = vmatprep.subr.bf16.mxu0 0
    %311 = vmatpush1.bf16.msra.mxu0 %v303
    %312 = vmatprep.subr.bf16.mxu0 0
    %313 = vmatpush1.bf16.msra.mxu0 %v302
    %314 = vmatprep.subr.bf16.mxu0 0
    %315 = vmatpush1.bf16.msra.mxu0 %v301
    %316 = vmatprep.subr.bf16.mxu0 0
    %317 = vmatpush1.bf16.msra.mxu0 %v300
    %318 = vmatprep.subr.bf16.mxu0 0
    %319 = vmatpush1.bf16.msra.mxu0 %v299
    %320 = vmatprep.subr.bf16.mxu0 0
    %321 = vmatpush1.bf16.msra.mxu0 %v298
    %322 = vmatprep.subr.bf16.mxu0 0
    %323 = vmatpush2.bf16.msra.mxu0 0
    %324 = vmatprep.subr.bf16.mxu0 0
    %325 = vmatpush2.bf16.msra.mxu0 0
    %326 = vmatprep.subr.bf16.mxu0 0
    %327 = vmatpush2.bf16.msra.mxu0 0
    %328 = vmatprep.subr.bf16.mxu0 0
    %329 = vmatpush2.bf16.msra.mxu0 0
    %330 = vmatprep.subr.bf16.mxu0 0
    %331 = vmatpush2.bf16.msra.mxu0 0
    %332 = vmatprep.subr.bf16.mxu0 0
    %333 = vmatpush2.bf16.msra.mxu0 0
    %334 = vmatprep.subr.bf16.mxu0 0
    %335 = vmatpush2.bf16.msra.mxu0 0
    %336 = vmatprep.subr.bf16.mxu0 0
    %337 = vmatpush2.bf16.msra.mxu0 0
    %338 = vmatprep.mubr.bf16.mxu0 0
    %339 = vmatmul.mubr.bf16.gmra.mxu0 %v290
    %v340 = vpop.f32.mrf.mxu0
    %v341 = vadd.f32 %v136, %v340
    %v342 = vpop.f32.mrf.mxu0
    %v343 = vpop.f32.mrf.mxu0
    %v344 = vadd.f32 %v136, %v343
    %v345 = vpop.f32.mrf.mxu0
    %346 = vmatprep.mubr.bf16.mxu0 0
    %347 = vmatmul.mubr.bf16.gmra.mxu0 %v291
    %v348 = vpop.f32.mrf.mxu0
    %v349 = vadd.f32 %v136, %v348
    %v350 = vpop.f32.mrf.mxu0
    %v351 = vpop.f32.mrf.mxu0
    %v352 = vadd.f32 %v136, %v351
    %v353 = vpop.f32.mrf.mxu0
    %354 = vmatprep.mubr.bf16.mxu0 0
    %355 = vmatmul.mubr.bf16.gmra.mxu0 %v292
    %v356 = vpop.f32.mrf.mxu0
    %v357 = vadd.f32 %v136, %v356
    %v358 = vpop.f32.mrf.mxu0
    %v359 = vpop.f32.mrf.mxu0
    %v360 = vadd.f32 %v136, %v359
    %v361 = vpop.f32.mrf.mxu0
    %362 = vmatprep.mubr.bf16.mxu0 0
    %363 = vmatmul.mubr.bf16.gmra.mxu0 %v293
    %v364 = vpop.f32.mrf.mxu0
    %v365 = vadd.f32 %v136, %v364
    %v366 = vpop.f32.mrf.mxu0
    %v367 = vpop.f32.mrf.mxu0
    %v368 = vadd.f32 %v136, %v367
    %v369 = vpop.f32.mrf.mxu0
    %370 = vmatprep.mubr.bf16.mxu0 0
    %371 = vmatmul.mubr.bf16.gmra.mxu0 %v294
    %v372 = vpop.f32.mrf.mxu0
    %v373 = vadd.f32 %v136, %v372
    %v374 = vpop.f32.mrf.mxu0
    %v375 = vpop.f32.mrf.mxu0
    %v376 = vadd.f32 %v136, %v375
    %v377 = vpop.f32.mrf.mxu0
    %378 = vmatprep.mubr.bf16.mxu0 0
    %379 = vmatmul.mubr.bf16.gmra.mxu0 %v295
    %v380 = vpop.f32.mrf.mxu0
    %v381 = vadd.f32 %v136, %v380
    %v382 = vpop.f32.mrf.mxu0
    %v383 = vpop.f32.mrf.mxu0
    %v384 = vadd.f32 %v136, %v383
    %v385 = vpop.f32.mrf.mxu0
    %386 = vmatprep.mubr.bf16.mxu0 0
    %387 = vmatmul.mubr.bf16.gmra.mxu0 %v296
    %v388 = vpop.f32.mrf.mxu0
    %v389 = vadd.f32 %v136, %v388
    %v390 = vpop.f32.mrf.mxu0
    %v391 = vpop.f32.mrf.mxu0
    %v392 = vadd.f32 %v136, %v391
    %v393 = vpop.f32.mrf.mxu0
    %394 = vmatprep.mubr.bf16.mxu0 0
    %395 = vmatmul.mubr.bf16.gmra.mxu0 %v297
    %v396 = vpop.f32.mrf.mxu0
    %v397 = vadd.f32 %v136, %v396
    %v398 = vpop.f32.mrf.mxu0
    %v399 = vpop.f32.mrf.mxu0
    %v400 = vadd.f32 %v136, %v399
    %v401 = vpop.f32.mrf.mxu0
    %402 = vdwg.mxu0
    %v403 = vmax.f32 %v341, 0.0
    %v404 = vmax.f32 %v344, 0.0
    %v405 = vmax.f32 %v349, 0.0
    %v406 = vmax.f32 %v352, 0.0
    %v407 = vmax.f32 %v357, 0.0
    %v408 = vmax.f32 %v360, 0.0
    %v409 = vmax.f32 %v365, 0.0
    %v410 = vmax.f32 %v368, 0.0
    %v411 = vmax.f32 %v373, 0.0
    %v412 = vmax.f32 %v376, 0.0
    %v413 = vmax.f32 %v381, 0.0
    %v414 = vmax.f32 %v384, 0.0
    %v415 = vmax.f32 %v389, 0.0
    %v416 = vmax.f32 %v392, 0.0
    %v417 = vmax.f32 %v397, 0.0
    %v418 = vmax.f32 %v400, 0.0
    %v419 = vld [vmem:[#allocation6] sm:$0xff]
    %v420 = vld [vmem:[#allocation6 + $0x8] sm:$0xff]
    %v421 = vld [vmem:[#allocation6 + $0x10] sm:$0xff]
    %v422 = vld [vmem:[#allocation6 + $0x18] sm:$0xff]
    %v423 = vld [vmem:[#allocation6 + $0x20] sm:$0xff]
    %v424 = vld [vmem:[#allocation6 + $0x28] sm:$0xff]
    %v425 = vld [vmem:[#allocation6 + $0x30] sm:$0xff]
    %v426 = vld [vmem:[#allocation6 + $0x38] sm:$0xff]
    %v427 = vld [vmem:[#allocation6 + $0x40] sm:$0xff]
    %v428 = vld [vmem:[#allocation6 + $0x48] sm:$0xff]
    %v429 = vld [vmem:[#allocation6 + $0x50] sm:$0xff]
    %v430 = vld [vmem:[#allocation6 + $0x58] sm:$0xff]
    %v431 = vld [vmem:[#allocation6 + $0x60] sm:$0xff]
    %v432 = vld [vmem:[#allocation6 + $0x68] sm:$0xff]
    %v433 = vld [vmem:[#allocation6 + $0x70] sm:$0xff]
    %v434 = vld [vmem:[#allocation6 + $0x78] sm:$0xff]
    %v435 = vld [vmem:[#allocation6 + $0x80] sm:$0xff]
    %v436 = vld [vmem:[#allocation6 + $0x88] sm:$0xff]
    %v437 = vld [vmem:[#allocation6 + $0x90] sm:$0xff]
    %v438 = vld [vmem:[#allocation6 + $0x98] sm:$0xff]
    %v439 = vld [vmem:[#allocation6 + $0xa0] sm:$0xff]
    %v440 = vld [vmem:[#allocation6 + $0xa8] sm:$0xff]
    %v441 = vld [vmem:[#allocation6 + $0xb0] sm:$0xff]
    %v442 = vld [vmem:[#allocation6 + $0xb8] sm:$0xff]
    %v443 = vld [vmem:[#allocation6 + $0xc0] sm:$0xff]
    %v444 = vld [vmem:[#allocation6 + $0xc8] sm:$0xff]
    %v445 = vld [vmem:[#allocation6 + $0xd0] sm:$0xff]
    %v446 = vld [vmem:[#allocation6 + $0xd8] sm:$0xff]
    %v447 = vld [vmem:[#allocation6 + $0xe0] sm:$0xff]
    %v448 = vld [vmem:[#allocation6 + $0xe8] sm:$0xff]
    %v449 = vld [vmem:[#allocation6 + $0xf0] sm:$0xff]
    %v450 = vld [vmem:[#allocation6 + $0xf8] sm:$0xff]
    %s451 = scalar_lea.vmem [#allocation7], 32
    %v452 = vld [vmem:[%s451] ss:$8 sm:$0xf]
    %v453 = vpack.c.bf16 %v404, %v403
    %v454 = vpack.c.bf16 %v406, %v405
    %v455 = vpack.c.bf16 %v408, %v407
    %v456 = vpack.c.bf16 %v410, %v409
    %v457 = vpack.c.bf16 %v412, %v411
    %v458 = vpack.c.bf16 %v414, %v413
    %v459 = vpack.c.bf16 %v416, %v415
    %v460 = vpack.c.bf16 %v418, %v417
    %461 = vmatprep.subr.bf16.mxu0 0
    %462 = vmatpush1.bf16.msra.mxu0 %v460
    %463 = vmatprep.subr.bf16.mxu0 0
    %464 = vmatpush1.bf16.msra.mxu0 %v459
    %465 = vmatprep.subr.bf16.mxu0 0
    %466 = vmatpush1.bf16.msra.mxu0 %v458
    %467 = vmatprep.subr.bf16.mxu0 0
    %468 = vmatpush1.bf16.msra.mxu0 %v457
    %469 = vmatprep.subr.bf16.mxu0 0
    %470 = vmatpush1.bf16.msra.mxu0 %v456
    %471 = vmatprep.subr.bf16.mxu0 0
    %472 = vmatpush1.bf16.msra.mxu0 %v455
    %473 = vmatprep.subr.bf16.mxu0 0
    %474 = vmatpush1.bf16.msra.mxu0 %v454
    %475 = vmatprep.subr.bf16.mxu0 0
    %476 = vmatpush1.bf16.msra.mxu0 %v453
    %477 = vmatprep.subr.bf16.mxu0 0
    %478 = vmatpush2.bf16.msra.mxu0 0
    %479 = vmatprep.subr.bf16.mxu0 0
    %480 = vmatpush2.bf16.msra.mxu0 0
    %481 = vmatprep.subr.bf16.mxu0 0
    %482 = vmatpush2.bf16.msra.mxu0 0
    %483 = vmatprep.subr.bf16.mxu0 0
    %484 = vmatpush2.bf16.msra.mxu0 0
    %485 = vmatprep.subr.bf16.mxu0 0
    %486 = vmatpush2.bf16.msra.mxu0 0
    %487 = vmatprep.subr.bf16.mxu0 0
    %488 = vmatpush2.bf16.msra.mxu0 0
    %489 = vmatprep.subr.bf16.mxu0 0
    %490 = vmatpush2.bf16.msra.mxu0 0
    %491 = vmatprep.subr.bf16.mxu0 0
    %492 = vmatpush2.bf16.msra.mxu0 0
    %493 = vmatprep.mubr.bf16.mxu0 0
    %494 = vmatmul.mubr.bf16.gmra.mxu0 %v290
    %v495 = vpop.f32.mrf.mxu0
    %v496 = vadd.f32 0.0, %v495
    %v497 = vpop.f32.mrf.mxu0
    %v498 = vpop.f32.mrf.mxu0
    %v499 = vadd.f32 0.0, %v498
    %v500 = vpop.f32.mrf.mxu0
    %501 = vmatprep.mubr.bf16.mxu0 0
    %502 = vmatmul.mubr.bf16.gmra.mxu0 %v291
    %v503 = vpop.f32.mrf.mxu0
    %v504 = vadd.f32 0.0, %v503
    %v505 = vpop.f32.mrf.mxu0
    %v506 = vpop.f32.mrf.mxu0
    %v507 = vadd.f32 0.0, %v506
    %v508 = vpop.f32.mrf.mxu0
    %509 = vmatprep.mubr.bf16.mxu0 0
    %510 = vmatmul.mubr.bf16.gmra.mxu0 %v292
    %v511 = vpop.f32.mrf.mxu0
    %v512 = vadd.f32 0.0, %v511
    %v513 = vpop.f32.mrf.mxu0
    %v514 = vpop.f32.mrf.mxu0
    %v515 = vadd.f32 0.0, %v514
    %v516 = vpop.f32.mrf.mxu0
    %517 = vmatprep.mubr.bf16.mxu0 0
    %518 = vmatmul.mubr.bf16.gmra.mxu0 %v293
    %v519 = vpop.f32.mrf.mxu0
    %v520 = vadd.f32 0.0, %v519
    %v521 = vpop.f32.mrf.mxu0
    %v522 = vpop.f32.mrf.mxu0
    %v523 = vadd.f32 0.0, %v522
    %v524 = vpop.f32.mrf.mxu0
    %525 = vmatprep.mubr.bf16.mxu0 0
    %526 = vmatmul.mubr.bf16.gmra.mxu0 %v294
    %v527 = vpop.f32.mrf.mxu0
    %v528 = vadd.f32 0.0, %v527
    %v529 = vpop.f32.mrf.mxu0
    %v530 = vpop.f32.mrf.mxu0
    %v531 = vadd.f32 0.0, %v530
    %v532 = vpop.f32.mrf.mxu0
    %533 = vmatprep.mubr.bf16.mxu0 0
    %534 = vmatmul.mubr.bf16.gmra.mxu0 %v295
    %v535 = vpop.f32.mrf.mxu0
    %v536 = vadd.f32 0.0, %v535
    %v537 = vpop.f32.mrf.mxu0
    %v538 = vpop.f32.mrf.mxu0
    %v539 = vadd.f32 0.0, %v538
    %v540 = vpop.f32.mrf.mxu0
    %541 = vmatprep.mubr.bf16.mxu0 0
    %542 = vmatmul.mubr.bf16.gmra.mxu0 %v296
    %v543 = vpop.f32.mrf.mxu0
    %v544 = vadd.f32 0.0, %v543
    %v545 = vpop.f32.mrf.mxu0
    %v546 = vpop.f32.mrf.mxu0
    %v547 = vadd.f32 0.0, %v546
    %v548 = vpop.f32.mrf.mxu0
    %549 = vmatprep.mubr.bf16.mxu0 0
    %550 = vmatmul.mubr.bf16.gmra.mxu0 %v297
    %v551 = vpop.f32.mrf.mxu0
    %v552 = vadd.f32 0.0, %v551
    %v553 = vpop.f32.mrf.mxu0
    %v554 = vpop.f32.mrf.mxu0
    %v555 = vadd.f32 0.0, %v554
    %v556 = vpop.f32.mrf.mxu0
    %557 = vdwg.mxu0
    %v558 = vpack.c.bf16 %v499, %v496
    %v559 = vpack.c.bf16 %v507, %v504
    %v560 = vpack.c.bf16 %v515, %v512
    %v561 = vpack.c.bf16 %v523, %v520
    %v562 = vpack.c.bf16 %v531, %v528
    %v563 = vpack.c.bf16 %v539, %v536
    %v564 = vpack.c.bf16 %v547, %v544
    %v565 = vpack.c.bf16 %v555, %v552
    %v567 = vlaneseq
    %v568 = vshrl.u32 %v567, 7
    %v569 = vsub.s32 0, %v568
    %v570 = vrot.slane %v452, %v569
    %v571 = vlaneseq
    %v572 = vshrl.u32 %v571, 7
    %v573 = vsub.s32 1, %v572
    %v574 = vrot.slane %v452, %v573
    %v575 = vlaneseq
    %v576 = vshrl.u32 %v575, 7
    %v577 = vsub.s32 2, %v576
    %v578 = vrot.slane %v452, %v577
    %v579 = vlaneseq
    %v580 = vshrl.u32 %v579, 7
    %v581 = vsub.s32 3, %v580
    %v582 = vrot.slane %v452, %v581
    %v619 = vunpack.c.l.b16 %v419
    %v620 = vunpack.c.h.b16 %v419
    %v621 = vunpack.c.l.b16 %v420
    %v622 = vunpack.c.h.b16 %v420
    %v623 = vunpack.c.l.b16 %v421
    %v624 = vunpack.c.h.b16 %v421
    %v625 = vunpack.c.l.b16 %v422
    %v626 = vunpack.c.h.b16 %v422
    %v627 = vunpack.c.l.b16 %v423
    %v628 = vunpack.c.h.b16 %v423
    %v629 = vunpack.c.l.b16 %v424
    %v630 = vunpack.c.h.b16 %v424
    %v631 = vunpack.c.l.b16 %v425
    %v632 = vunpack.c.h.b16 %v425
    %v633 = vunpack.c.l.b16 %v426
    %v634 = vunpack.c.h.b16 %v426
    %v635 = vunpack.c.l.b16 %v427
    %v636 = vunpack.c.h.b16 %v427
    %v637 = vunpack.c.l.b16 %v428
    %v638 = vunpack.c.h.b16 %v428
    %v639 = vunpack.c.l.b16 %v429
    %v640 = vunpack.c.h.b16 %v429
    %v641 = vunpack.c.l.b16 %v430
    %v642 = vunpack.c.h.b16 %v430
    %v643 = vunpack.c.l.b16 %v431
    %v644 = vunpack.c.h.b16 %v431
    %v645 = vunpack.c.l.b16 %v432
    %v646 = vunpack.c.h.b16 %v432
    %v647 = vunpack.c.l.b16 %v433
    %v648 = vunpack.c.h.b16 %v433
    %v649 = vunpack.c.l.b16 %v434
    %v650 = vunpack.c.h.b16 %v434
    %v651 = vunpack.c.l.b16 %v435
    %v652 = vunpack.c.h.b16 %v435
    %v653 = vunpack.c.l.b16 %v436
    %v654 = vunpack.c.h.b16 %v436
    %v655 = vunpack.c.l.b16 %v437
    %v656 = vunpack.c.h.b16 %v437
    %v657 = vunpack.c.l.b16 %v438
    %v658 = vunpack.c.h.b16 %v438
    %v659 = vunpack.c.l.b16 %v439
    %v660 = vunpack.c.h.b16 %v439
    %v661 = vunpack.c.l.b16 %v440
    %v662 = vunpack.c.h.b16 %v440
    %v663 = vunpack.c.l.b16 %v441
    %v664 = vunpack.c.h.b16 %v441
    %v665 = vunpack.c.l.b16 %v442
    %v666 = vunpack.c.h.b16 %v442
    %v667 = vunpack.c.l.b16 %v443
    %v668 = vunpack.c.h.b16 %v443
    %v669 = vunpack.c.l.b16 %v444
    %v670 = vunpack.c.h.b16 %v444
    %v671 = vunpack.c.l.b16 %v445
    %v672 = vunpack.c.h.b16 %v445
    %v673 = vunpack.c.l.b16 %v446
    %v674 = vunpack.c.h.b16 %v446
    %v675 = vunpack.c.l.b16 %v447
    %v676 = vunpack.c.h.b16 %v447
    %v677 = vunpack.c.l.b16 %v448
    %v678 = vunpack.c.h.b16 %v448
    %v679 = vunpack.c.l.b16 %v449
    %v680 = vunpack.c.h.b16 %v449
    %v681 = vunpack.c.l.b16 %v450
    %v682 = vunpack.c.h.b16 %v450
    %v683 = vpack.c.b16 %v623, %v619
    %v684 = vpack.c.b16 %v624, %v620
    %v685 = vpack.c.b16 %v625, %v621
    %v686 = vpack.c.b16 %v626, %v622
    %v687 = vpack.c.b16 %v631, %v627
    %v688 = vpack.c.b16 %v632, %v628
    %v689 = vpack.c.b16 %v633, %v629
    %v690 = vpack.c.b16 %v634, %v630
    %v691 = vpack.c.b16 %v639, %v635
    %v692 = vpack.c.b16 %v640, %v636
    %v693 = vpack.c.b16 %v641, %v637
    %v694 = vpack.c.b16 %v642, %v638
    %v695 = vpack.c.b16 %v647, %v643
    %v696 = vpack.c.b16 %v648, %v644
    %v697 = vpack.c.b16 %v649, %v645
    %v698 = vpack.c.b16 %v650, %v646
    %v699 = vpack.c.b16 %v655, %v651
    %v700 = vpack.c.b16 %v656, %v652
    %v701 = vpack.c.b16 %v657, %v653
    %v702 = vpack.c.b16 %v658, %v654
    %v703 = vpack.c.b16 %v663, %v659
    %v704 = vpack.c.b16 %v664, %v660
    %v705 = vpack.c.b16 %v665, %v661
    %v706 = vpack.c.b16 %v666, %v662
    %v707 = vpack.c.b16 %v671, %v667
    %v708 = vpack.c.b16 %v672, %v668
    %v709 = vpack.c.b16 %v673, %v669
    %v710 = vpack.c.b16 %v674, %v670
    %v711 = vpack.c.b16 %v679, %v675
    %v712 = vpack.c.b16 %v680, %v676
    %v713 = vpack.c.b16 %v681, %v677
    %v714 = vpack.c.b16 %v682, %v678
    %747 = vmatprep.subr.bf16.mxu0 %v712
    %748 = vmatpush1.bf16.msra.mxu0 %v711
    %749 = vmatprep.subr.bf16.mxu0 %v708
    %750 = vmatpush1.bf16.msra.mxu0 %v707
    %751 = vmatprep.subr.bf16.mxu0 %v704
    %752 = vmatpush1.bf16.msra.mxu0 %v703
    %753 = vmatprep.subr.bf16.mxu0 %v700
    %754 = vmatpush1.bf16.msra.mxu0 %v699
    %755 = vmatprep.subr.bf16.mxu0 %v696
    %756 = vmatpush1.bf16.msra.mxu0 %v695
    %757 = vmatprep.subr.bf16.mxu0 %v692
    %758 = vmatpush1.bf16.msra.mxu0 %v691
    %759 = vmatprep.subr.bf16.mxu0 %v688
    %760 = vmatpush1.bf16.msra.mxu0 %v687
    %761 = vmatprep.subr.bf16.mxu0 %v684
    %762 = vmatpush1.bf16.msra.mxu0 %v683
    %763 = vmatprep.subr.bf16.mxu0 0
    %764 = vmatpush2.bf16.msra.mxu0 0
    %765 = vmatprep.subr.bf16.mxu0 0
    %766 = vmatpush2.bf16.msra.mxu0 0
    %767 = vmatprep.subr.bf16.mxu0 0
    %768 = vmatpush2.bf16.msra.mxu0 0
    %769 = vmatprep.subr.bf16.mxu0 0
    %770 = vmatpush2.bf16.msra.mxu0 0
    %771 = vmatprep.subr.bf16.mxu0 0
    %772 = vmatpush2.bf16.msra.mxu0 0
    %773 = vmatprep.subr.bf16.mxu0 0
    %774 = vmatpush2.bf16.msra.mxu0 0
    %775 = vmatprep.subr.bf16.mxu0 0
    %776 = vmatpush2.bf16.msra.mxu0 0
    %777 = vmatprep.subr.bf16.mxu0 0
    %778 = vmatpush2.bf16.msra.mxu0 0
    %779 = vmatprep.mubr.bf16.mxu0 0
    %780 = vmatmul.mubr.bf16.gmra.mxu0 %v558
    %v781 = vpop.f32.mrf.mxu0
    %v782 = vadd.f32 %v570, %v781
    %v783 = vpop.f32.mrf.mxu0
    %v784 = vadd.f32 %v574, %v783
    %v785 = vpop.f32.mrf.mxu0
    %v786 = vadd.f32 %v570, %v785
    %v787 = vpop.f32.mrf.mxu0
    %v788 = vadd.f32 %v574, %v787
    %789 = vmatprep.mubr.bf16.mxu0 0
    %790 = vmatmul.mubr.bf16.gmra.mxu0 %v559
    %v791 = vpop.f32.mrf.mxu0
    %v792 = vadd.f32 %v570, %v791
    %v793 = vpop.f32.mrf.mxu0
    %v794 = vadd.f32 %v574, %v793
    %v795 = vpop.f32.mrf.mxu0
    %v796 = vadd.f32 %v570, %v795
    %v797 = vpop.f32.mrf.mxu0
    %v798 = vadd.f32 %v574, %v797
    %799 = vmatprep.mubr.bf16.mxu0 0
    %800 = vmatmul.mubr.bf16.gmra.mxu0 %v560
    %v801 = vpop.f32.mrf.mxu0
    %v802 = vadd.f32 %v570, %v801
    %v803 = vpop.f32.mrf.mxu0
    %v804 = vadd.f32 %v574, %v803
    %v805 = vpop.f32.mrf.mxu0
    %v806 = vadd.f32 %v570, %v805
    %v807 = vpop.f32.mrf.mxu0
    %v808 = vadd.f32 %v574, %v807
    %809 = vmatprep.mubr.bf16.mxu0 0
    %810 = vmatmul.mubr.bf16.gmra.mxu0 %v561
    %v811 = vpop.f32.mrf.mxu0
    %v812 = vadd.f32 %v570, %v811
    %v813 = vpop.f32.mrf.mxu0
    %v814 = vadd.f32 %v574, %v813
    %v815 = vpop.f32.mrf.mxu0
    %v816 = vadd.f32 %v570, %v815
    %v817 = vpop.f32.mrf.mxu0
    %v818 = vadd.f32 %v574, %v817
    %819 = vmatprep.mubr.bf16.mxu0 0
    %820 = vmatmul.mubr.bf16.gmra.mxu0 %v562
    %v821 = vpop.f32.mrf.mxu0
    %v822 = vadd.f32 %v570, %v821
    %v823 = vpop.f32.mrf.mxu0
    %v824 = vadd.f32 %v574, %v823
    %v825 = vpop.f32.mrf.mxu0
    %v826 = vadd.f32 %v570, %v825
    %v827 = vpop.f32.mrf.mxu0
    %v828 = vadd.f32 %v574, %v827
    %829 = vmatprep.mubr.bf16.mxu0 0
    %830 = vmatmul.mubr.bf16.gmra.mxu0 %v563
    %v831 = vpop.f32.mrf.mxu0
    %v832 = vadd.f32 %v570, %v831
    %v833 = vpop.f32.mrf.mxu0
    %v834 = vadd.f32 %v574, %v833
    %v835 = vpop.f32.mrf.mxu0
    %v836 = vadd.f32 %v570, %v835
    %v837 = vpop.f32.mrf.mxu0
    %v838 = vadd.f32 %v574, %v837
    %839 = vmatprep.mubr.bf16.mxu0 0
    %840 = vmatmul.mubr.bf16.gmra.mxu0 %v564
    %v841 = vpop.f32.mrf.mxu0
    %v842 = vadd.f32 %v570, %v841
    %v843 = vpop.f32.mrf.mxu0
    %v844 = vadd.f32 %v574, %v843
    %v845 = vpop.f32.mrf.mxu0
    %v846 = vadd.f32 %v570, %v845
    %v847 = vpop.f32.mrf.mxu0
    %v848 = vadd.f32 %v574, %v847
    %849 = vmatprep.mubr.bf16.mxu0 0
    %850 = vmatmul.mubr.bf16.gmra.mxu0 %v565
    %v851 = vpop.f32.mrf.mxu0
    %v852 = vadd.f32 %v570, %v851
    %v853 = vpop.f32.mrf.mxu0
    %v854 = vadd.f32 %v574, %v853
    %v855 = vpop.f32.mrf.mxu0
    %v856 = vadd.f32 %v570, %v855
    %v857 = vpop.f32.mrf.mxu0
    %v858 = vadd.f32 %v574, %v857
    %859 = vdwg.mxu0
    %860 = vmatprep.subr.bf16.mxu0 %v714
    %861 = vmatpush1.bf16.msra.mxu0 %v713
    %862 = vmatprep.subr.bf16.mxu0 %v710
    %863 = vmatpush1.bf16.msra.mxu0 %v709
    %864 = vmatprep.subr.bf16.mxu0 %v706
    %865 = vmatpush1.bf16.msra.mxu0 %v705
    %866 = vmatprep.subr.bf16.mxu0 %v702
    %867 = vmatpush1.bf16.msra.mxu0 %v701
    %868 = vmatprep.subr.bf16.mxu0 %v698
    %869 = vmatpush1.bf16.msra.mxu0 %v697
    %870 = vmatprep.subr.bf16.mxu0 %v694
    %871 = vmatpush1.bf16.msra.mxu0 %v693
    %872 = vmatprep.subr.bf16.mxu0 %v690
    %873 = vmatpush1.bf16.msra.mxu0 %v689
    %874 = vmatprep.subr.bf16.mxu0 %v686
    %875 = vmatpush1.bf16.msra.mxu0 %v685
    %876 = vmatprep.subr.bf16.mxu0 0
    %877 = vmatpush2.bf16.msra.mxu0 0
    %878 = vmatprep.subr.bf16.mxu0 0
    %879 = vmatpush2.bf16.msra.mxu0 0
    %880 = vmatprep.subr.bf16.mxu0 0
    %881 = vmatpush2.bf16.msra.mxu0 0
    %882 = vmatprep.subr.bf16.mxu0 0
    %883 = vmatpush2.bf16.msra.mxu0 0
    %884 = vmatprep.subr.bf16.mxu0 0
    %885 = vmatpush2.bf16.msra.mxu0 0
    %886 = vmatprep.subr.bf16.mxu0 0
    %887 = vmatpush2.bf16.msra.mxu0 0
    %888 = vmatprep.subr.bf16.mxu0 0
    %889 = vmatpush2.bf16.msra.mxu0 0
    %890 = vmatprep.subr.bf16.mxu0 0
    %891 = vmatpush2.bf16.msra.mxu0 0
    %892 = vmatprep.mubr.bf16.mxu0 0
    %893 = vmatmul.mubr.bf16.gmra.mxu0 %v558
    %v894 = vpop.f32.mrf.mxu0
    %v895 = vadd.f32 %v578, %v894
    %v896 = vpop.f32.mrf.mxu0
    %v897 = vadd.f32 %v582, %v896
    %v898 = vpop.f32.mrf.mxu0
    %v899 = vadd.f32 %v578, %v898
    %v900 = vpop.f32.mrf.mxu0
    %v901 = vadd.f32 %v582, %v900
    %902 = vmatprep.mubr.bf16.mxu0 0
    %903 = vmatmul.mubr.bf16.gmra.mxu0 %v559
    %v904 = vpop.f32.mrf.mxu0
    %v905 = vadd.f32 %v578, %v904
    %v906 = vpop.f32.mrf.mxu0
    %v907 = vadd.f32 %v582, %v906
    %v908 = vpop.f32.mrf.mxu0
    %v909 = vadd.f32 %v578, %v908
    %v910 = vpop.f32.mrf.mxu0
    %v911 = vadd.f32 %v582, %v910
    %912 = vmatprep.mubr.bf16.mxu0 0
    %913 = vmatmul.mubr.bf16.gmra.mxu0 %v560
    %v914 = vpop.f32.mrf.mxu0
    %v915 = vadd.f32 %v578, %v914
    %v916 = vpop.f32.mrf.mxu0
    %v917 = vadd.f32 %v582, %v916
    %v918 = vpop.f32.mrf.mxu0
    %v919 = vadd.f32 %v578, %v918
    %v920 = vpop.f32.mrf.mxu0
    %v921 = vadd.f32 %v582, %v920
    %922 = vmatprep.mubr.bf16.mxu0 0
    %923 = vmatmul.mubr.bf16.gmra.mxu0 %v561
    %v924 = vpop.f32.mrf.mxu0
    %v925 = vadd.f32 %v578, %v924
    %v926 = vpop.f32.mrf.mxu0
    %v927 = vadd.f32 %v582, %v926
    %v928 = vpop.f32.mrf.mxu0
    %v929 = vadd.f32 %v578, %v928
    %v930 = vpop.f32.mrf.mxu0
    %v931 = vadd.f32 %v582, %v930
    %932 = vmatprep.mubr.bf16.mxu0 0
    %933 = vmatmul.mubr.bf16.gmra.mxu0 %v562
    %v934 = vpop.f32.mrf.mxu0
    %v935 = vadd.f32 %v578, %v934
    %v936 = vpop.f32.mrf.mxu0
    %v937 = vadd.f32 %v582, %v936
    %v938 = vpop.f32.mrf.mxu0
    %v939 = vadd.f32 %v578, %v938
    %v940 = vpop.f32.mrf.mxu0
    %v941 = vadd.f32 %v582, %v940
    %942 = vmatprep.mubr.bf16.mxu0 0
    %943 = vmatmul.mubr.bf16.gmra.mxu0 %v563
    %v944 = vpop.f32.mrf.mxu0
    %v945 = vadd.f32 %v578, %v944
    %v946 = vpop.f32.mrf.mxu0
    %v947 = vadd.f32 %v582, %v946
    %v948 = vpop.f32.mrf.mxu0
    %v949 = vadd.f32 %v578, %v948
    %v950 = vpop.f32.mrf.mxu0
    %v951 = vadd.f32 %v582, %v950
    %952 = vmatprep.mubr.bf16.mxu0 0
    %953 = vmatmul.mubr.bf16.gmra.mxu0 %v564
    %v954 = vpop.f32.mrf.mxu0
    %v955 = vadd.f32 %v578, %v954
    %v956 = vpop.f32.mrf.mxu0
    %v957 = vadd.f32 %v582, %v956
    %v958 = vpop.f32.mrf.mxu0
    %v959 = vadd.f32 %v578, %v958
    %v960 = vpop.f32.mrf.mxu0
    %v961 = vadd.f32 %v582, %v960
    %962 = vmatprep.mubr.bf16.mxu0 0
    %963 = vmatmul.mubr.bf16.gmra.mxu0 %v565
    %v964 = vpop.f32.mrf.mxu0
    %v965 = vadd.f32 %v578, %v964
    %v966 = vpop.f32.mrf.mxu0
    %v967 = vadd.f32 %v582, %v966
    %v968 = vpop.f32.mrf.mxu0
    %v969 = vadd.f32 %v578, %v968
    %v970 = vpop.f32.mrf.mxu0
    %v971 = vadd.f32 %v582, %v970
    %972 = vdwg.mxu0
    %v973 = vmax.f32 %v782, 0.0
    %v974 = vmax.f32 %v784, 0.0
    %v975 = vmax.f32 %v895, 0.0
    %v976 = vmax.f32 %v897, 0.0
    %v977 = vmax.f32 %v786, 0.0
    %v978 = vmax.f32 %v788, 0.0
    %v979 = vmax.f32 %v899, 0.0
    %v980 = vmax.f32 %v901, 0.0
    %v981 = vmax.f32 %v792, 0.0
    %v982 = vmax.f32 %v794, 0.0
    %v983 = vmax.f32 %v905, 0.0
    %v984 = vmax.f32 %v907, 0.0
    %v985 = vmax.f32 %v796, 0.0
    %v986 = vmax.f32 %v798, 0.0
    %v987 = vmax.f32 %v909, 0.0
    %v988 = vmax.f32 %v911, 0.0
    %v989 = vmax.f32 %v802, 0.0
    %v990 = vmax.f32 %v804, 0.0
    %v991 = vmax.f32 %v915, 0.0
    %v992 = vmax.f32 %v917, 0.0
    %v993 = vmax.f32 %v806, 0.0
    %v994 = vmax.f32 %v808, 0.0
    %v995 = vmax.f32 %v919, 0.0
    %v996 = vmax.f32 %v921, 0.0
    %v997 = vmax.f32 %v812, 0.0
    %v998 = vmax.f32 %v814, 0.0
    %v999 = vmax.f32 %v925, 0.0
    %v1000 = vmax.f32 %v927, 0.0
    %v1001 = vmax.f32 %v816, 0.0
    %v1002 = vmax.f32 %v818, 0.0
    %v1003 = vmax.f32 %v929, 0.0
    %v1004 = vmax.f32 %v931, 0.0
    %v1005 = vmax.f32 %v822, 0.0
    %v1006 = vmax.f32 %v824, 0.0
    %v1007 = vmax.f32 %v935, 0.0
    %v1008 = vmax.f32 %v937, 0.0
    %v1009 = vmax.f32 %v826, 0.0
    %v1010 = vmax.f32 %v828, 0.0
    %v1011 = vmax.f32 %v939, 0.0
    %v1012 = vmax.f32 %v941, 0.0
    %v1013 = vmax.f32 %v832, 0.0
    %v1014 = vmax.f32 %v834, 0.0
    %v1015 = vmax.f32 %v945, 0.0
    %v1016 = vmax.f32 %v947, 0.0
    %v1017 = vmax.f32 %v836, 0.0
    %v1018 = vmax.f32 %v838, 0.0
    %v1019 = vmax.f32 %v949, 0.0
    %v1020 = vmax.f32 %v951, 0.0
    %v1021 = vmax.f32 %v842, 0.0
    %v1022 = vmax.f32 %v844, 0.0
    %v1023 = vmax.f32 %v955, 0.0
    %v1024 = vmax.f32 %v957, 0.0
    %v1025 = vmax.f32 %v846, 0.0
    %v1026 = vmax.f32 %v848, 0.0
    %v1027 = vmax.f32 %v959, 0.0
    %v1028 = vmax.f32 %v961, 0.0
    %v1029 = vmax.f32 %v852, 0.0
    %v1030 = vmax.f32 %v854, 0.0
    %v1031 = vmax.f32 %v965, 0.0
    %v1032 = vmax.f32 %v967, 0.0
    %v1033 = vmax.f32 %v856, 0.0
    %v1034 = vmax.f32 %v858, 0.0
    %v1035 = vmax.f32 %v969, 0.0
    %v1036 = vmax.f32 %v971, 0.0
    %v1037 = vld [vmem:[%s5] sm:$0xff]
    %v1038 = vld [vmem:[%s5 + $0x8] sm:$0xff]
    %v1039 = vld [vmem:[%s5 + $0x10] sm:$0xff]
    %v1040 = vld [vmem:[%s5 + $0x18] sm:$0xff]
    %v1041 = vld [vmem:[%s5 + $0x20] sm:$0xff]
    %v1042 = vld [vmem:[%s5 + $0x28] sm:$0xff]
    %v1043 = vld [vmem:[%s5 + $0x30] sm:$0xff]
    %v1044 = vld [vmem:[%s5 + $0x38] sm:$0xff]
    %v1045 = vld [vmem:[%s5 + $0x40] sm:$0xff]
    %v1046 = vld [vmem:[%s5 + $0x48] sm:$0xff]
    %v1047 = vld [vmem:[%s5 + $0x50] sm:$0xff]
    %v1048 = vld [vmem:[%s5 + $0x58] sm:$0xff]
    %v1049 = vld [vmem:[%s5 + $0x60] sm:$0xff]
    %v1050 = vld [vmem:[%s5 + $0x68] sm:$0xff]
    %v1051 = vld [vmem:[%s5 + $0x70] sm:$0xff]
    %v1052 = vld [vmem:[%s5 + $0x78] sm:$0xff]
    %v1053 = vld [vmem:[%s5 + $0x80] sm:$0xff]
    %v1054 = vld [vmem:[%s5 + $0x88] sm:$0xff]
    %v1055 = vld [vmem:[%s5 + $0x90] sm:$0xff]
    %v1056 = vld [vmem:[%s5 + $0x98] sm:$0xff]
    %v1057 = vld [vmem:[%s5 + $0xa0] sm:$0xff]
    %v1058 = vld [vmem:[%s5 + $0xa8] sm:$0xff]
    %v1059 = vld [vmem:[%s5 + $0xb0] sm:$0xff]
    %v1060 = vld [vmem:[%s5 + $0xb8] sm:$0xff]
    %v1061 = vld [vmem:[%s5 + $0xc0] sm:$0xff]
    %v1062 = vld [vmem:[%s5 + $0xc8] sm:$0xff]
    %v1063 = vld [vmem:[%s5 + $0xd0] sm:$0xff]
    %v1064 = vld [vmem:[%s5 + $0xd8] sm:$0xff]
    %v1065 = vld [vmem:[%s5 + $0xe0] sm:$0xff]
    %v1066 = vld [vmem:[%s5 + $0xe8] sm:$0xff]
    %v1067 = vld [vmem:[%s5 + $0xf0] sm:$0xff]
    %v1068 = vld [vmem:[%s5 + $0xf8] sm:$0xff]
    %v1069 = vld [vmem:[%s5 + $0x100] sm:$0xff]
    %v1070 = vld [vmem:[%s5 + $0x108] sm:$0xff]
    %v1071 = vld [vmem:[%s5 + $0x110] sm:$0xff]
    %v1072 = vld [vmem:[%s5 + $0x118] sm:$0xff]
    %v1073 = vld [vmem:[%s5 + $0x120] sm:$0xff]
    %v1074 = vld [vmem:[%s5 + $0x128] sm:$0xff]
    %v1075 = vld [vmem:[%s5 + $0x130] sm:$0xff]
    %v1076 = vld [vmem:[%s5 + $0x138] sm:$0xff]
    %v1077 = vld [vmem:[%s5 + $0x140] sm:$0xff]
    %v1078 = vld [vmem:[%s5 + $0x148] sm:$0xff]
    %v1079 = vld [vmem:[%s5 + $0x150] sm:$0xff]
    %v1080 = vld [vmem:[%s5 + $0x158] sm:$0xff]
    %v1081 = vld [vmem:[%s5 + $0x160] sm:$0xff]
    %v1082 = vld [vmem:[%s5 + $0x168] sm:$0xff]
    %v1083 = vld [vmem:[%s5 + $0x170] sm:$0xff]
    %v1084 = vld [vmem:[%s5 + $0x178] sm:$0xff]
    %v1085 = vld [vmem:[%s5 + $0x180] sm:$0xff]
    %v1086 = vld [vmem:[%s5 + $0x188] sm:$0xff]
    %v1087 = vld [vmem:[%s5 + $0x190] sm:$0xff]
    %v1088 = vld [vmem:[%s5 + $0x198] sm:$0xff]
    %v1089 = vld [vmem:[%s5 + $0x1a0] sm:$0xff]
    %v1090 = vld [vmem:[%s5 + $0x1a8] sm:$0xff]
    %v1091 = vld [vmem:[%s5 + $0x1b0] sm:$0xff]
    %v1092 = vld [vmem:[%s5 + $0x1b8] sm:$0xff]
    %v1093 = vld [vmem:[%s5 + $0x1c0] sm:$0xff]
    %v1094 = vld [vmem:[%s5 + $0x1c8] sm:$0xff]
    %v1095 = vld [vmem:[%s5 + $0x1d0] sm:$0xff]
    %v1096 = vld [vmem:[%s5 + $0x1d8] sm:$0xff]
    %v1097 = vld [vmem:[%s5 + $0x1e0] sm:$0xff]
    %v1098 = vld [vmem:[%s5 + $0x1e8] sm:$0xff]
    %v1099 = vld [vmem:[%s5 + $0x1f0] sm:$0xff]
    %v1100 = vld [vmem:[%s5 + $0x1f8] sm:$0xff]
    %s1101 = scalar_lea.vmem [#allocation7], 64
    %v1102 = vld [vmem:[%s1101] ss:$8 sm:$0x3]
    %v1103 = vpack.c.bf16 %v977, %v973
    %v1104 = vpack.c.bf16 %v978, %v974
    %v1105 = vpack.c.bf16 %v979, %v975
    %v1106 = vpack.c.bf16 %v980, %v976
    %v1107 = vpack.c.bf16 %v985, %v981
    %v1108 = vpack.c.bf16 %v986, %v982
    %v1109 = vpack.c.bf16 %v987, %v983
    %v1110 = vpack.c.bf16 %v988, %v984
    %v1111 = vpack.c.bf16 %v993, %v989
    %v1112 = vpack.c.bf16 %v994, %v990
    %v1113 = vpack.c.bf16 %v995, %v991
    %v1114 = vpack.c.bf16 %v996, %v992
    %v1115 = vpack.c.bf16 %v1001, %v997
    %v1116 = vpack.c.bf16 %v1002, %v998
    %v1117 = vpack.c.bf16 %v1003, %v999
    %v1118 = vpack.c.bf16 %v1004, %v1000
    %v1119 = vpack.c.bf16 %v1009, %v1005
    %v1120 = vpack.c.bf16 %v1010, %v1006
    %v1121 = vpack.c.bf16 %v1011, %v1007
    %v1122 = vpack.c.bf16 %v1012, %v1008
    %v1123 = vpack.c.bf16 %v1017, %v1013
    %v1124 = vpack.c.bf16 %v1018, %v1014
    %v1125 = vpack.c.bf16 %v1019, %v1015
    %v1126 = vpack.c.bf16 %v1020, %v1016
    %v1127 = vpack.c.bf16 %v1025, %v1021
    %v1128 = vpack.c.bf16 %v1026, %v1022
    %v1129 = vpack.c.bf16 %v1027, %v1023
    %v1130 = vpack.c.bf16 %v1028, %v1024
    %v1131 = vpack.c.bf16 %v1033, %v1029
    %v1132 = vpack.c.bf16 %v1034, %v1030
    %v1133 = vpack.c.bf16 %v1035, %v1031
    %v1134 = vpack.c.bf16 %v1036, %v1032
    %v1199 = vunpack.c.l.b16 %v1037
    %v1200 = vunpack.c.h.b16 %v1037
    %v1201 = vunpack.c.l.b16 %v1038
    %v1202 = vunpack.c.h.b16 %v1038
    %v1203 = vunpack.c.l.b16 %v1039
    %v1204 = vunpack.c.h.b16 %v1039
    %v1205 = vunpack.c.l.b16 %v1040
    %v1206 = vunpack.c.h.b16 %v1040
    %v1207 = vunpack.c.l.b16 %v1041
    %v1208 = vunpack.c.h.b16 %v1041
    %v1209 = vunpack.c.l.b16 %v1042
    %v1210 = vunpack.c.h.b16 %v1042
    %v1211 = vunpack.c.l.b16 %v1043
    %v1212 = vunpack.c.h.b16 %v1043
    %v1213 = vunpack.c.l.b16 %v1044
    %v1214 = vunpack.c.h.b16 %v1044
    %v1215 = vunpack.c.l.b16 %v1045
    %v1216 = vunpack.c.h.b16 %v1045
    %v1217 = vunpack.c.l.b16 %v1046
    %v1218 = vunpack.c.h.b16 %v1046
    %v1219 = vunpack.c.l.b16 %v1047
    %v1220 = vunpack.c.h.b16 %v1047
    %v1221 = vunpack.c.l.b16 %v1048
    %v1222 = vunpack.c.h.b16 %v1048
    %v1223 = vunpack.c.l.b16 %v1049
    %v1224 = vunpack.c.h.b16 %v1049
    %v1225 = vunpack.c.l.b16 %v1050
    %v1226 = vunpack.c.h.b16 %v1050
    %v1227 = vunpack.c.l.b16 %v1051
    %v1228 = vunpack.c.h.b16 %v1051
    %v1229 = vunpack.c.l.b16 %v1052
    %v1230 = vunpack.c.h.b16 %v1052
    %v1231 = vunpack.c.l.b16 %v1053
    %v1232 = vunpack.c.h.b16 %v1053
    %v1233 = vunpack.c.l.b16 %v1054
    %v1234 = vunpack.c.h.b16 %v1054
    %v1235 = vunpack.c.l.b16 %v1055
    %v1236 = vunpack.c.h.b16 %v1055
    %v1237 = vunpack.c.l.b16 %v1056
    %v1238 = vunpack.c.h.b16 %v1056
    %v1239 = vunpack.c.l.b16 %v1057
    %v1240 = vunpack.c.h.b16 %v1057
    %v1241 = vunpack.c.l.b16 %v1058
    %v1242 = vunpack.c.h.b16 %v1058
    %v1243 = vunpack.c.l.b16 %v1059
    %v1244 = vunpack.c.h.b16 %v1059
    %v1245 = vunpack.c.l.b16 %v1060
    %v1246 = vunpack.c.h.b16 %v1060
    %v1247 = vunpack.c.l.b16 %v1061
    %v1248 = vunpack.c.h.b16 %v1061
    %v1249 = vunpack.c.l.b16 %v1062
    %v1250 = vunpack.c.h.b16 %v1062
    %v1251 = vunpack.c.l.b16 %v1063
    %v1252 = vunpack.c.h.b16 %v1063
    %v1253 = vunpack.c.l.b16 %v1064
    %v1254 = vunpack.c.h.b16 %v1064
    %v1255 = vunpack.c.l.b16 %v1065
    %v1256 = vunpack.c.h.b16 %v1065
    %v1257 = vunpack.c.l.b16 %v1066
    %v1258 = vunpack.c.h.b16 %v1066
    %v1259 = vunpack.c.l.b16 %v1067
    %v1260 = vunpack.c.h.b16 %v1067
    %v1261 = vunpack.c.l.b16 %v1068
    %v1262 = vunpack.c.h.b16 %v1068
    %v1263 = vunpack.c.l.b16 %v1069
    %v1264 = vunpack.c.h.b16 %v1069
    %v1265 = vunpack.c.l.b16 %v1070
    %v1266 = vunpack.c.h.b16 %v1070
    %v1267 = vunpack.c.l.b16 %v1071
    %v1268 = vunpack.c.h.b16 %v1071
    %v1269 = vunpack.c.l.b16 %v1072
    %v1270 = vunpack.c.h.b16 %v1072
    %v1271 = vunpack.c.l.b16 %v1073
    %v1272 = vunpack.c.h.b16 %v1073
    %v1273 = vunpack.c.l.b16 %v1074
    %v1274 = vunpack.c.h.b16 %v1074
    %v1275 = vunpack.c.l.b16 %v1075
    %v1276 = vunpack.c.h.b16 %v1075
    %v1277 = vunpack.c.l.b16 %v1076
    %v1278 = vunpack.c.h.b16 %v1076
    %v1279 = vunpack.c.l.b16 %v1077
    %v1280 = vunpack.c.h.b16 %v1077
    %v1281 = vunpack.c.l.b16 %v1078
    %v1282 = vunpack.c.h.b16 %v1078
    %v1283 = vunpack.c.l.b16 %v1079
    %v1284 = vunpack.c.h.b16 %v1079
    %v1285 = vunpack.c.l.b16 %v1080
    %v1286 = vunpack.c.h.b16 %v1080
    %v1287 = vunpack.c.l.b16 %v1081
    %v1288 = vunpack.c.h.b16 %v1081
    %v1289 = vunpack.c.l.b16 %v1082
    %v1290 = vunpack.c.h.b16 %v1082
    %v1291 = vunpack.c.l.b16 %v1083
    %v1292 = vunpack.c.h.b16 %v1083
    %v1293 = vunpack.c.l.b16 %v1084
    %v1294 = vunpack.c.h.b16 %v1084
    %v1295 = vunpack.c.l.b16 %v1085
    %v1296 = vunpack.c.h.b16 %v1085
    %v1297 = vunpack.c.l.b16 %v1086
    %v1298 = vunpack.c.h.b16 %v1086
    %v1299 = vunpack.c.l.b16 %v1087
    %v1300 = vunpack.c.h.b16 %v1087
    %v1301 = vunpack.c.l.b16 %v1088
    %v1302 = vunpack.c.h.b16 %v1088
    %v1303 = vunpack.c.l.b16 %v1089
    %v1304 = vunpack.c.h.b16 %v1089
    %v1305 = vunpack.c.l.b16 %v1090
    %v1306 = vunpack.c.h.b16 %v1090
    %v1307 = vunpack.c.l.b16 %v1091
    %v1308 = vunpack.c.h.b16 %v1091
    %v1309 = vunpack.c.l.b16 %v1092
    %v1310 = vunpack.c.h.b16 %v1092
    %v1311 = vunpack.c.l.b16 %v1093
    %v1312 = vunpack.c.h.b16 %v1093
    %v1313 = vunpack.c.l.b16 %v1094
    %v1314 = vunpack.c.h.b16 %v1094
    %v1315 = vunpack.c.l.b16 %v1095
    %v1316 = vunpack.c.h.b16 %v1095
    %v1317 = vunpack.c.l.b16 %v1096
    %v1318 = vunpack.c.h.b16 %v1096
    %v1319 = vunpack.c.l.b16 %v1097
    %v1320 = vunpack.c.h.b16 %v1097
    %v1321 = vunpack.c.l.b16 %v1098
    %v1322 = vunpack.c.h.b16 %v1098
    %v1323 = vunpack.c.l.b16 %v1099
    %v1324 = vunpack.c.h.b16 %v1099
    %v1325 = vunpack.c.l.b16 %v1100
    %v1326 = vunpack.c.h.b16 %v1100
    %v1327 = vpack.c.b16 %v1201, %v1199
    %v1328 = vpack.c.b16 %v1202, %v1200
    %v1329 = vpack.c.b16 %v1205, %v1203
    %v1330 = vpack.c.b16 %v1206, %v1204
    %v1331 = vpack.c.b16 %v1209, %v1207
    %v1332 = vpack.c.b16 %v1210, %v1208
    %v1333 = vpack.c.b16 %v1213, %v1211
    %v1334 = vpack.c.b16 %v1214, %v1212
    %v1335 = vpack.c.b16 %v1217, %v1215
    %v1336 = vpack.c.b16 %v1218, %v1216
    %v1337 = vpack.c.b16 %v1221, %v1219
    %v1338 = vpack.c.b16 %v1222, %v1220
    %v1339 = vpack.c.b16 %v1225, %v1223
    %v1340 = vpack.c.b16 %v1226, %v1224
    %v1341 = vpack.c.b16 %v1229, %v1227
    %v1342 = vpack.c.b16 %v1230, %v1228
    %v1343 = vpack.c.b16 %v1233, %v1231
    %v1344 = vpack.c.b16 %v1234, %v1232
    %v1345 = vpack.c.b16 %v1237, %v1235
    %v1346 = vpack.c.b16 %v1238, %v1236
    %v1347 = vpack.c.b16 %v1241, %v1239
    %v1348 = vpack.c.b16 %v1242, %v1240
    %v1349 = vpack.c.b16 %v1245, %v1243
    %v1350 = vpack.c.b16 %v1246, %v1244
    %v1351 = vpack.c.b16 %v1249, %v1247
    %v1352 = vpack.c.b16 %v1250, %v1248
    %v1353 = vpack.c.b16 %v1253, %v1251
    %v1354 = vpack.c.b16 %v1254, %v1252
    %v1355 = vpack.c.b16 %v1257, %v1255
    %v1356 = vpack.c.b16 %v1258, %v1256
    %v1357 = vpack.c.b16 %v1261, %v1259
    %v1358 = vpack.c.b16 %v1262, %v1260
    %v1359 = vpack.c.b16 %v1265, %v1263
    %v1360 = vpack.c.b16 %v1266, %v1264
    %v1361 = vpack.c.b16 %v1269, %v1267
    %v1362 = vpack.c.b16 %v1270, %v1268
    %v1363 = vpack.c.b16 %v1273, %v1271
    %v1364 = vpack.c.b16 %v1274, %v1272
    %v1365 = vpack.c.b16 %v1277, %v1275
    %v1366 = vpack.c.b16 %v1278, %v1276
    %v1367 = vpack.c.b16 %v1281, %v1279
    %v1368 = vpack.c.b16 %v1282, %v1280
    %v1369 = vpack.c.b16 %v1285, %v1283
    %v1370 = vpack.c.b16 %v1286, %v1284
    %v1371 = vpack.c.b16 %v1289, %v1287
    %v1372 = vpack.c.b16 %v1290, %v1288
    %v1373 = vpack.c.b16 %v1293, %v1291
    %v1374 = vpack.c.b16 %v1294, %v1292
    %v1375 = vpack.c.b16 %v1297, %v1295
    %v1376 = vpack.c.b16 %v1298, %v1296
    %v1377 = vpack.c.b16 %v1301, %v1299
    %v1378 = vpack.c.b16 %v1302, %v1300
    %v1379 = vpack.c.b16 %v1305, %v1303
    %v1380 = vpack.c.b16 %v1306, %v1304
    %v1381 = vpack.c.b16 %v1309, %v1307
    %v1382 = vpack.c.b16 %v1310, %v1308
    %v1383 = vpack.c.b16 %v1313, %v1311
    %v1384 = vpack.c.b16 %v1314, %v1312
    %v1385 = vpack.c.b16 %v1317, %v1315
    %v1386 = vpack.c.b16 %v1318, %v1316
    %v1387 = vpack.c.b16 %v1321, %v1319
    %v1388 = vpack.c.b16 %v1322, %v1320
    %v1389 = vpack.c.b16 %v1325, %v1323
    %v1390 = vpack.c.b16 %v1326, %v1324
    %1455 = vmatprep.subr.bf16.mxu0 %v1342
    %1456 = vmatpush1.bf16.msra.mxu0 %v1341
    %1457 = vmatprep.subr.bf16.mxu0 %v1340
    %1458 = vmatpush1.bf16.msra.mxu0 %v1339
    %1459 = vmatprep.subr.bf16.mxu0 %v1338
    %1460 = vmatpush1.bf16.msra.mxu0 %v1337
    %1461 = vmatprep.subr.bf16.mxu0 %v1336
    %1462 = vmatpush1.bf16.msra.mxu0 %v1335
    %1463 = vmatprep.subr.bf16.mxu0 %v1334
    %1464 = vmatpush1.bf16.msra.mxu0 %v1333
    %1465 = vmatprep.subr.bf16.mxu0 %v1332
    %1466 = vmatpush1.bf16.msra.mxu0 %v1331
    %1467 = vmatprep.subr.bf16.mxu0 %v1330
    %1468 = vmatpush1.bf16.msra.mxu0 %v1329
    %1469 = vmatprep.subr.bf16.mxu0 %v1328
    %1470 = vmatpush1.bf16.msra.mxu0 %v1327
    %1471 = vmatprep.subr.bf16.mxu0 %v1358
    %1472 = vmatpush2.bf16.msra.mxu0 %v1357
    %1473 = vmatprep.subr.bf16.mxu0 %v1356
    %1474 = vmatpush2.bf16.msra.mxu0 %v1355
    %1475 = vmatprep.subr.bf16.mxu0 %v1354
    %1476 = vmatpush2.bf16.msra.mxu0 %v1353
    %1477 = vmatprep.subr.bf16.mxu0 %v1352
    %1478 = vmatpush2.bf16.msra.mxu0 %v1351
    %1479 = vmatprep.subr.bf16.mxu0 %v1350
    %1480 = vmatpush2.bf16.msra.mxu0 %v1349
    %1481 = vmatprep.subr.bf16.mxu0 %v1348
    %1482 = vmatpush2.bf16.msra.mxu0 %v1347
    %1483 = vmatprep.subr.bf16.mxu0 %v1346
    %1484 = vmatpush2.bf16.msra.mxu0 %v1345
    %1485 = vmatprep.subr.bf16.mxu0 %v1344
    %1486 = vmatpush2.bf16.msra.mxu0 %v1343
    %1487 = vmatprep.mubr.bf16.mxu0 %v1104
    %1488 = vmatmul.mubr.bf16.gmra.mxu0 %v1103
    %v1489 = vpop.f32.mrf.mxu0
    %v1490 = vadd.f32 0.0, %v1489
    %v1491 = vpop.f32.mrf.mxu0
    %v1492 = vadd.f32 0.0, %v1491
    %v1493 = vpop.f32.mrf.mxu0
    %v1494 = vadd.f32 0.0, %v1493
    %v1495 = vpop.f32.mrf.mxu0
    %v1496 = vadd.f32 0.0, %v1495
    %1497 = vmatprep.mubr.bf16.mxu0 %v1108
    %1498 = vmatmul.mubr.bf16.gmra.mxu0 %v1107
    %v1499 = vpop.f32.mrf.mxu0
    %v1500 = vadd.f32 0.0, %v1499
    %v1501 = vpop.f32.mrf.mxu0
    %v1502 = vadd.f32 0.0, %v1501
    %v1503 = vpop.f32.mrf.mxu0
    %v1504 = vadd.f32 0.0, %v1503
    %v1505 = vpop.f32.mrf.mxu0
    %v1506 = vadd.f32 0.0, %v1505
    %1507 = vmatprep.mubr.bf16.mxu0 %v1112
    %1508 = vmatmul.mubr.bf16.gmra.mxu0 %v1111
    %v1509 = vpop.f32.mrf.mxu0
    %v1510 = vadd.f32 0.0, %v1509
    %v1511 = vpop.f32.mrf.mxu0
    %v1512 = vadd.f32 0.0, %v1511
    %v1513 = vpop.f32.mrf.mxu0
    %v1514 = vadd.f32 0.0, %v1513
    %v1515 = vpop.f32.mrf.mxu0
    %v1516 = vadd.f32 0.0, %v1515
    %1517 = vmatprep.mubr.bf16.mxu0 %v1116
    %1518 = vmatmul.mubr.bf16.gmra.mxu0 %v1115
    %v1519 = vpop.f32.mrf.mxu0
    %v1520 = vadd.f32 0.0, %v1519
    %v1521 = vpop.f32.mrf.mxu0
    %v1522 = vadd.f32 0.0, %v1521
    %v1523 = vpop.f32.mrf.mxu0
    %v1524 = vadd.f32 0.0, %v1523
    %v1525 = vpop.f32.mrf.mxu0
    %v1526 = vadd.f32 0.0, %v1525
    %1527 = vmatprep.mubr.bf16.mxu0 %v1120
    %1528 = vmatmul.mubr.bf16.gmra.mxu0 %v1119
    %v1529 = vpop.f32.mrf.mxu0
    %v1530 = vadd.f32 0.0, %v1529
    %v1531 = vpop.f32.mrf.mxu0
    %v1532 = vadd.f32 0.0, %v1531
    %v1533 = vpop.f32.mrf.mxu0
    %v1534 = vadd.f32 0.0, %v1533
    %v1535 = vpop.f32.mrf.mxu0
    %v1536 = vadd.f32 0.0, %v1535
    %1537 = vmatprep.mubr.bf16.mxu0 %v1124
    %1538 = vmatmul.mubr.bf16.gmra.mxu0 %v1123
    %v1539 = vpop.f32.mrf.mxu0
    %v1540 = vadd.f32 0.0, %v1539
    %v1541 = vpop.f32.mrf.mxu0
    %v1542 = vadd.f32 0.0, %v1541
    %v1543 = vpop.f32.mrf.mxu0
    %v1544 = vadd.f32 0.0, %v1543
    %v1545 = vpop.f32.mrf.mxu0
    %v1546 = vadd.f32 0.0, %v1545
    %1547 = vmatprep.mubr.bf16.mxu0 %v1128
    %1548 = vmatmul.mubr.bf16.gmra.mxu0 %v1127
    %v1549 = vpop.f32.mrf.mxu0
    %v1550 = vadd.f32 0.0, %v1549
    %v1551 = vpop.f32.mrf.mxu0
    %v1552 = vadd.f32 0.0, %v1551
    %v1553 = vpop.f32.mrf.mxu0
    %v1554 = vadd.f32 0.0, %v1553
    %v1555 = vpop.f32.mrf.mxu0
    %v1556 = vadd.f32 0.0, %v1555
    %1557 = vmatprep.mubr.bf16.mxu0 %v1132
    %1558 = vmatmul.mubr.bf16.gmra.mxu0 %v1131
    %v1559 = vpop.f32.mrf.mxu0
    %v1560 = vadd.f32 0.0, %v1559
    %v1561 = vpop.f32.mrf.mxu0
    %v1562 = vadd.f32 0.0, %v1561
    %v1563 = vpop.f32.mrf.mxu0
    %v1564 = vadd.f32 0.0, %v1563
    %v1565 = vpop.f32.mrf.mxu0
    %v1566 = vadd.f32 0.0, %v1565
    %1567 = vdwg.mxu0
    %1568 = vmatprep.subr.bf16.mxu0 %v1374
    %1569 = vmatpush1.bf16.msra.mxu0 %v1373
    %1570 = vmatprep.subr.bf16.mxu0 %v1372
    %1571 = vmatpush1.bf16.msra.mxu0 %v1371
    %1572 = vmatprep.subr.bf16.mxu0 %v1370
    %1573 = vmatpush1.bf16.msra.mxu0 %v1369
    %1574 = vmatprep.subr.bf16.mxu0 %v1368
    %1575 = vmatpush1.bf16.msra.mxu0 %v1367
    %1576 = vmatprep.subr.bf16.mxu0 %v1366
    %1577 = vmatpush1.bf16.msra.mxu0 %v1365
    %1578 = vmatprep.subr.bf16.mxu0 %v1364
    %1579 = vmatpush1.bf16.msra.mxu0 %v1363
    %1580 = vmatprep.subr.bf16.mxu0 %v1362
    %1581 = vmatpush1.bf16.msra.mxu0 %v1361
    %1582 = vmatprep.subr.bf16.mxu0 %v1360
    %1583 = vmatpush1.bf16.msra.mxu0 %v1359
    %1584 = vmatprep.subr.bf16.mxu0 %v1390
    %1585 = vmatpush2.bf16.msra.mxu0 %v1389
    %1586 = vmatprep.subr.bf16.mxu0 %v1388
    %1587 = vmatpush2.bf16.msra.mxu0 %v1387
    %1588 = vmatprep.subr.bf16.mxu0 %v1386
    %1589 = vmatpush2.bf16.msra.mxu0 %v1385
    %1590 = vmatprep.subr.bf16.mxu0 %v1384
    %1591 = vmatpush2.bf16.msra.mxu0 %v1383
    %1592 = vmatprep.subr.bf16.mxu0 %v1382
    %1593 = vmatpush2.bf16.msra.mxu0 %v1381
    %1594 = vmatprep.subr.bf16.mxu0 %v1380
    %1595 = vmatpush2.bf16.msra.mxu0 %v1379
    %1596 = vmatprep.subr.bf16.mxu0 %v1378
    %1597 = vmatpush2.bf16.msra.mxu0 %v1377
    %1598 = vmatprep.subr.bf16.mxu0 %v1376
    %1599 = vmatpush2.bf16.msra.mxu0 %v1375
    %1600 = vmatprep.mubr.bf16.mxu0 %v1106
    %1601 = vmatmul.mubr.bf16.gmra.mxu0 %v1105
    %v1602 = vpop.f32.mrf.mxu0
    %v1603 = vadd.f32 %v1490, %v1602
    %v1604 = vpop.f32.mrf.mxu0
    %v1605 = vadd.f32 %v1492, %v1604
    %v1606 = vpop.f32.mrf.mxu0
    %v1607 = vadd.f32 %v1494, %v1606
    %v1608 = vpop.f32.mrf.mxu0
    %v1609 = vadd.f32 %v1496, %v1608
    %1610 = vmatprep.mubr.bf16.mxu0 %v1110
    %1611 = vmatmul.mubr.bf16.gmra.mxu0 %v1109
    %v1612 = vpop.f32.mrf.mxu0
    %v1613 = vadd.f32 %v1500, %v1612
    %v1614 = vpop.f32.mrf.mxu0
    %v1615 = vadd.f32 %v1502, %v1614
    %v1616 = vpop.f32.mrf.mxu0
    %v1617 = vadd.f32 %v1504, %v1616
    %v1618 = vpop.f32.mrf.mxu0
    %v1619 = vadd.f32 %v1506, %v1618
    %1620 = vmatprep.mubr.bf16.mxu0 %v1114
    %1621 = vmatmul.mubr.bf16.gmra.mxu0 %v1113
    %v1622 = vpop.f32.mrf.mxu0
    %v1623 = vadd.f32 %v1510, %v1622
    %v1624 = vpop.f32.mrf.mxu0
    %v1625 = vadd.f32 %v1512, %v1624
    %v1626 = vpop.f32.mrf.mxu0
    %v1627 = vadd.f32 %v1514, %v1626
    %v1628 = vpop.f32.mrf.mxu0
    %v1629 = vadd.f32 %v1516, %v1628
    %1630 = vmatprep.mubr.bf16.mxu0 %v1118
    %1631 = vmatmul.mubr.bf16.gmra.mxu0 %v1117
    %v1632 = vpop.f32.mrf.mxu0
    %v1633 = vadd.f32 %v1520, %v1632
    %v1634 = vpop.f32.mrf.mxu0
    %v1635 = vadd.f32 %v1522, %v1634
    %v1636 = vpop.f32.mrf.mxu0
    %v1637 = vadd.f32 %v1524, %v1636
    %v1638 = vpop.f32.mrf.mxu0
    %v1639 = vadd.f32 %v1526, %v1638
    %1640 = vmatprep.mubr.bf16.mxu0 %v1122
    %1641 = vmatmul.mubr.bf16.gmra.mxu0 %v1121
    %v1642 = vpop.f32.mrf.mxu0
    %v1643 = vadd.f32 %v1530, %v1642
    %v1644 = vpop.f32.mrf.mxu0
    %v1645 = vadd.f32 %v1532, %v1644
    %v1646 = vpop.f32.mrf.mxu0
    %v1647 = vadd.f32 %v1534, %v1646
    %v1648 = vpop.f32.mrf.mxu0
    %v1649 = vadd.f32 %v1536, %v1648
    %1650 = vmatprep.mubr.bf16.mxu0 %v1126
    %1651 = vmatmul.mubr.bf16.gmra.mxu0 %v1125
    %v1652 = vpop.f32.mrf.mxu0
    %v1653 = vadd.f32 %v1540, %v1652
    %v1654 = vpop.f32.mrf.mxu0
    %v1655 = vadd.f32 %v1542, %v1654
    %v1656 = vpop.f32.mrf.mxu0
    %v1657 = vadd.f32 %v1544, %v1656
    %v1658 = vpop.f32.mrf.mxu0
    %v1659 = vadd.f32 %v1546, %v1658
    %1660 = vmatprep.mubr.bf16.mxu0 %v1130
    %1661 = vmatmul.mubr.bf16.gmra.mxu0 %v1129
    %v1662 = vpop.f32.mrf.mxu0
    %v1663 = vadd.f32 %v1550, %v1662
    %v1664 = vpop.f32.mrf.mxu0
    %v1665 = vadd.f32 %v1552, %v1664
    %v1666 = vpop.f32.mrf.mxu0
    %v1667 = vadd.f32 %v1554, %v1666
    %v1668 = vpop.f32.mrf.mxu0
    %v1669 = vadd.f32 %v1556, %v1668
    %1670 = vmatprep.mubr.bf16.mxu0 %v1134
    %1671 = vmatmul.mubr.bf16.gmra.mxu0 %v1133
    %v1672 = vpop.f32.mrf.mxu0
    %v1673 = vadd.f32 %v1560, %v1672
    %v1674 = vpop.f32.mrf.mxu0
    %v1675 = vadd.f32 %v1562, %v1674
    %v1676 = vpop.f32.mrf.mxu0
    %v1677 = vadd.f32 %v1564, %v1676
    %v1678 = vpop.f32.mrf.mxu0
    %v1679 = vadd.f32 %v1566, %v1678
    %1680 = vdwg.mxu0
    %v1681 = vpack.c.bf16 %v1607, %v1603
    %v1682 = vpack.c.bf16 %v1609, %v1605
    %v1683 = vpack.c.bf16 %v1617, %v1613
    %v1684 = vpack.c.bf16 %v1619, %v1615
    %v1685 = vpack.c.bf16 %v1627, %v1623
    %v1686 = vpack.c.bf16 %v1629, %v1625
    %v1687 = vpack.c.bf16 %v1637, %v1633
    %v1688 = vpack.c.bf16 %v1639, %v1635
    %v1689 = vpack.c.bf16 %v1647, %v1643
    %v1690 = vpack.c.bf16 %v1649, %v1645
    %v1691 = vpack.c.bf16 %v1657, %v1653
    %v1692 = vpack.c.bf16 %v1659, %v1655
    %v1693 = vpack.c.bf16 %v1667, %v1663
    %v1694 = vpack.c.bf16 %v1669, %v1665
    %v1695 = vpack.c.bf16 %v1677, %v1673
    %v1696 = vpack.c.bf16 %v1679, %v1675
    %v1698 = vlaneseq
    %v1699 = vshrl.u32 %v1698, 7
    %v1700 = vsub.s32 0, %v1699
    %v1701 = vrot.slane %v1102, %v1700
    %v1702 = vlaneseq
    %v1703 = vshrl.u32 %v1702, 7
    %v1704 = vsub.s32 1, %v1703
    %v1705 = vrot.slane %v1102, %v1704
    %1708 = vmatprep.subr.bf16.mxu0 %v1696
    %1709 = vmatpush1.bf16.msra.mxu0 %v1695
    %1710 = vmatprep.subr.bf16.mxu0 %v1694
    %1711 = vmatpush1.bf16.msra.mxu0 %v1693
    %1712 = vmatprep.subr.bf16.mxu0 %v1692
    %1713 = vmatpush1.bf16.msra.mxu0 %v1691
    %1714 = vmatprep.subr.bf16.mxu0 %v1690
    %1715 = vmatpush1.bf16.msra.mxu0 %v1689
    %1716 = vmatprep.subr.bf16.mxu0 %v1688
    %1717 = vmatpush1.bf16.msra.mxu0 %v1687
    %1718 = vmatprep.subr.bf16.mxu0 %v1686
    %1719 = vmatpush1.bf16.msra.mxu0 %v1685
    %1720 = vmatprep.subr.bf16.mxu0 %v1684
    %1721 = vmatpush1.bf16.msra.mxu0 %v1683
    %1722 = vmatprep.subr.bf16.mxu0 %v1682
    %1723 = vmatpush1.bf16.msra.mxu0 %v1681
    %1724 = vmatprep.subr.bf16.mxu0 0
    %1725 = vmatpush2.bf16.msra.mxu0 0
    %1726 = vmatprep.subr.bf16.mxu0 0
    %1727 = vmatpush2.bf16.msra.mxu0 0
    %1728 = vmatprep.subr.bf16.mxu0 0
    %1729 = vmatpush2.bf16.msra.mxu0 0
    %1730 = vmatprep.subr.bf16.mxu0 0
    %1731 = vmatpush2.bf16.msra.mxu0 0
    %1732 = vmatprep.subr.bf16.mxu0 0
    %1733 = vmatpush2.bf16.msra.mxu0 0
    %1734 = vmatprep.subr.bf16.mxu0 0
    %1735 = vmatpush2.bf16.msra.mxu0 0
    %1736 = vmatprep.subr.bf16.mxu0 0
    %1737 = vmatpush2.bf16.msra.mxu0 0
    %1738 = vmatprep.subr.bf16.mxu0 0
    %1739 = vmatpush2.bf16.msra.mxu0 0
    %1740 = vmatprep.mubr.bf16.mxu0 0
    %1741 = vmatmul.mubr.bf16.gmra.mxu0 %v290
    %v1742 = vpop.f32.mrf.mxu0
    %v1743 = vadd.f32 %v1701, %v1742
    %v1744 = vpop.f32.mrf.mxu0
    %v1745 = vadd.f32 %v1705, %v1744
    %v1746 = vpop.f32.mrf.mxu0
    %v1747 = vadd.f32 %v1701, %v1746
    %v1748 = vpop.f32.mrf.mxu0
    %v1749 = vadd.f32 %v1705, %v1748
    %1750 = vmatprep.mubr.bf16.mxu0 0
    %1751 = vmatmul.mubr.bf16.gmra.mxu0 %v291
    %v1752 = vpop.f32.mrf.mxu0
    %v1753 = vadd.f32 %v1701, %v1752
    %v1754 = vpop.f32.mrf.mxu0
    %v1755 = vadd.f32 %v1705, %v1754
    %v1756 = vpop.f32.mrf.mxu0
    %v1757 = vadd.f32 %v1701, %v1756
    %v1758 = vpop.f32.mrf.mxu0
    %v1759 = vadd.f32 %v1705, %v1758
    %1760 = vmatprep.mubr.bf16.mxu0 0
    %1761 = vmatmul.mubr.bf16.gmra.mxu0 %v292
    %v1762 = vpop.f32.mrf.mxu0
    %v1763 = vadd.f32 %v1701, %v1762
    %v1764 = vpop.f32.mrf.mxu0
    %v1765 = vadd.f32 %v1705, %v1764
    %v1766 = vpop.f32.mrf.mxu0
    %v1767 = vadd.f32 %v1701, %v1766
    %v1768 = vpop.f32.mrf.mxu0
    %v1769 = vadd.f32 %v1705, %v1768
    %1770 = vmatprep.mubr.bf16.mxu0 0
    %1771 = vmatmul.mubr.bf16.gmra.mxu0 %v293
    %v1772 = vpop.f32.mrf.mxu0
    %v1773 = vadd.f32 %v1701, %v1772
    %v1774 = vpop.f32.mrf.mxu0
    %v1775 = vadd.f32 %v1705, %v1774
    %v1776 = vpop.f32.mrf.mxu0
    %v1777 = vadd.f32 %v1701, %v1776
    %v1778 = vpop.f32.mrf.mxu0
    %v1779 = vadd.f32 %v1705, %v1778
    %1780 = vmatprep.mubr.bf16.mxu0 0
    %1781 = vmatmul.mubr.bf16.gmra.mxu0 %v294
    %v1782 = vpop.f32.mrf.mxu0
    %v1783 = vadd.f32 %v1701, %v1782
    %v1784 = vpop.f32.mrf.mxu0
    %v1785 = vadd.f32 %v1705, %v1784
    %v1786 = vpop.f32.mrf.mxu0
    %v1787 = vadd.f32 %v1701, %v1786
    %v1788 = vpop.f32.mrf.mxu0
    %v1789 = vadd.f32 %v1705, %v1788
    %1790 = vmatprep.mubr.bf16.mxu0 0
    %1791 = vmatmul.mubr.bf16.gmra.mxu0 %v295
    %v1792 = vpop.f32.mrf.mxu0
    %v1793 = vadd.f32 %v1701, %v1792
    %v1794 = vpop.f32.mrf.mxu0
    %v1795 = vadd.f32 %v1705, %v1794
    %v1796 = vpop.f32.mrf.mxu0
    %v1797 = vadd.f32 %v1701, %v1796
    %v1798 = vpop.f32.mrf.mxu0
    %v1799 = vadd.f32 %v1705, %v1798
    %1800 = vmatprep.mubr.bf16.mxu0 0
    %1801 = vmatmul.mubr.bf16.gmra.mxu0 %v296
    %v1802 = vpop.f32.mrf.mxu0
    %v1803 = vadd.f32 %v1701, %v1802
    %v1804 = vpop.f32.mrf.mxu0
    %v1805 = vadd.f32 %v1705, %v1804
    %v1806 = vpop.f32.mrf.mxu0
    %v1807 = vadd.f32 %v1701, %v1806
    %v1808 = vpop.f32.mrf.mxu0
    %v1809 = vadd.f32 %v1705, %v1808
    %1810 = vmatprep.mubr.bf16.mxu0 0
    %1811 = vmatmul.mubr.bf16.gmra.mxu0 %v297
    %v1812 = vpop.f32.mrf.mxu0
    %v1813 = vadd.f32 %v1701, %v1812
    %v1814 = vpop.f32.mrf.mxu0
    %v1815 = vadd.f32 %v1705, %v1814
    %v1816 = vpop.f32.mrf.mxu0
    %v1817 = vadd.f32 %v1701, %v1816
    %v1818 = vpop.f32.mrf.mxu0
    %v1819 = vadd.f32 %v1705, %v1818
    %1820 = vdwg.mxu0
    %v1821 = vmax.f32 %v1743, 0.0
    %v1822 = vmax.f32 %v1745, 0.0
    %v1823 = vmax.f32 %v1747, 0.0
    %v1824 = vmax.f32 %v1749, 0.0
    %v1825 = vmax.f32 %v1753, 0.0
    %v1826 = vmax.f32 %v1755, 0.0
    %v1827 = vmax.f32 %v1757, 0.0
    %v1828 = vmax.f32 %v1759, 0.0
    %v1829 = vmax.f32 %v1763, 0.0
    %v1830 = vmax.f32 %v1765, 0.0
    %v1831 = vmax.f32 %v1767, 0.0
    %v1832 = vmax.f32 %v1769, 0.0
    %v1833 = vmax.f32 %v1773, 0.0
    %v1834 = vmax.f32 %v1775, 0.0
    %v1835 = vmax.f32 %v1777, 0.0
    %v1836 = vmax.f32 %v1779, 0.0
    %v1837 = vmax.f32 %v1783, 0.0
    %v1838 = vmax.f32 %v1785, 0.0
    %v1839 = vmax.f32 %v1787, 0.0
    %v1840 = vmax.f32 %v1789, 0.0
    %v1841 = vmax.f32 %v1793, 0.0
    %v1842 = vmax.f32 %v1795, 0.0
    %v1843 = vmax.f32 %v1797, 0.0
    %v1844 = vmax.f32 %v1799, 0.0
    %v1845 = vmax.f32 %v1803, 0.0
    %v1846 = vmax.f32 %v1805, 0.0
    %v1847 = vmax.f32 %v1807, 0.0
    %v1848 = vmax.f32 %v1809, 0.0
    %v1849 = vmax.f32 %v1813, 0.0
    %v1850 = vmax.f32 %v1815, 0.0
    %v1851 = vmax.f32 %v1817, 0.0
    %v1852 = vmax.f32 %v1819, 0.0
    %v1853 = vld [vmem:[%s5 + $0x200] sm:$0xff]
    %v1854 = vld [vmem:[%s5 + $0x208] sm:$0xff]
    %v1855 = vld [vmem:[%s5 + $0x210] sm:$0xff]
    %v1856 = vld [vmem:[%s5 + $0x218] sm:$0xff]
    %v1857 = vld [vmem:[%s5 + $0x220] sm:$0xff]
    %v1858 = vld [vmem:[%s5 + $0x228] sm:$0xff]
    %v1859 = vld [vmem:[%s5 + $0x230] sm:$0xff]
    %v1860 = vld [vmem:[%s5 + $0x238] sm:$0xff]
    %v1861 = vld [vmem:[%s5 + $0x240] sm:$0xff]
    %v1862 = vld [vmem:[%s5 + $0x248] sm:$0xff]
    %v1863 = vld [vmem:[%s5 + $0x250] sm:$0xff]
    %v1864 = vld [vmem:[%s5 + $0x258] sm:$0xff]
    %v1865 = vld [vmem:[%s5 + $0x260] sm:$0xff]
    %v1866 = vld [vmem:[%s5 + $0x268] sm:$0xff]
    %v1867 = vld [vmem:[%s5 + $0x270] sm:$0xff]
    %v1868 = vld [vmem:[%s5 + $0x278] sm:$0xff]
    %v1869 = vld [vmem:[%s5 + $0x280] sm:$0xff]
    %v1870 = vld [vmem:[%s5 + $0x288] sm:$0xff]
    %v1871 = vld [vmem:[%s5 + $0x290] sm:$0xff]
    %v1872 = vld [vmem:[%s5 + $0x298] sm:$0xff]
    %v1873 = vld [vmem:[%s5 + $0x2a0] sm:$0xff]
    %v1874 = vld [vmem:[%s5 + $0x2a8] sm:$0xff]
    %v1875 = vld [vmem:[%s5 + $0x2b0] sm:$0xff]
    %v1876 = vld [vmem:[%s5 + $0x2b8] sm:$0xff]
    %v1877 = vld [vmem:[%s5 + $0x2c0] sm:$0xff]
    %v1878 = vld [vmem:[%s5 + $0x2c8] sm:$0xff]
    %v1879 = vld [vmem:[%s5 + $0x2d0] sm:$0xff]
    %v1880 = vld [vmem:[%s5 + $0x2d8] sm:$0xff]
    %v1881 = vld [vmem:[%s5 + $0x2e0] sm:$0xff]
    %v1882 = vld [vmem:[%s5 + $0x2e8] sm:$0xff]
    %v1883 = vld [vmem:[%s5 + $0x2f0] sm:$0xff]
    %v1884 = vld [vmem:[%s5 + $0x2f8] sm:$0xff]
    %s1885 = scalar_lea.vmem [#allocation7], 96
    %v1886 = vld [vmem:[%s1885] ss:$8 sm:$0x3]
    %v1887 = vpack.c.bf16 %v1823, %v1821
    %v1888 = vpack.c.bf16 %v1824, %v1822
    %v1889 = vpack.c.bf16 %v1827, %v1825
    %v1890 = vpack.c.bf16 %v1828, %v1826
    %v1891 = vpack.c.bf16 %v1831, %v1829
    %v1892 = vpack.c.bf16 %v1832, %v1830
    %v1893 = vpack.c.bf16 %v1835, %v1833
    %v1894 = vpack.c.bf16 %v1836, %v1834
    %v1895 = vpack.c.bf16 %v1839, %v1837
    %v1896 = vpack.c.bf16 %v1840, %v1838
    %v1897 = vpack.c.bf16 %v1843, %v1841
    %v1898 = vpack.c.bf16 %v1844, %v1842
    %v1899 = vpack.c.bf16 %v1847, %v1845
    %v1900 = vpack.c.bf16 %v1848, %v1846
    %v1901 = vpack.c.bf16 %v1851, %v1849
    %v1902 = vpack.c.bf16 %v1852, %v1850
    %v1935 = vunpack.c.l.b16 %v1853
    %v1936 = vunpack.c.h.b16 %v1853
    %v1937 = vunpack.c.l.b16 %v1854
    %v1938 = vunpack.c.h.b16 %v1854
    %v1939 = vunpack.c.l.b16 %v1855
    %v1940 = vunpack.c.h.b16 %v1855
    %v1941 = vunpack.c.l.b16 %v1856
    %v1942 = vunpack.c.h.b16 %v1856
    %v1943 = vunpack.c.l.b16 %v1857
    %v1944 = vunpack.c.h.b16 %v1857
    %v1945 = vunpack.c.l.b16 %v1858
    %v1946 = vunpack.c.h.b16 %v1858
    %v1947 = vunpack.c.l.b16 %v1859
    %v1948 = vunpack.c.h.b16 %v1859
    %v1949 = vunpack.c.l.b16 %v1860
    %v1950 = vunpack.c.h.b16 %v1860
    %v1951 = vunpack.c.l.b16 %v1861
    %v1952 = vunpack.c.h.b16 %v1861
    %v1953 = vunpack.c.l.b16 %v1862
    %v1954 = vunpack.c.h.b16 %v1862
    %v1955 = vunpack.c.l.b16 %v1863
    %v1956 = vunpack.c.h.b16 %v1863
    %v1957 = vunpack.c.l.b16 %v1864
    %v1958 = vunpack.c.h.b16 %v1864
    %v1959 = vunpack.c.l.b16 %v1865
    %v1960 = vunpack.c.h.b16 %v1865
    %v1961 = vunpack.c.l.b16 %v1866
    %v1962 = vunpack.c.h.b16 %v1866
    %v1963 = vunpack.c.l.b16 %v1867
    %v1964 = vunpack.c.h.b16 %v1867
    %v1965 = vunpack.c.l.b16 %v1868
    %v1966 = vunpack.c.h.b16 %v1868
    %v1967 = vunpack.c.l.b16 %v1869
    %v1968 = vunpack.c.h.b16 %v1869
    %v1969 = vunpack.c.l.b16 %v1870
    %v1970 = vunpack.c.h.b16 %v1870
    %v1971 = vunpack.c.l.b16 %v1871
    %v1972 = vunpack.c.h.b16 %v1871
    %v1973 = vunpack.c.l.b16 %v1872
    %v1974 = vunpack.c.h.b16 %v1872
    %v1975 = vunpack.c.l.b16 %v1873
    %v1976 = vunpack.c.h.b16 %v1873
    %v1977 = vunpack.c.l.b16 %v1874
    %v1978 = vunpack.c.h.b16 %v1874
    %v1979 = vunpack.c.l.b16 %v1875
    %v1980 = vunpack.c.h.b16 %v1875
    %v1981 = vunpack.c.l.b16 %v1876
    %v1982 = vunpack.c.h.b16 %v1876
    %v1983 = vunpack.c.l.b16 %v1877
    %v1984 = vunpack.c.h.b16 %v1877
    %v1985 = vunpack.c.l.b16 %v1878
    %v1986 = vunpack.c.h.b16 %v1878
    %v1987 = vunpack.c.l.b16 %v1879
    %v1988 = vunpack.c.h.b16 %v1879
    %v1989 = vunpack.c.l.b16 %v1880
    %v1990 = vunpack.c.h.b16 %v1880
    %v1991 = vunpack.c.l.b16 %v1881
    %v1992 = vunpack.c.h.b16 %v1881
    %v1993 = vunpack.c.l.b16 %v1882
    %v1994 = vunpack.c.h.b16 %v1882
    %v1995 = vunpack.c.l.b16 %v1883
    %v1996 = vunpack.c.h.b16 %v1883
    %v1997 = vunpack.c.l.b16 %v1884
    %v1998 = vunpack.c.h.b16 %v1884
    %v1999 = vpack.c.b16 %v1937, %v1935
    %v2000 = vpack.c.b16 %v1938, %v1936
    %v2001 = vpack.c.b16 %v1941, %v1939
    %v2002 = vpack.c.b16 %v1942, %v1940
    %v2003 = vpack.c.b16 %v1945, %v1943
    %v2004 = vpack.c.b16 %v1946, %v1944
    %v2005 = vpack.c.b16 %v1949, %v1947
    %v2006 = vpack.c.b16 %v1950, %v1948
    %v2007 = vpack.c.b16 %v1953, %v1951
    %v2008 = vpack.c.b16 %v1954, %v1952
    %v2009 = vpack.c.b16 %v1957, %v1955
    %v2010 = vpack.c.b16 %v1958, %v1956
    %v2011 = vpack.c.b16 %v1961, %v1959
    %v2012 = vpack.c.b16 %v1962, %v1960
    %v2013 = vpack.c.b16 %v1965, %v1963
    %v2014 = vpack.c.b16 %v1966, %v1964
    %v2015 = vpack.c.b16 %v1969, %v1967
    %v2016 = vpack.c.b16 %v1970, %v1968
    %v2017 = vpack.c.b16 %v1973, %v1971
    %v2018 = vpack.c.b16 %v1974, %v1972
    %v2019 = vpack.c.b16 %v1977, %v1975
    %v2020 = vpack.c.b16 %v1978, %v1976
    %v2021 = vpack.c.b16 %v1981, %v1979
    %v2022 = vpack.c.b16 %v1982, %v1980
    %v2023 = vpack.c.b16 %v1985, %v1983
    %v2024 = vpack.c.b16 %v1986, %v1984
    %v2025 = vpack.c.b16 %v1989, %v1987
    %v2026 = vpack.c.b16 %v1990, %v1988
    %v2027 = vpack.c.b16 %v1993, %v1991
    %v2028 = vpack.c.b16 %v1994, %v1992
    %v2029 = vpack.c.b16 %v1997, %v1995
    %v2030 = vpack.c.b16 %v1998, %v1996
    %2063 = vmatprep.subr.bf16.mxu0 %v2014
    %2064 = vmatpush1.bf16.msra.mxu0 %v2013
    %2065 = vmatprep.subr.bf16.mxu0 %v2012
    %2066 = vmatpush1.bf16.msra.mxu0 %v2011
    %2067 = vmatprep.subr.bf16.mxu0 %v2010
    %2068 = vmatpush1.bf16.msra.mxu0 %v2009
    %2069 = vmatprep.subr.bf16.mxu0 %v2008
    %2070 = vmatpush1.bf16.msra.mxu0 %v2007
    %2071 = vmatprep.subr.bf16.mxu0 %v2006
    %2072 = vmatpush1.bf16.msra.mxu0 %v2005
    %2073 = vmatprep.subr.bf16.mxu0 %v2004
    %2074 = vmatpush1.bf16.msra.mxu0 %v2003
    %2075 = vmatprep.subr.bf16.mxu0 %v2002
    %2076 = vmatpush1.bf16.msra.mxu0 %v2001
    %2077 = vmatprep.subr.bf16.mxu0 %v2000
    %2078 = vmatpush1.bf16.msra.mxu0 %v1999
    %2079 = vmatprep.subr.bf16.mxu0 %v2030
    %2080 = vmatpush2.bf16.msra.mxu0 %v2029
    %2081 = vmatprep.subr.bf16.mxu0 %v2028
    %2082 = vmatpush2.bf16.msra.mxu0 %v2027
    %2083 = vmatprep.subr.bf16.mxu0 %v2026
    %2084 = vmatpush2.bf16.msra.mxu0 %v2025
    %2085 = vmatprep.subr.bf16.mxu0 %v2024
    %2086 = vmatpush2.bf16.msra.mxu0 %v2023
    %2087 = vmatprep.subr.bf16.mxu0 %v2022
    %2088 = vmatpush2.bf16.msra.mxu0 %v2021
    %2089 = vmatprep.subr.bf16.mxu0 %v2020
    %2090 = vmatpush2.bf16.msra.mxu0 %v2019
    %2091 = vmatprep.subr.bf16.mxu0 %v2018
    %2092 = vmatpush2.bf16.msra.mxu0 %v2017
    %2093 = vmatprep.subr.bf16.mxu0 %v2016
    %2094 = vmatpush2.bf16.msra.mxu0 %v2015
    %2095 = vmatprep.mubr.bf16.mxu0 %v1888
    %2096 = vmatmul.mubr.bf16.gmra.mxu0 %v1887
    %v2097 = vpop.f32.mrf.mxu0
    %v2098 = vadd.f32 0.0, %v2097
    %v2099 = vpop.f32.mrf.mxu0
    %v2100 = vadd.f32 0.0, %v2099
    %v2101 = vpop.f32.mrf.mxu0
    %v2102 = vadd.f32 0.0, %v2101
    %v2103 = vpop.f32.mrf.mxu0
    %v2104 = vadd.f32 0.0, %v2103
    %2105 = vmatprep.mubr.bf16.mxu0 %v1890
    %2106 = vmatmul.mubr.bf16.gmra.mxu0 %v1889
    %v2107 = vpop.f32.mrf.mxu0
    %v2108 = vadd.f32 0.0, %v2107
    %v2109 = vpop.f32.mrf.mxu0
    %v2110 = vadd.f32 0.0, %v2109
    %v2111 = vpop.f32.mrf.mxu0
    %v2112 = vadd.f32 0.0, %v2111
    %v2113 = vpop.f32.mrf.mxu0
    %v2114 = vadd.f32 0.0, %v2113
    %2115 = vmatprep.mubr.bf16.mxu0 %v1892
    %2116 = vmatmul.mubr.bf16.gmra.mxu0 %v1891
    %v2117 = vpop.f32.mrf.mxu0
    %v2118 = vadd.f32 0.0, %v2117
    %v2119 = vpop.f32.mrf.mxu0
    %v2120 = vadd.f32 0.0, %v2119
    %v2121 = vpop.f32.mrf.mxu0
    %v2122 = vadd.f32 0.0, %v2121
    %v2123 = vpop.f32.mrf.mxu0
    %v2124 = vadd.f32 0.0, %v2123
    %2125 = vmatprep.mubr.bf16.mxu0 %v1894
    %2126 = vmatmul.mubr.bf16.gmra.mxu0 %v1893
    %v2127 = vpop.f32.mrf.mxu0
    %v2128 = vadd.f32 0.0, %v2127
    %v2129 = vpop.f32.mrf.mxu0
    %v2130 = vadd.f32 0.0, %v2129
    %v2131 = vpop.f32.mrf.mxu0
    %v2132 = vadd.f32 0.0, %v2131
    %v2133 = vpop.f32.mrf.mxu0
    %v2134 = vadd.f32 0.0, %v2133
    %2135 = vmatprep.mubr.bf16.mxu0 %v1896
    %2136 = vmatmul.mubr.bf16.gmra.mxu0 %v1895
    %v2137 = vpop.f32.mrf.mxu0
    %v2138 = vadd.f32 0.0, %v2137
    %v2139 = vpop.f32.mrf.mxu0
    %v2140 = vadd.f32 0.0, %v2139
    %v2141 = vpop.f32.mrf.mxu0
    %v2142 = vadd.f32 0.0, %v2141
    %v2143 = vpop.f32.mrf.mxu0
    %v2144 = vadd.f32 0.0, %v2143
    %2145 = vmatprep.mubr.bf16.mxu0 %v1898
    %2146 = vmatmul.mubr.bf16.gmra.mxu0 %v1897
    %v2147 = vpop.f32.mrf.mxu0
    %v2148 = vadd.f32 0.0, %v2147
    %v2149 = vpop.f32.mrf.mxu0
    %v2150 = vadd.f32 0.0, %v2149
    %v2151 = vpop.f32.mrf.mxu0
    %v2152 = vadd.f32 0.0, %v2151
    %v2153 = vpop.f32.mrf.mxu0
    %v2154 = vadd.f32 0.0, %v2153
    %2155 = vmatprep.mubr.bf16.mxu0 %v1900
    %2156 = vmatmul.mubr.bf16.gmra.mxu0 %v1899
    %v2157 = vpop.f32.mrf.mxu0
    %v2158 = vadd.f32 0.0, %v2157
    %v2159 = vpop.f32.mrf.mxu0
    %v2160 = vadd.f32 0.0, %v2159
    %v2161 = vpop.f32.mrf.mxu0
    %v2162 = vadd.f32 0.0, %v2161
    %v2163 = vpop.f32.mrf.mxu0
    %v2164 = vadd.f32 0.0, %v2163
    %2165 = vmatprep.mubr.bf16.mxu0 %v1902
    %2166 = vmatmul.mubr.bf16.gmra.mxu0 %v1901
    %v2167 = vpop.f32.mrf.mxu0
    %v2168 = vadd.f32 0.0, %v2167
    %v2169 = vpop.f32.mrf.mxu0
    %v2170 = vadd.f32 0.0, %v2169
    %v2171 = vpop.f32.mrf.mxu0
    %v2172 = vadd.f32 0.0, %v2171
    %v2173 = vpop.f32.mrf.mxu0
    %v2174 = vadd.f32 0.0, %v2173
    %2175 = vdwg.mxu0
    %v2176 = vpack.c.bf16 %v2102, %v2098
    %v2177 = vpack.c.bf16 %v2104, %v2100
    %v2178 = vpack.c.bf16 %v2112, %v2108
    %v2179 = vpack.c.bf16 %v2114, %v2110
    %v2180 = vpack.c.bf16 %v2122, %v2118
    %v2181 = vpack.c.bf16 %v2124, %v2120
    %v2182 = vpack.c.bf16 %v2132, %v2128
    %v2183 = vpack.c.bf16 %v2134, %v2130
    %v2184 = vpack.c.bf16 %v2142, %v2138
    %v2185 = vpack.c.bf16 %v2144, %v2140
    %v2186 = vpack.c.bf16 %v2152, %v2148
    %v2187 = vpack.c.bf16 %v2154, %v2150
    %v2188 = vpack.c.bf16 %v2162, %v2158
    %v2189 = vpack.c.bf16 %v2164, %v2160
    %v2190 = vpack.c.bf16 %v2172, %v2168
    %v2191 = vpack.c.bf16 %v2174, %v2170
    %v2193 = vlaneseq
    %v2194 = vshrl.u32 %v2193, 7
    %v2195 = vsub.s32 0, %v2194
    %v2196 = vrot.slane %v1886, %v2195
    %v2197 = vlaneseq
    %v2198 = vshrl.u32 %v2197, 7
    %v2199 = vsub.s32 1, %v2198
    %v2200 = vrot.slane %v1886, %v2199
    %2203 = vmatprep.subr.bf16.mxu0 %v2191
    %2204 = vmatpush1.bf16.msra.mxu0 %v2190
    %2205 = vmatprep.subr.bf16.mxu0 %v2189
    %2206 = vmatpush1.bf16.msra.mxu0 %v2188
    %2207 = vmatprep.subr.bf16.mxu0 %v2187
    %2208 = vmatpush1.bf16.msra.mxu0 %v2186
    %2209 = vmatprep.subr.bf16.mxu0 %v2185
    %2210 = vmatpush1.bf16.msra.mxu0 %v2184
    %2211 = vmatprep.subr.bf16.mxu0 %v2183
    %2212 = vmatpush1.bf16.msra.mxu0 %v2182
    %2213 = vmatprep.subr.bf16.mxu0 %v2181
    %2214 = vmatpush1.bf16.msra.mxu0 %v2180
    %2215 = vmatprep.subr.bf16.mxu0 %v2179
    %2216 = vmatpush1.bf16.msra.mxu0 %v2178
    %2217 = vmatprep.subr.bf16.mxu0 %v2177
    %2218 = vmatpush1.bf16.msra.mxu0 %v2176
    %2219 = vmatprep.subr.bf16.mxu0 0
    %2220 = vmatpush2.bf16.msra.mxu0 0
    %2221 = vmatprep.subr.bf16.mxu0 0
    %2222 = vmatpush2.bf16.msra.mxu0 0
    %2223 = vmatprep.subr.bf16.mxu0 0
    %2224 = vmatpush2.bf16.msra.mxu0 0
    %2225 = vmatprep.subr.bf16.mxu0 0
    %2226 = vmatpush2.bf16.msra.mxu0 0
    %2227 = vmatprep.subr.bf16.mxu0 0
    %2228 = vmatpush2.bf16.msra.mxu0 0
    %2229 = vmatprep.subr.bf16.mxu0 0
    %2230 = vmatpush2.bf16.msra.mxu0 0
    %2231 = vmatprep.subr.bf16.mxu0 0
    %2232 = vmatpush2.bf16.msra.mxu0 0
    %2233 = vmatprep.subr.bf16.mxu0 0
    %2234 = vmatpush2.bf16.msra.mxu0 0
    %2235 = vmatprep.mubr.bf16.mxu0 0
    %2236 = vmatmul.mubr.bf16.gmra.mxu0 %v290
    %v2237 = vpop.f32.mrf.mxu0
    %v2238 = vadd.f32 %v2196, %v2237
    %v2239 = vpop.f32.mrf.mxu0
    %v2240 = vadd.f32 %v2200, %v2239
    %v2241 = vpop.f32.mrf.mxu0
    %v2242 = vadd.f32 %v2196, %v2241
    %v2243 = vpop.f32.mrf.mxu0
    %v2244 = vadd.f32 %v2200, %v2243
    %2245 = vmatprep.mubr.bf16.mxu0 0
    %2246 = vmatmul.mubr.bf16.gmra.mxu0 %v291
    %v2247 = vpop.f32.mrf.mxu0
    %v2248 = vadd.f32 %v2196, %v2247
    %v2249 = vpop.f32.mrf.mxu0
    %v2250 = vadd.f32 %v2200, %v2249
    %v2251 = vpop.f32.mrf.mxu0
    %v2252 = vadd.f32 %v2196, %v2251
    %v2253 = vpop.f32.mrf.mxu0
    %v2254 = vadd.f32 %v2200, %v2253
    %2255 = vmatprep.mubr.bf16.mxu0 0
    %2256 = vmatmul.mubr.bf16.gmra.mxu0 %v292
    %v2257 = vpop.f32.mrf.mxu0
    %v2258 = vadd.f32 %v2196, %v2257
    %v2259 = vpop.f32.mrf.mxu0
    %v2260 = vadd.f32 %v2200, %v2259
    %v2261 = vpop.f32.mrf.mxu0
    %v2262 = vadd.f32 %v2196, %v2261
    %v2263 = vpop.f32.mrf.mxu0
    %v2264 = vadd.f32 %v2200, %v2263
    %2265 = vmatprep.mubr.bf16.mxu0 0
    %2266 = vmatmul.mubr.bf16.gmra.mxu0 %v293
    %v2267 = vpop.f32.mrf.mxu0
    %v2268 = vadd.f32 %v2196, %v2267
    %v2269 = vpop.f32.mrf.mxu0
    %v2270 = vadd.f32 %v2200, %v2269
    %v2271 = vpop.f32.mrf.mxu0
    %v2272 = vadd.f32 %v2196, %v2271
    %v2273 = vpop.f32.mrf.mxu0
    %v2274 = vadd.f32 %v2200, %v2273
    %2275 = vmatprep.mubr.bf16.mxu0 0
    %2276 = vmatmul.mubr.bf16.gmra.mxu0 %v294
    %v2277 = vpop.f32.mrf.mxu0
    %v2278 = vadd.f32 %v2196, %v2277
    %v2279 = vpop.f32.mrf.mxu0
    %v2280 = vadd.f32 %v2200, %v2279
    %v2281 = vpop.f32.mrf.mxu0
    %v2282 = vadd.f32 %v2196, %v2281
    %v2283 = vpop.f32.mrf.mxu0
    %v2284 = vadd.f32 %v2200, %v2283
    %2285 = vmatprep.mubr.bf16.mxu0 0
    %2286 = vmatmul.mubr.bf16.gmra.mxu0 %v295
    %v2287 = vpop.f32.mrf.mxu0
    %v2288 = vadd.f32 %v2196, %v2287
    %v2289 = vpop.f32.mrf.mxu0
    %v2290 = vadd.f32 %v2200, %v2289
    %v2291 = vpop.f32.mrf.mxu0
    %v2292 = vadd.f32 %v2196, %v2291
    %v2293 = vpop.f32.mrf.mxu0
    %v2294 = vadd.f32 %v2200, %v2293
    %2295 = vmatprep.mubr.bf16.mxu0 0
    %2296 = vmatmul.mubr.bf16.gmra.mxu0 %v296
    %v2297 = vpop.f32.mrf.mxu0
    %v2298 = vadd.f32 %v2196, %v2297
    %v2299 = vpop.f32.mrf.mxu0
    %v2300 = vadd.f32 %v2200, %v2299
    %v2301 = vpop.f32.mrf.mxu0
    %v2302 = vadd.f32 %v2196, %v2301
    %v2303 = vpop.f32.mrf.mxu0
    %v2304 = vadd.f32 %v2200, %v2303
    %2305 = vmatprep.mubr.bf16.mxu0 0
    %2306 = vmatmul.mubr.bf16.gmra.mxu0 %v297
    %v2307 = vpop.f32.mrf.mxu0
    %v2308 = vadd.f32 %v2196, %v2307
    %v2309 = vpop.f32.mrf.mxu0
    %v2310 = vadd.f32 %v2200, %v2309
    %v2311 = vpop.f32.mrf.mxu0
    %v2312 = vadd.f32 %v2196, %v2311
    %v2313 = vpop.f32.mrf.mxu0
    %v2314 = vadd.f32 %v2200, %v2313
    %2315 = vdwg.mxu0
    %v2316 = vmax.f32 %v2238, 0.0
    %v2317 = vmax.f32 %v2240, 0.0
    %v2318 = vmax.f32 %v2242, 0.0
    %v2319 = vmax.f32 %v2244, 0.0
    %v2320 = vmax.f32 %v2248, 0.0
    %v2321 = vmax.f32 %v2250, 0.0
    %v2322 = vmax.f32 %v2252, 0.0
    %v2323 = vmax.f32 %v2254, 0.0
    %v2324 = vmax.f32 %v2258, 0.0
    %v2325 = vmax.f32 %v2260, 0.0
    %v2326 = vmax.f32 %v2262, 0.0
    %v2327 = vmax.f32 %v2264, 0.0
    %v2328 = vmax.f32 %v2268, 0.0
    %v2329 = vmax.f32 %v2270, 0.0
    %v2330 = vmax.f32 %v2272, 0.0
    %v2331 = vmax.f32 %v2274, 0.0
    %v2332 = vmax.f32 %v2278, 0.0
    %v2333 = vmax.f32 %v2280, 0.0
    %v2334 = vmax.f32 %v2282, 0.0
    %v2335 = vmax.f32 %v2284, 0.0
    %v2336 = vmax.f32 %v2288, 0.0
    %v2337 = vmax.f32 %v2290, 0.0
    %v2338 = vmax.f32 %v2292, 0.0
    %v2339 = vmax.f32 %v2294, 0.0
    %v2340 = vmax.f32 %v2298, 0.0
    %v2341 = vmax.f32 %v2300, 0.0
    %v2342 = vmax.f32 %v2302, 0.0
    %v2343 = vmax.f32 %v2304, 0.0
    %v2344 = vmax.f32 %v2308, 0.0
    %v2345 = vmax.f32 %v2310, 0.0
    %v2346 = vmax.f32 %v2312, 0.0
    %v2347 = vmax.f32 %v2314, 0.0
    %v2348 = vld [vmem:[%s2] sm:$0xff]
    %v2349 = vld [vmem:[%s2 + $0x8] sm:$0xff]
    %v2350 = vpack.c.bf16 %v2349, %v2348
    %v2351 = vpack.c.bf16 %v2318, %v2316
    %v2352 = vpack.c.bf16 %v2319, %v2317
    %v2353 = vpack.c.bf16 %v2322, %v2320
    %v2354 = vpack.c.bf16 %v2323, %v2321
    %v2355 = vpack.c.bf16 %v2326, %v2324
    %v2356 = vpack.c.bf16 %v2327, %v2325
    %v2357 = vpack.c.bf16 %v2330, %v2328
    %v2358 = vpack.c.bf16 %v2331, %v2329
    %v2359 = vpack.c.bf16 %v2334, %v2332
    %v2360 = vpack.c.bf16 %v2335, %v2333
    %v2361 = vpack.c.bf16 %v2338, %v2336
    %v2362 = vpack.c.bf16 %v2339, %v2337
    %v2363 = vpack.c.bf16 %v2342, %v2340
    %v2364 = vpack.c.bf16 %v2343, %v2341
    %v2365 = vpack.c.bf16 %v2346, %v2344
    %v2366 = vpack.c.bf16 %v2347, %v2345
    %2367 = vmatprep.subr.bf16.mxu0 %v2366
    %2368 = vmatpush1.bf16.msra.mxu0 %v2365
    %2369 = vmatprep.subr.bf16.mxu0 %v2364
    %2370 = vmatpush1.bf16.msra.mxu0 %v2363
    %2371 = vmatprep.subr.bf16.mxu0 %v2362
    %2372 = vmatpush1.bf16.msra.mxu0 %v2361
    %2373 = vmatprep.subr.bf16.mxu0 %v2360
    %2374 = vmatpush1.bf16.msra.mxu0 %v2359
    %2375 = vmatprep.subr.bf16.mxu0 %v2358
    %2376 = vmatpush1.bf16.msra.mxu0 %v2357
    %2377 = vmatprep.subr.bf16.mxu0 %v2356
    %2378 = vmatpush1.bf16.msra.mxu0 %v2355
    %2379 = vmatprep.subr.bf16.mxu0 %v2354
    %2380 = vmatpush1.bf16.msra.mxu0 %v2353
    %2381 = vmatprep.subr.bf16.mxu0 %v2352
    %2382 = vmatpush1.bf16.msra.mxu0 %v2351
    %2383 = vmatprep.subr.bf16.mxu0 0
    %2384 = vmatpush2.bf16.msra.mxu0 0
    %2385 = vmatprep.subr.bf16.mxu0 0
    %2386 = vmatpush2.bf16.msra.mxu0 0
    %2387 = vmatprep.subr.bf16.mxu0 0
    %2388 = vmatpush2.bf16.msra.mxu0 0
    %2389 = vmatprep.subr.bf16.mxu0 0
    %2390 = vmatpush2.bf16.msra.mxu0 0
    %2391 = vmatprep.subr.bf16.mxu0 0
    %2392 = vmatpush2.bf16.msra.mxu0 0
    %2393 = vmatprep.subr.bf16.mxu0 0
    %2394 = vmatpush2.bf16.msra.mxu0 0
    %2395 = vmatprep.subr.bf16.mxu0 0
    %2396 = vmatpush2.bf16.msra.mxu0 0
    %2397 = vmatprep.subr.bf16.mxu0 0
    %2398 = vmatpush2.bf16.msra.mxu0 0
    %2399 = vmatprep.mubr.bf16.mxu0 0
    %2400 = vmatmul.mubr.bf16.gmra.mxu0 %v2350
    %v2401 = vpop.f32.mrf.mxu0
    %v2402 = vadd.f32 0.0, %v2401
    %v2403 = vpop.f32.mrf.mxu0
    %v2404 = vadd.f32 0.0, %v2403
    %v2405 = vpop.f32.mrf.mxu0
    %v2406 = vadd.f32 0.0, %v2405
    %v2407 = vpop.f32.mrf.mxu0
    %v2408 = vadd.f32 0.0, %v2407
    %2409 = vdwg.mxu0
    %v2410 = vmax.f32 %v2402, 0.0
    %v2411 = vmax.f32 %v2404, 0.0
    %v2412 = vmax.f32 %v2406, 0.0
    %v2413 = vmax.f32 %v2408, 0.0
    %v2414 = vld [vmem:[#allocation4] sm:$0xff]
    %v2415 = vld [vmem:[#allocation4 + $0x8] sm:$0xf]
    %v2416 = vld [vmem:[#allocation4 + $0xc] sm:$0xff]
    %v2417 = vld [vmem:[#allocation4 + $0x14] sm:$0xf]
    %v2418 = vld [vmem:[#allocation4 + $0x18] sm:$0xff]
    %v2419 = vld [vmem:[#allocation4 + $0x20] sm:$0xf]
    %v2420 = vld [vmem:[#allocation4 + $0x24] sm:$0xff]
    %v2421 = vld [vmem:[#allocation4 + $0x2c] sm:$0xf]
    %v2422 = vld [vmem:[#allocation4 + $0x30] sm:$0xff]
    %v2423 = vld [vmem:[#allocation4 + $0x38] sm:$0xf]
    %v2424 = vld [vmem:[#allocation4 + $0x3c] sm:$0xff]
    %v2425 = vld [vmem:[#allocation4 + $0x44] sm:$0xf]
    %v2426 = vld [vmem:[#allocation4 + $0x48] sm:$0xff]
    %v2427 = vld [vmem:[#allocation4 + $0x50] sm:$0xf]
    %v2428 = vld [vmem:[#allocation4 + $0x54] sm:$0xff]
    %v2429 = vld [vmem:[#allocation4 + $0x5c] sm:$0xf]
    %v2430 = vld [vmem:[#allocation4 + $0x60] sm:$0xff]
    %v2431 = vld [vmem:[#allocation4 + $0x68] sm:$0xf]
    %v2432 = vld [vmem:[#allocation4 + $0x6c] sm:$0xff]
    %v2433 = vld [vmem:[#allocation4 + $0x74] sm:$0xf]
    %v2434 = vld [vmem:[#allocation4 + $0x78] sm:$0xff]
    %v2435 = vld [vmem:[#allocation4 + $0x80] sm:$0xf]
    %v2436 = vld [vmem:[#allocation4 + $0x84] sm:$0xff]
    %v2437 = vld [vmem:[#allocation4 + $0x8c] sm:$0xf]
    %v2438 = vld [vmem:[#allocation4 + $0x90] sm:$0xff]
    %v2439 = vld [vmem:[#allocation4 + $0x98] sm:$0xf]
    %v2440 = vld [vmem:[#allocation4 + $0x9c] sm:$0xff]
    %v2441 = vld [vmem:[#allocation4 + $0xa4] sm:$0xf]
    %v2442 = vld [vmem:[#allocation4 + $0xa8] sm:$0xff]
    %v2443 = vld [vmem:[#allocation4 + $0xb0] sm:$0xf]
    %v2444 = vld [vmem:[#allocation4 + $0xb4] sm:$0xff]
    %v2445 = vld [vmem:[#allocation4 + $0xbc] sm:$0xf]
    %v2446 = vld [vmem:[#allocation4 + $0xc0] sm:$0xff]
    %v2447 = vld [vmem:[#allocation4 + $0xc8] sm:$0xf]
    %v2448 = vld [vmem:[#allocation4 + $0xcc] sm:$0xff]
    %v2449 = vld [vmem:[#allocation4 + $0xd4] sm:$0xf]
    %v2450 = vld [vmem:[#allocation4 + $0xd8] sm:$0xff]
    %v2451 = vld [vmem:[#allocation4 + $0xe0] sm:$0xf]
    %v2452 = vld [vmem:[#allocation4 + $0xe4] sm:$0xff]
    %v2453 = vld [vmem:[#allocation4 + $0xec] sm:$0xf]
    %v2454 = vld [vmem:[#allocation4 + $0xf0] sm:$0xff]
    %v2455 = vld [vmem:[#allocation4 + $0xf8] sm:$0xf]
    %v2456 = vld [vmem:[#allocation4 + $0xfc] sm:$0xff]
    %v2457 = vld [vmem:[#allocation4 + $0x104] sm:$0xf]
    %v2458 = vld [vmem:[#allocation4 + $0x108] sm:$0xff]
    %v2459 = vld [vmem:[#allocation4 + $0x110] sm:$0xf]
    %v2460 = vld [vmem:[#allocation4 + $0x114] sm:$0xff]
    %v2461 = vld [vmem:[#allocation4 + $0x11c] sm:$0xf]
    %v2462 = vld [vmem:[#allocation4 + $0x120] sm:$0xff]
    %v2463 = vld [vmem:[#allocation4 + $0x128] sm:$0xf]
    %v2464 = vld [vmem:[#allocation4 + $0x12c] sm:$0xff]
    %v2465 = vld [vmem:[#allocation4 + $0x134] sm:$0xf]
    %v2466 = vld [vmem:[#allocation4 + $0x138] sm:$0xff]
    %v2467 = vld [vmem:[#allocation4 + $0x140] sm:$0xf]
    %v2468 = vld [vmem:[#allocation4 + $0x144] sm:$0xff]
    %v2469 = vld [vmem:[#allocation4 + $0x14c] sm:$0xf]
    %v2470 = vld [vmem:[#allocation4 + $0x150] sm:$0xff]
    %v2471 = vld [vmem:[#allocation4 + $0x158] sm:$0xf]
    %v2472 = vld [vmem:[#allocation4 + $0x15c] sm:$0xff]
    %v2473 = vld [vmem:[#allocation4 + $0x164] sm:$0xf]
    %v2474 = vld [vmem:[#allocation4 + $0x168] sm:$0xff]
    %v2475 = vld [vmem:[#allocation4 + $0x170] sm:$0xf]
    %v2476 = vld [vmem:[#allocation4 + $0x174] sm:$0xff]
    %v2477 = vld [vmem:[#allocation4 + $0x17c] sm:$0xf]
    %s2478 = scalar_lea.vmem [#allocation7], 128
    %v2479 = vld [vmem:[%s2478] ss:$8 sm:$0x7]
    %v2480 = vpack.c.bf16 %v2412, %v2410
    %v2481 = vpack.c.bf16 %v2413, %v2411
    %v2483 = vlaneseq
    %v2484 = vshrl.u32 %v2483, 7
    %v2485 = vsub.s32 0, %v2484
    %v2486 = vrot.slane %v2479, %v2485
    %v2487 = vlaneseq
    %v2488 = vshrl.u32 %v2487, 7
    %v2489 = vsub.s32 1, %v2488
    %v2490 = vrot.slane %v2479, %v2489
    %v2491 = vlaneseq
    %v2492 = vshrl.u32 %v2491, 7
    %v2493 = vsub.s32 2, %v2492
    %v2494 = vrot.slane %v2479, %v2493
    %v2562 = vunpack.c.l.b16 %v2414
    %v2563 = vunpack.c.h.b16 %v2414
    %v2564 = vunpack.c.l.b16 %v2415
    %v2565 = vunpack.c.l.b16 %v2416
    %v2566 = vunpack.c.h.b16 %v2416
    %v2567 = vunpack.c.l.b16 %v2417
    %v2568 = vunpack.c.l.b16 %v2418
    %v2569 = vunpack.c.h.b16 %v2418
    %v2570 = vunpack.c.l.b16 %v2419
    %v2571 = vunpack.c.l.b16 %v2420
    %v2572 = vunpack.c.h.b16 %v2420
    %v2573 = vunpack.c.l.b16 %v2421
    %v2574 = vunpack.c.l.b16 %v2422
    %v2575 = vunpack.c.h.b16 %v2422
    %v2576 = vunpack.c.l.b16 %v2423
    %v2577 = vunpack.c.l.b16 %v2424
    %v2578 = vunpack.c.h.b16 %v2424
    %v2579 = vunpack.c.l.b16 %v2425
    %v2580 = vunpack.c.l.b16 %v2426
    %v2581 = vunpack.c.h.b16 %v2426
    %v2582 = vunpack.c.l.b16 %v2427
    %v2583 = vunpack.c.l.b16 %v2428
    %v2584 = vunpack.c.h.b16 %v2428
    %v2585 = vunpack.c.l.b16 %v2429
    %v2586 = vunpack.c.l.b16 %v2430
    %v2587 = vunpack.c.h.b16 %v2430
    %v2588 = vunpack.c.l.b16 %v2431
    %v2589 = vunpack.c.l.b16 %v2432
    %v2590 = vunpack.c.h.b16 %v2432
    %v2591 = vunpack.c.l.b16 %v2433
    %v2592 = vunpack.c.l.b16 %v2434
    %v2593 = vunpack.c.h.b16 %v2434
    %v2594 = vunpack.c.l.b16 %v2435
    %v2595 = vunpack.c.l.b16 %v2436
    %v2596 = vunpack.c.h.b16 %v2436
    %v2597 = vunpack.c.l.b16 %v2437
    %v2598 = vunpack.c.l.b16 %v2438
    %v2599 = vunpack.c.h.b16 %v2438
    %v2600 = vunpack.c.l.b16 %v2439
    %v2601 = vunpack.c.l.b16 %v2440
    %v2602 = vunpack.c.h.b16 %v2440
    %v2603 = vunpack.c.l.b16 %v2441
    %v2604 = vunpack.c.l.b16 %v2442
    %v2605 = vunpack.c.h.b16 %v2442
    %v2606 = vunpack.c.l.b16 %v2443
    %v2607 = vunpack.c.l.b16 %v2444
    %v2608 = vunpack.c.h.b16 %v2444
    %v2609 = vunpack.c.l.b16 %v2445
    %v2610 = vunpack.c.l.b16 %v2446
    %v2611 = vunpack.c.h.b16 %v2446
    %v2612 = vunpack.c.l.b16 %v2447
    %v2613 = vunpack.c.l.b16 %v2448
    %v2614 = vunpack.c.h.b16 %v2448
    %v2615 = vunpack.c.l.b16 %v2449
    %v2616 = vunpack.c.l.b16 %v2450
    %v2617 = vunpack.c.h.b16 %v2450
    %v2618 = vunpack.c.l.b16 %v2451
    %v2619 = vunpack.c.l.b16 %v2452
    %v2620 = vunpack.c.h.b16 %v2452
    %v2621 = vunpack.c.l.b16 %v2453
    %v2622 = vunpack.c.l.b16 %v2454
    %v2623 = vunpack.c.h.b16 %v2454
    %v2624 = vunpack.c.l.b16 %v2455
    %v2625 = vunpack.c.l.b16 %v2456
    %v2626 = vunpack.c.h.b16 %v2456
    %v2627 = vunpack.c.l.b16 %v2457
    %v2628 = vunpack.c.l.b16 %v2458
    %v2629 = vunpack.c.h.b16 %v2458
    %v2630 = vunpack.c.l.b16 %v2459
    %v2631 = vunpack.c.l.b16 %v2460
    %v2632 = vunpack.c.h.b16 %v2460
    %v2633 = vunpack.c.l.b16 %v2461
    %v2634 = vunpack.c.l.b16 %v2462
    %v2635 = vunpack.c.h.b16 %v2462
    %v2636 = vunpack.c.l.b16 %v2463
    %v2637 = vunpack.c.l.b16 %v2464
    %v2638 = vunpack.c.h.b16 %v2464
    %v2639 = vunpack.c.l.b16 %v2465
    %v2640 = vunpack.c.l.b16 %v2466
    %v2641 = vunpack.c.h.b16 %v2466
    %v2642 = vunpack.c.l.b16 %v2467
    %v2643 = vunpack.c.l.b16 %v2468
    %v2644 = vunpack.c.h.b16 %v2468
    %v2645 = vunpack.c.l.b16 %v2469
    %v2646 = vunpack.c.l.b16 %v2470
    %v2647 = vunpack.c.h.b16 %v2470
    %v2648 = vunpack.c.l.b16 %v2471
    %v2649 = vunpack.c.l.b16 %v2472
    %v2650 = vunpack.c.h.b16 %v2472
    %v2651 = vunpack.c.l.b16 %v2473
    %v2652 = vunpack.c.l.b16 %v2474
    %v2653 = vunpack.c.h.b16 %v2474
    %v2654 = vunpack.c.l.b16 %v2475
    %v2655 = vunpack.c.l.b16 %v2476
    %v2656 = vunpack.c.h.b16 %v2476
    %v2657 = vunpack.c.l.b16 %v2477
    %v2658 = vpack.c.b16 %v2565, %v2562
    %v2659 = vpack.c.b16 %v2566, %v2563
    %v2660 = vpack.c.b16 %v2567, %v2564
    %v2661 = vpack.c.b16 %v2571, %v2568
    %v2662 = vpack.c.b16 %v2572, %v2569
    %v2663 = vpack.c.b16 %v2573, %v2570
    %v2664 = vpack.c.b16 %v2577, %v2574
    %v2665 = vpack.c.b16 %v2578, %v2575
    %v2666 = vpack.c.b16 %v2579, %v2576
    %v2667 = vpack.c.b16 %v2583, %v2580
    %v2668 = vpack.c.b16 %v2584, %v2581
    %v2669 = vpack.c.b16 %v2585, %v2582
    %v2670 = vpack.c.b16 %v2589, %v2586
    %v2671 = vpack.c.b16 %v2590, %v2587
    %v2672 = vpack.c.b16 %v2591, %v2588
    %v2673 = vpack.c.b16 %v2595, %v2592
    %v2674 = vpack.c.b16 %v2596, %v2593
    %v2675 = vpack.c.b16 %v2597, %v2594
    %v2676 = vpack.c.b16 %v2601, %v2598
    %v2677 = vpack.c.b16 %v2602, %v2599
    %v2678 = vpack.c.b16 %v2603, %v2600
    %v2679 = vpack.c.b16 %v2607, %v2604
    %v2680 = vpack.c.b16 %v2608, %v2605
    %v2681 = vpack.c.b16 %v2609, %v2606
    %v2682 = vpack.c.b16 %v2613, %v2610
    %v2683 = vpack.c.b16 %v2614, %v2611
    %v2684 = vpack.c.b16 %v2615, %v2612
    %v2685 = vpack.c.b16 %v2619, %v2616
    %v2686 = vpack.c.b16 %v2620, %v2617
    %v2687 = vpack.c.b16 %v2621, %v2618
    %v2688 = vpack.c.b16 %v2625, %v2622
    %v2689 = vpack.c.b16 %v2626, %v2623
    %v2690 = vpack.c.b16 %v2627, %v2624
    %v2691 = vpack.c.b16 %v2631, %v2628
    %v2692 = vpack.c.b16 %v2632, %v2629
    %v2693 = vpack.c.b16 %v2633, %v2630
    %v2694 = vpack.c.b16 %v2637, %v2634
    %v2695 = vpack.c.b16 %v2638, %v2635
    %v2696 = vpack.c.b16 %v2639, %v2636
    %v2697 = vpack.c.b16 %v2643, %v2640
    %v2698 = vpack.c.b16 %v2644, %v2641
    %v2699 = vpack.c.b16 %v2645, %v2642
    %v2700 = vpack.c.b16 %v2649, %v2646
    %v2701 = vpack.c.b16 %v2650, %v2647
    %v2702 = vpack.c.b16 %v2651, %v2648
    %v2703 = vpack.c.b16 %v2655, %v2652
    %v2704 = vpack.c.b16 %v2656, %v2653
    %v2705 = vpack.c.b16 %v2657, %v2654
    %2754 = vmatprep.subr.bf16.mxu0 %v2680
    %2755 = vmatpush1.bf16.msra.mxu0 %v2679
    %2756 = vmatprep.subr.bf16.mxu0 %v2677
    %2757 = vmatpush1.bf16.msra.mxu0 %v2676
    %2758 = vmatprep.subr.bf16.mxu0 %v2674
    %2759 = vmatpush1.bf16.msra.mxu0 %v2673
    %2760 = vmatprep.subr.bf16.mxu0 %v2671
    %2761 = vmatpush1.bf16.msra.mxu0 %v2670
    %2762 = vmatprep.subr.bf16.mxu0 %v2668
    %2763 = vmatpush1.bf16.msra.mxu0 %v2667
    %2764 = vmatprep.subr.bf16.mxu0 %v2665
    %2765 = vmatpush1.bf16.msra.mxu0 %v2664
    %2766 = vmatprep.subr.bf16.mxu0 %v2662
    %2767 = vmatpush1.bf16.msra.mxu0 %v2661
    %2768 = vmatprep.subr.bf16.mxu0 %v2659
    %2769 = vmatpush1.bf16.msra.mxu0 %v2658
    %2770 = vmatprep.subr.bf16.mxu0 %v2704
    %2771 = vmatpush2.bf16.msra.mxu0 %v2703
    %2772 = vmatprep.subr.bf16.mxu0 %v2701
    %2773 = vmatpush2.bf16.msra.mxu0 %v2700
    %2774 = vmatprep.subr.bf16.mxu0 %v2698
    %2775 = vmatpush2.bf16.msra.mxu0 %v2697
    %2776 = vmatprep.subr.bf16.mxu0 %v2695
    %2777 = vmatpush2.bf16.msra.mxu0 %v2694
    %2778 = vmatprep.subr.bf16.mxu0 %v2692
    %2779 = vmatpush2.bf16.msra.mxu0 %v2691
    %2780 = vmatprep.subr.bf16.mxu0 %v2689
    %2781 = vmatpush2.bf16.msra.mxu0 %v2688
    %2782 = vmatprep.subr.bf16.mxu0 %v2686
    %2783 = vmatpush2.bf16.msra.mxu0 %v2685
    %2784 = vmatprep.subr.bf16.mxu0 %v2683
    %2785 = vmatpush2.bf16.msra.mxu0 %v2682
    %2786 = vmatprep.mubr.bf16.mxu0 %v2481
    %2787 = vmatmul.mubr.bf16.gmra.mxu0 %v2480
    %v2788 = vpop.f32.mrf.mxu0
    %v2789 = vadd.f32 %v2486, %v2788
    %v2790 = vpop.f32.mrf.mxu0
    %v2791 = vadd.f32 %v2490, %v2790
    %v2792 = vpop.f32.mrf.mxu0
    %v2793 = vadd.f32 %v2486, %v2792
    %v2794 = vpop.f32.mrf.mxu0
    %v2795 = vadd.f32 %v2490, %v2794
    %2796 = vdwg.mxu0
    %2797 = vmatprep.subr.bf16.mxu0 0
    %2798 = vmatpush1.bf16.msra.mxu0 %v2681
    %2799 = vmatprep.subr.bf16.mxu0 0
    %2800 = vmatpush1.bf16.msra.mxu0 %v2678
    %2801 = vmatprep.subr.bf16.mxu0 0
    %2802 = vmatpush1.bf16.msra.mxu0 %v2675
    %2803 = vmatprep.subr.bf16.mxu0 0
    %2804 = vmatpush1.bf16.msra.mxu0 %v2672
    %2805 = vmatprep.subr.bf16.mxu0 0
    %2806 = vmatpush1.bf16.msra.mxu0 %v2669
    %2807 = vmatprep.subr.bf16.mxu0 0
    %2808 = vmatpush1.bf16.msra.mxu0 %v2666
    %2809 = vmatprep.subr.bf16.mxu0 0
    %2810 = vmatpush1.bf16.msra.mxu0 %v2663
    %2811 = vmatprep.subr.bf16.mxu0 0
    %2812 = vmatpush1.bf16.msra.mxu0 %v2660
    %2813 = vmatprep.subr.bf16.mxu0 0
    %2814 = vmatpush2.bf16.msra.mxu0 %v2705
    %2815 = vmatprep.subr.bf16.mxu0 0
    %2816 = vmatpush2.bf16.msra.mxu0 %v2702
    %2817 = vmatprep.subr.bf16.mxu0 0
    %2818 = vmatpush2.bf16.msra.mxu0 %v2699
    %2819 = vmatprep.subr.bf16.mxu0 0
    %2820 = vmatpush2.bf16.msra.mxu0 %v2696
    %2821 = vmatprep.subr.bf16.mxu0 0
    %2822 = vmatpush2.bf16.msra.mxu0 %v2693
    %2823 = vmatprep.subr.bf16.mxu0 0
    %2824 = vmatpush2.bf16.msra.mxu0 %v2690
    %2825 = vmatprep.subr.bf16.mxu0 0
    %2826 = vmatpush2.bf16.msra.mxu0 %v2687
    %2827 = vmatprep.subr.bf16.mxu0 0
    %2828 = vmatpush2.bf16.msra.mxu0 %v2684
    %2829 = vmatprep.mubr.bf16.mxu0 %v2481
    %2830 = vmatmul.mubr.bf16.gmra.mxu0 %v2480
    %v2831 = vpop.f32.mrf.mxu0
    %v2832 = vadd.f32 %v2494, %v2831
    %v2833 = vpop.f32.mrf.mxu0
    %v2834 = vpop.f32.mrf.mxu0
    %v2835 = vadd.f32 %v2494, %v2834
    %v2836 = vpop.f32.mrf.mxu0
    %2837 = vdwg.mxu0
    %v2838 = vmax.f32 %v2789, 0.0
    %v2839 = vmax.f32 %v2791, 0.0
    %v2840 = vmax.f32 %v2832, 0.0
    %v2841 = vmax.f32 %v2793, 0.0
    %v2842 = vmax.f32 %v2795, 0.0
    %v2843 = vmax.f32 %v2835, 0.0
    %v2844 = vld [vmem:[#allocation2 + $0x40] sm:$0xf]
    %v2845 = vld [vmem:[#allocation2 + $0x44] sm:$0xf]
    %v2846 = vld [vmem:[#allocation2 + $0x48] sm:$0xf]
    %v2847 = vld [vmem:[#allocation2 + $0x4c] sm:$0xf]
    %v2848 = vld [vmem:[#allocation2 + $0x50] sm:$0xf]
    %v2849 = vld [vmem:[#allocation2 + $0x54] sm:$0xf]
    %v2850 = vld [vmem:[#allocation2 + $0x58] sm:$0xf]
    %v2851 = vld [vmem:[#allocation2 + $0x5c] sm:$0xf]
    %v2852 = vld [vmem:[#allocation2 + $0x60] sm:$0xf]
    %v2853 = vld [vmem:[#allocation2 + $0x64] sm:$0xf]
    %v2854 = vld [vmem:[#allocation2 + $0x68] sm:$0xf]
    %v2855 = vld [vmem:[#allocation2 + $0x6c] sm:$0xf]
    %v2856 = vld [vmem:[#allocation2 + $0x70] sm:$0xf]
    %v2857 = vld [vmem:[#allocation2 + $0x74] sm:$0xf]
    %v2858 = vld [vmem:[#allocation2 + $0x78] sm:$0xf]
    %v2859 = vld [vmem:[#allocation2 + $0x7c] sm:$0xf]
    %v2860 = vld [vmem:[#allocation2 + $0x80] sm:$0xf]
    %v2861 = vld [vmem:[#allocation2 + $0x84] sm:$0xf]
    %v2862 = vld [vmem:[#allocation2 + $0x88] sm:$0xf]
    %v2863 = vld [vmem:[#allocation2 + $0x8c] sm:$0xf]
    %v2864 = vld [vmem:[#allocation2 + $0x90] sm:$0xf]
    %v2865 = vld [vmem:[#allocation2 + $0x94] sm:$0xf]
    %v2866 = vld [vmem:[#allocation2 + $0x98] sm:$0xf]
    %v2867 = vld [vmem:[#allocation2 + $0x9c] sm:$0xf]
    %v2868 = vld [vmem:[#allocation2 + $0xa0] sm:$0xf]
    %v2869 = vld [vmem:[#allocation2 + $0xa4] sm:$0xf]
    %v2870 = vld [vmem:[#allocation2 + $0xa8] sm:$0xf]
    %v2871 = vld [vmem:[#allocation2 + $0xac] sm:$0xf]
    %v2872 = vld [vmem:[#allocation2 + $0xb0] sm:$0xf]
    %v2873 = vld [vmem:[#allocation2 + $0xb4] sm:$0xf]
    %v2874 = vld [vmem:[#allocation2 + $0xb8] sm:$0xf]
    %v2875 = vld [vmem:[#allocation2 + $0xbc] sm:$0xf]
    %v2876 = vld [vmem:[#allocation2 + $0xc0] sm:$0xf]
    %v2877 = vld [vmem:[#allocation2 + $0xc4] sm:$0xf]
    %v2878 = vld [vmem:[#allocation2 + $0xc8] sm:$0xf]
    %v2879 = vld [vmem:[#allocation2 + $0xcc] sm:$0xf]
    %v2880 = vld [vmem:[#allocation2 + $0xd0] sm:$0xf]
    %v2881 = vld [vmem:[#allocation2 + $0xd4] sm:$0xf]
    %v2882 = vld [vmem:[#allocation2 + $0xd8] sm:$0xf]
    %v2883 = vld [vmem:[#allocation2 + $0xdc] sm:$0xf]
    %v2884 = vld [vmem:[#allocation2 + $0xe0] sm:$0xf]
    %v2885 = vld [vmem:[#allocation2 + $0xe4] sm:$0xf]
    %v2886 = vld [vmem:[#allocation2 + $0xe8] sm:$0xf]
    %v2887 = vld [vmem:[#allocation2 + $0xec] sm:$0xf]
    %v2888 = vld [vmem:[#allocation2 + $0xf0] sm:$0xf]
    %v2889 = vld [vmem:[#allocation2 + $0xf4] sm:$0xf]
    %v2890 = vld [vmem:[#allocation2 + $0xf8] sm:$0xf]
    %v2891 = vld [vmem:[#allocation2 + $0xfc] sm:$0xf]
    %v2892 = vld [vmem:[#allocation7 + $0xa0] ss:$0 sm:$0xff]
    %v2893 = vpack.c.bf16 %v2841, %v2838
    %v2894 = vpack.c.bf16 %v2842, %v2839
    %v2895 = vpack.c.bf16 %v2843, %v2840
    %v2944 = vunpack.c.l.b16 %v2844
    %v2945 = vunpack.c.l.b16 %v2845
    %v2946 = vunpack.c.l.b16 %v2846
    %v2947 = vunpack.c.l.b16 %v2847
    %v2948 = vunpack.c.l.b16 %v2848
    %v2949 = vunpack.c.l.b16 %v2849
    %v2950 = vunpack.c.l.b16 %v2850
    %v2951 = vunpack.c.l.b16 %v2851
    %v2952 = vunpack.c.l.b16 %v2852
    %v2953 = vunpack.c.l.b16 %v2853
    %v2954 = vunpack.c.l.b16 %v2854
    %v2955 = vunpack.c.l.b16 %v2855
    %v2956 = vunpack.c.l.b16 %v2856
    %v2957 = vunpack.c.l.b16 %v2857
    %v2958 = vunpack.c.l.b16 %v2858
    %v2959 = vunpack.c.l.b16 %v2859
    %v2960 = vunpack.c.l.b16 %v2860
    %v2961 = vunpack.c.l.b16 %v2861
    %v2962 = vunpack.c.l.b16 %v2862
    %v2963 = vunpack.c.l.b16 %v2863
    %v2964 = vunpack.c.l.b16 %v2864
    %v2965 = vunpack.c.l.b16 %v2865
    %v2966 = vunpack.c.l.b16 %v2866
    %v2967 = vunpack.c.l.b16 %v2867
    %v2968 = vunpack.c.l.b16 %v2868
    %v2969 = vunpack.c.l.b16 %v2869
    %v2970 = vunpack.c.l.b16 %v2870
    %v2971 = vunpack.c.l.b16 %v2871
    %v2972 = vunpack.c.l.b16 %v2872
    %v2973 = vunpack.c.l.b16 %v2873
    %v2974 = vunpack.c.l.b16 %v2874
    %v2975 = vunpack.c.l.b16 %v2875
    %v2976 = vunpack.c.l.b16 %v2876
    %v2977 = vunpack.c.l.b16 %v2877
    %v2978 = vunpack.c.l.b16 %v2878
    %v2979 = vunpack.c.l.b16 %v2879
    %v2980 = vunpack.c.l.b16 %v2880
    %v2981 = vunpack.c.l.b16 %v2881
    %v2982 = vunpack.c.l.b16 %v2882
    %v2983 = vunpack.c.l.b16 %v2883
    %v2984 = vunpack.c.l.b16 %v2884
    %v2985 = vunpack.c.l.b16 %v2885
    %v2986 = vunpack.c.l.b16 %v2886
    %v2987 = vunpack.c.l.b16 %v2887
    %v2988 = vunpack.c.l.b16 %v2888
    %v2989 = vunpack.c.l.b16 %v2889
    %v2990 = vunpack.c.l.b16 %v2890
    %v2991 = vunpack.c.l.b16 %v2891
    %v2992 = vpack.c.b16 %v2945, %v2944
    %v2993 = vpack.c.b16 %v2947, %v2946
    %v2994 = vpack.c.b16 %v2949, %v2948
    %v2995 = vpack.c.b16 %v2951, %v2950
    %v2996 = vpack.c.b16 %v2953, %v2952
    %v2997 = vpack.c.b16 %v2955, %v2954
    %v2998 = vpack.c.b16 %v2957, %v2956
    %v2999 = vpack.c.b16 %v2959, %v2958
    %v3000 = vpack.c.b16 %v2961, %v2960
    %v3001 = vpack.c.b16 %v2963, %v2962
    %v3002 = vpack.c.b16 %v2965, %v2964
    %v3003 = vpack.c.b16 %v2967, %v2966
    %v3004 = vpack.c.b16 %v2969, %v2968
    %v3005 = vpack.c.b16 %v2971, %v2970
    %v3006 = vpack.c.b16 %v2973, %v2972
    %v3007 = vpack.c.b16 %v2975, %v2974
    %v3008 = vpack.c.b16 %v2977, %v2976
    %v3009 = vpack.c.b16 %v2979, %v2978
    %v3010 = vpack.c.b16 %v2981, %v2980
    %v3011 = vpack.c.b16 %v2983, %v2982
    %v3012 = vpack.c.b16 %v2985, %v2984
    %v3013 = vpack.c.b16 %v2987, %v2986
    %v3014 = vpack.c.b16 %v2989, %v2988
    %v3015 = vpack.c.b16 %v2991, %v2990
    %3040 = vmatprep.subr.bf16.mxu0 0
    %3041 = vmatpush1.bf16.msra.mxu0 %v2999
    %3042 = vmatprep.subr.bf16.mxu0 0
    %3043 = vmatpush1.bf16.msra.mxu0 %v2998
    %3044 = vmatprep.subr.bf16.mxu0 0
    %3045 = vmatpush1.bf16.msra.mxu0 %v2997
    %3046 = vmatprep.subr.bf16.mxu0 0
    %3047 = vmatpush1.bf16.msra.mxu0 %v2996
    %3048 = vmatprep.subr.bf16.mxu0 0
    %3049 = vmatpush1.bf16.msra.mxu0 %v2995
    %3050 = vmatprep.subr.bf16.mxu0 0
    %3051 = vmatpush1.bf16.msra.mxu0 %v2994
    %3052 = vmatprep.subr.bf16.mxu0 0
    %3053 = vmatpush1.bf16.msra.mxu0 %v2993
    %3054 = vmatprep.subr.bf16.mxu0 0
    %3055 = vmatpush1.bf16.msra.mxu0 %v2992
    %3056 = vmatprep.subr.bf16.mxu0 0
    %3057 = vmatpush2.bf16.msra.mxu0 %v3007
    %3058 = vmatprep.subr.bf16.mxu0 0
    %3059 = vmatpush2.bf16.msra.mxu0 %v3006
    %3060 = vmatprep.subr.bf16.mxu0 0
    %3061 = vmatpush2.bf16.msra.mxu0 %v3005
    %3062 = vmatprep.subr.bf16.mxu0 0
    %3063 = vmatpush2.bf16.msra.mxu0 %v3004
    %3064 = vmatprep.subr.bf16.mxu0 0
    %3065 = vmatpush2.bf16.msra.mxu0 %v3003
    %3066 = vmatprep.subr.bf16.mxu0 0
    %3067 = vmatpush2.bf16.msra.mxu0 %v3002
    %3068 = vmatprep.subr.bf16.mxu0 0
    %3069 = vmatpush2.bf16.msra.mxu0 %v3001
    %3070 = vmatprep.subr.bf16.mxu0 0
    %3071 = vmatpush2.bf16.msra.mxu0 %v3000
    %3072 = vmatprep.mubr.bf16.mxu0 %v2894
    %3073 = vmatmul.mubr.bf16.gmra.mxu0 %v2893
    %v3074 = vpop.f32.mrf.mxu0
    %v3075 = vadd.f32 %v2892, %v3074
    %v3076 = vpop.f32.mrf.mxu0
    %v3077 = vpop.f32.mrf.mxu0
    %v3078 = vadd.f32 %v2892, %v3077
    %v3079 = vpop.f32.mrf.mxu0
    %3080 = vdwg.mxu0
    %3081 = vmatprep.subr.bf16.mxu0 0
    %3082 = vmatpush1.bf16.msra.mxu0 %v3015
    %3083 = vmatprep.subr.bf16.mxu0 0
    %3084 = vmatpush1.bf16.msra.mxu0 %v3014
    %3085 = vmatprep.subr.bf16.mxu0 0
    %3086 = vmatpush1.bf16.msra.mxu0 %v3013
    %3087 = vmatprep.subr.bf16.mxu0 0
    %3088 = vmatpush1.bf16.msra.mxu0 %v3012
    %3089 = vmatprep.subr.bf16.mxu0 0
    %3090 = vmatpush1.bf16.msra.mxu0 %v3011
    %3091 = vmatprep.subr.bf16.mxu0 0
    %3092 = vmatpush1.bf16.msra.mxu0 %v3010
    %3093 = vmatprep.subr.bf16.mxu0 0
    %3094 = vmatpush1.bf16.msra.mxu0 %v3009
    %3095 = vmatprep.subr.bf16.mxu0 0
    %3096 = vmatpush1.bf16.msra.mxu0 %v3008
    %3097 = vmatprep.subr.bf16.mxu0 0
    %3098 = vmatpush2.bf16.msra.mxu0 0
    %3099 = vmatprep.subr.bf16.mxu0 0
    %3100 = vmatpush2.bf16.msra.mxu0 0
    %3101 = vmatprep.subr.bf16.mxu0 0
    %3102 = vmatpush2.bf16.msra.mxu0 0
    %3103 = vmatprep.subr.bf16.mxu0 0
    %3104 = vmatpush2.bf16.msra.mxu0 0
    %3105 = vmatprep.subr.bf16.mxu0 0
    %3106 = vmatpush2.bf16.msra.mxu0 0
    %3107 = vmatprep.subr.bf16.mxu0 0
    %3108 = vmatpush2.bf16.msra.mxu0 0
    %3109 = vmatprep.subr.bf16.mxu0 0
    %3110 = vmatpush2.bf16.msra.mxu0 0
    %3111 = vmatprep.subr.bf16.mxu0 0
    %3112 = vmatpush2.bf16.msra.mxu0 0
    %3113 = vmatprep.mubr.bf16.mxu0 0
    %3114 = vmatmul.mubr.bf16.gmra.mxu0 %v2895
    %v3115 = vpop.f32.mrf.mxu0
    %v3116 = vadd.f32 %v3075, %v3115
    %v3117 = vpop.f32.mrf.mxu0
    %v3118 = vpop.f32.mrf.mxu0
    %v3119 = vadd.f32 %v3078, %v3118
    %v3120 = vpop.f32.mrf.mxu0
    %3121 = vdwg.mxu0
    %v3122 = vmax.f32 %v3116, 0.0
    %v3123 = vmax.f32 %v3119, 0.0
    %v3124 = vld [vmem:[%s5 + $0x300] sm:$0xff]
    %v3125 = vld [vmem:[%s5 + $0x308] sm:$0xff]
    %v3126 = vld [vmem:[%s5 + $0x310] sm:$0xff]
    %v3127 = vld [vmem:[%s5 + $0x318] sm:$0xff]
    %v3128 = vld [vmem:[%s5 + $0x320] sm:$0xff]
    %v3129 = vld [vmem:[%s5 + $0x328] sm:$0xff]
    %v3130 = vld [vmem:[%s5 + $0x330] sm:$0xff]
    %v3131 = vld [vmem:[%s5 + $0x338] sm:$0xff]
    %v3132 = vld [vmem:[%s5 + $0x340] sm:$0xff]
    %v3133 = vld [vmem:[%s5 + $0x348] sm:$0xff]
    %v3134 = vld [vmem:[%s5 + $0x350] sm:$0xff]
    %v3135 = vld [vmem:[%s5 + $0x358] sm:$0xff]
    %v3136 = vld [vmem:[%s5 + $0x360] sm:$0xff]
    %v3137 = vld [vmem:[%s5 + $0x368] sm:$0xff]
    %v3138 = vld [vmem:[%s5 + $0x370] sm:$0xff]
    %v3139 = vld [vmem:[%s5 + $0x378] sm:$0xff]
    %s3140 = scalar_lea.vmem [#allocation7], 192
    %v3141 = vld [vmem:[%s3140] ss:$8 sm:$0x3]
    %v3142 = vpack.c.bf16 %v3123, %v3122
    %v3144 = vlaneseq
    %v3145 = vshrl.u32 %v3144, 7
    %v3146 = vsub.s32 0, %v3145
    %v3147 = vrot.slane %v3141, %v3146
    %v3148 = vlaneseq
    %v3149 = vshrl.u32 %v3148, 7
    %v3150 = vsub.s32 1, %v3149
    %v3151 = vrot.slane %v3141, %v3150
    %v3170 = vunpack.c.l.b16 %v3124
    %v3171 = vunpack.c.h.b16 %v3124
    %v3172 = vunpack.c.l.b16 %v3125
    %v3173 = vunpack.c.h.b16 %v3125
    %v3174 = vunpack.c.l.b16 %v3126
    %v3175 = vunpack.c.h.b16 %v3126
    %v3176 = vunpack.c.l.b16 %v3127
    %v3177 = vunpack.c.h.b16 %v3127
    %v3178 = vunpack.c.l.b16 %v3128
    %v3179 = vunpack.c.h.b16 %v3128
    %v3180 = vunpack.c.l.b16 %v3129
    %v3181 = vunpack.c.h.b16 %v3129
    %v3182 = vunpack.c.l.b16 %v3130
    %v3183 = vunpack.c.h.b16 %v3130
    %v3184 = vunpack.c.l.b16 %v3131
    %v3185 = vunpack.c.h.b16 %v3131
    %v3186 = vunpack.c.l.b16 %v3132
    %v3187 = vunpack.c.h.b16 %v3132
    %v3188 = vunpack.c.l.b16 %v3133
    %v3189 = vunpack.c.h.b16 %v3133
    %v3190 = vunpack.c.l.b16 %v3134
    %v3191 = vunpack.c.h.b16 %v3134
    %v3192 = vunpack.c.l.b16 %v3135
    %v3193 = vunpack.c.h.b16 %v3135
    %v3194 = vunpack.c.l.b16 %v3136
    %v3195 = vunpack.c.h.b16 %v3136
    %v3196 = vunpack.c.l.b16 %v3137
    %v3197 = vunpack.c.h.b16 %v3137
    %v3198 = vunpack.c.l.b16 %v3138
    %v3199 = vunpack.c.h.b16 %v3138
    %v3200 = vunpack.c.l.b16 %v3139
    %v3201 = vunpack.c.h.b16 %v3139
    %v3202 = vpack.c.b16 %v3172, %v3170
    %v3203 = vpack.c.b16 %v3173, %v3171
    %v3204 = vpack.c.b16 %v3176, %v3174
    %v3205 = vpack.c.b16 %v3177, %v3175
    %v3206 = vpack.c.b16 %v3180, %v3178
    %v3207 = vpack.c.b16 %v3181, %v3179
    %v3208 = vpack.c.b16 %v3184, %v3182
    %v3209 = vpack.c.b16 %v3185, %v3183
    %v3210 = vpack.c.b16 %v3188, %v3186
    %v3211 = vpack.c.b16 %v3189, %v3187
    %v3212 = vpack.c.b16 %v3192, %v3190
    %v3213 = vpack.c.b16 %v3193, %v3191
    %v3214 = vpack.c.b16 %v3196, %v3194
    %v3215 = vpack.c.b16 %v3197, %v3195
    %v3216 = vpack.c.b16 %v3200, %v3198
    %v3217 = vpack.c.b16 %v3201, %v3199
    %3234 = vmatprep.subr.bf16.mxu0 %v3217
    %3235 = vmatpush1.bf16.msra.mxu0 %v3216
    %3236 = vmatprep.subr.bf16.mxu0 %v3215
    %3237 = vmatpush1.bf16.msra.mxu0 %v3214
    %3238 = vmatprep.subr.bf16.mxu0 %v3213
    %3239 = vmatpush1.bf16.msra.mxu0 %v3212
    %3240 = vmatprep.subr.bf16.mxu0 %v3211
    %3241 = vmatpush1.bf16.msra.mxu0 %v3210
    %3242 = vmatprep.subr.bf16.mxu0 %v3209
    %3243 = vmatpush1.bf16.msra.mxu0 %v3208
    %3244 = vmatprep.subr.bf16.mxu0 %v3207
    %3245 = vmatpush1.bf16.msra.mxu0 %v3206
    %3246 = vmatprep.subr.bf16.mxu0 %v3205
    %3247 = vmatpush1.bf16.msra.mxu0 %v3204
    %3248 = vmatprep.subr.bf16.mxu0 %v3203
    %3249 = vmatpush1.bf16.msra.mxu0 %v3202
    %3250 = vmatprep.subr.bf16.mxu0 0
    %3251 = vmatpush2.bf16.msra.mxu0 0
    %3252 = vmatprep.subr.bf16.mxu0 0
    %3253 = vmatpush2.bf16.msra.mxu0 0
    %3254 = vmatprep.subr.bf16.mxu0 0
    %3255 = vmatpush2.bf16.msra.mxu0 0
    %3256 = vmatprep.subr.bf16.mxu0 0
    %3257 = vmatpush2.bf16.msra.mxu0 0
    %3258 = vmatprep.subr.bf16.mxu0 0
    %3259 = vmatpush2.bf16.msra.mxu0 0
    %3260 = vmatprep.subr.bf16.mxu0 0
    %3261 = vmatpush2.bf16.msra.mxu0 0
    %3262 = vmatprep.subr.bf16.mxu0 0
    %3263 = vmatpush2.bf16.msra.mxu0 0
    %3264 = vmatprep.subr.bf16.mxu0 0
    %3265 = vmatpush2.bf16.msra.mxu0 0
    %3266 = vmatprep.mubr.bf16.mxu0 0
    %3267 = vmatmul.mubr.bf16.gmra.mxu0 %v3142
    %v3268 = vpop.f32.mrf.mxu0
    %v3269 = vadd.f32 %v3147, %v3268
    %v3270 = vpop.f32.mrf.mxu0
    %v3271 = vadd.f32 %v3151, %v3270
    %v3272 = vpop.f32.mrf.mxu0
    %v3273 = vadd.f32 %v3147, %v3272
    %v3274 = vpop.f32.mrf.mxu0
    %v3275 = vadd.f32 %v3151, %v3274
    %3276 = vdwg.mxu0
    %v3277 = vmax.f32 %v3269, 0.0
    %v3278 = vmax.f32 %v3271, 0.0
    %v3279 = vmax.f32 %v3273, 0.0
    %v3280 = vmax.f32 %v3275, 0.0
    %v3281 = vld [vmem:[#allocation2 + $0x100] sm:$0xf]
    %v3282 = vld [vmem:[#allocation2 + $0x104] sm:$0xf]
    %v3283 = vld [vmem:[#allocation2 + $0x108] sm:$0xf]
    %v3284 = vld [vmem:[#allocation2 + $0x10c] sm:$0xf]
    %v3285 = vld [vmem:[#allocation2 + $0x110] sm:$0xf]
    %v3286 = vld [vmem:[#allocation2 + $0x114] sm:$0xf]
    %v3287 = vld [vmem:[#allocation2 + $0x118] sm:$0xf]
    %v3288 = vld [vmem:[#allocation2 + $0x11c] sm:$0xf]
    %v3289 = vld [vmem:[#allocation2 + $0x120] sm:$0xf]
    %v3290 = vld [vmem:[#allocation2 + $0x124] sm:$0xf]
    %v3291 = vld [vmem:[#allocation2 + $0x128] sm:$0xf]
    %v3292 = vld [vmem:[#allocation2 + $0x12c] sm:$0xf]
    %v3293 = vld [vmem:[#allocation2 + $0x130] sm:$0xf]
    %v3294 = vld [vmem:[#allocation2 + $0x134] sm:$0xf]
    %v3295 = vld [vmem:[#allocation2 + $0x138] sm:$0xf]
    %v3296 = vld [vmem:[#allocation2 + $0x13c] sm:$0xf]
    %v3297 = vld [vmem:[#allocation2 + $0x140] sm:$0xf]
    %v3298 = vld [vmem:[#allocation2 + $0x144] sm:$0xf]
    %v3299 = vld [vmem:[#allocation2 + $0x148] sm:$0xf]
    %v3300 = vld [vmem:[#allocation2 + $0x14c] sm:$0xf]
    %v3301 = vld [vmem:[#allocation2 + $0x150] sm:$0xf]
    %v3302 = vld [vmem:[#allocation2 + $0x154] sm:$0xf]
    %v3303 = vld [vmem:[#allocation2 + $0x158] sm:$0xf]
    %v3304 = vld [vmem:[#allocation2 + $0x15c] sm:$0xf]
    %v3305 = vld [vmem:[#allocation2 + $0x160] sm:$0xf]
    %v3306 = vld [vmem:[#allocation2 + $0x164] sm:$0xf]
    %v3307 = vld [vmem:[#allocation2 + $0x168] sm:$0xf]
    %v3308 = vld [vmem:[#allocation2 + $0x16c] sm:$0xf]
    %v3309 = vld [vmem:[#allocation2 + $0x170] sm:$0xf]
    %v3310 = vld [vmem:[#allocation2 + $0x174] sm:$0xf]
    %v3311 = vld [vmem:[#allocation2 + $0x178] sm:$0xf]
    %v3312 = vld [vmem:[#allocation2 + $0x17c] sm:$0xf]
    %v3313 = vld [vmem:[#allocation7 + $0xe0] ss:$0 sm:$0xff]
    %v3314 = vpack.c.bf16 %v3279, %v3277
    %v3315 = vpack.c.bf16 %v3280, %v3278
    %v3348 = vunpack.c.l.b16 %v3281
    %v3349 = vunpack.c.l.b16 %v3282
    %v3350 = vunpack.c.l.b16 %v3283
    %v3351 = vunpack.c.l.b16 %v3284
    %v3352 = vunpack.c.l.b16 %v3285
    %v3353 = vunpack.c.l.b16 %v3286
    %v3354 = vunpack.c.l.b16 %v3287
    %v3355 = vunpack.c.l.b16 %v3288
    %v3356 = vunpack.c.l.b16 %v3289
    %v3357 = vunpack.c.l.b16 %v3290
    %v3358 = vunpack.c.l.b16 %v3291
    %v3359 = vunpack.c.l.b16 %v3292
    %v3360 = vunpack.c.l.b16 %v3293
    %v3361 = vunpack.c.l.b16 %v3294
    %v3362 = vunpack.c.l.b16 %v3295
    %v3363 = vunpack.c.l.b16 %v3296
    %v3364 = vunpack.c.l.b16 %v3297
    %v3365 = vunpack.c.l.b16 %v3298
    %v3366 = vunpack.c.l.b16 %v3299
    %v3367 = vunpack.c.l.b16 %v3300
    %v3368 = vunpack.c.l.b16 %v3301
    %v3369 = vunpack.c.l.b16 %v3302
    %v3370 = vunpack.c.l.b16 %v3303
    %v3371 = vunpack.c.l.b16 %v3304
    %v3372 = vunpack.c.l.b16 %v3305
    %v3373 = vunpack.c.l.b16 %v3306
    %v3374 = vunpack.c.l.b16 %v3307
    %v3375 = vunpack.c.l.b16 %v3308
    %v3376 = vunpack.c.l.b16 %v3309
    %v3377 = vunpack.c.l.b16 %v3310
    %v3378 = vunpack.c.l.b16 %v3311
    %v3379 = vunpack.c.l.b16 %v3312
    %v3380 = vpack.c.b16 %v3349, %v3348
    %v3381 = vpack.c.b16 %v3351, %v3350
    %v3382 = vpack.c.b16 %v3353, %v3352
    %v3383 = vpack.c.b16 %v3355, %v3354
    %v3384 = vpack.c.b16 %v3357, %v3356
    %v3385 = vpack.c.b16 %v3359, %v3358
    %v3386 = vpack.c.b16 %v3361, %v3360
    %v3387 = vpack.c.b16 %v3363, %v3362
    %v3388 = vpack.c.b16 %v3365, %v3364
    %v3389 = vpack.c.b16 %v3367, %v3366
    %v3390 = vpack.c.b16 %v3369, %v3368
    %v3391 = vpack.c.b16 %v3371, %v3370
    %v3392 = vpack.c.b16 %v3373, %v3372
    %v3393 = vpack.c.b16 %v3375, %v3374
    %v3394 = vpack.c.b16 %v3377, %v3376
    %v3395 = vpack.c.b16 %v3379, %v3378
    %3412 = vmatprep.subr.bf16.mxu0 0
    %3413 = vmatpush1.bf16.msra.mxu0 %v3387
    %3414 = vmatprep.subr.bf16.mxu0 0
    %3415 = vmatpush1.bf16.msra.mxu0 %v3386
    %3416 = vmatprep.subr.bf16.mxu0 0
    %3417 = vmatpush1.bf16.msra.mxu0 %v3385
    %3418 = vmatprep.subr.bf16.mxu0 0
    %3419 = vmatpush1.bf16.msra.mxu0 %v3384
    %3420 = vmatprep.subr.bf16.mxu0 0
    %3421 = vmatpush1.bf16.msra.mxu0 %v3383
    %3422 = vmatprep.subr.bf16.mxu0 0
    %3423 = vmatpush1.bf16.msra.mxu0 %v3382
    %3424 = vmatprep.subr.bf16.mxu0 0
    %3425 = vmatpush1.bf16.msra.mxu0 %v3381
    %3426 = vmatprep.subr.bf16.mxu0 0
    %3427 = vmatpush1.bf16.msra.mxu0 %v3380
    %3428 = vmatprep.subr.bf16.mxu0 0
    %3429 = vmatpush2.bf16.msra.mxu0 %v3395
    %3430 = vmatprep.subr.bf16.mxu0 0
    %3431 = vmatpush2.bf16.msra.mxu0 %v3394
    %3432 = vmatprep.subr.bf16.mxu0 0
    %3433 = vmatpush2.bf16.msra.mxu0 %v3393
    %3434 = vmatprep.subr.bf16.mxu0 0
    %3435 = vmatpush2.bf16.msra.mxu0 %v3392
    %3436 = vmatprep.subr.bf16.mxu0 0
    %3437 = vmatpush2.bf16.msra.mxu0 %v3391
    %3438 = vmatprep.subr.bf16.mxu0 0
    %3439 = vmatpush2.bf16.msra.mxu0 %v3390
    %3440 = vmatprep.subr.bf16.mxu0 0
    %3441 = vmatpush2.bf16.msra.mxu0 %v3389
    %3442 = vmatprep.subr.bf16.mxu0 0
    %3443 = vmatpush2.bf16.msra.mxu0 %v3388
    %3444 = vmatprep.mubr.bf16.mxu0 %v3315
    %3445 = vmatmul.mubr.bf16.gmra.mxu0 %v3314
    %v3446 = vpop.f32.mrf.mxu0
    %v3447 = vadd.f32 %v3313, %v3446
    %v3448 = vpop.f32.mrf.mxu0
    %v3449 = vpop.f32.mrf.mxu0
    %v3450 = vadd.f32 %v3313, %v3449
    %v3451 = vpop.f32.mrf.mxu0
    %3452 = vdwg.mxu0
    %v3453 = vmax.f32 %v3447, 0.0
    %v3454 = vmax.f32 %v3450, 0.0
    %v3455 = vld [vmem:[#allocation2 + $0x180] sm:$0xf]
    %v3456 = vld [vmem:[#allocation2 + $0x184] sm:$0xf]
    %v3457 = vld [vmem:[#allocation2 + $0x188] sm:$0xf]
    %v3458 = vld [vmem:[#allocation2 + $0x18c] sm:$0xf]
    %v3459 = vld [vmem:[#allocation2 + $0x190] sm:$0xf]
    %v3460 = vld [vmem:[#allocation2 + $0x194] sm:$0xf]
    %v3461 = vld [vmem:[#allocation2 + $0x198] sm:$0xf]
    %v3462 = vld [vmem:[#allocation2 + $0x19c] sm:$0xf]
    %v3463 = vld [vmem:[#allocation2 + $0x1a0] sm:$0xf]
    %v3464 = vld [vmem:[#allocation2 + $0x1a4] sm:$0xf]
    %v3465 = vld [vmem:[#allocation2 + $0x1a8] sm:$0xf]
    %v3466 = vld [vmem:[#allocation2 + $0x1ac] sm:$0xf]
    %v3467 = vld [vmem:[#allocation2 + $0x1b0] sm:$0xf]
    %v3468 = vld [vmem:[#allocation2 + $0x1b4] sm:$0xf]
    %v3469 = vld [vmem:[#allocation2 + $0x1b8] sm:$0xf]
    %v3470 = vld [vmem:[#allocation2 + $0x1bc] sm:$0xf]
    %v3471 = vld [vmem:[#allocation7 + $0x100] ss:$0 sm:$0xff]
    %v3472 = vpack.c.bf16 %v3454, %v3453
    %v3489 = vunpack.c.l.b16 %v3455
    %v3490 = vunpack.c.l.b16 %v3456
    %v3491 = vunpack.c.l.b16 %v3457
    %v3492 = vunpack.c.l.b16 %v3458
    %v3493 = vunpack.c.l.b16 %v3459
    %v3494 = vunpack.c.l.b16 %v3460
    %v3495 = vunpack.c.l.b16 %v3461
    %v3496 = vunpack.c.l.b16 %v3462
    %v3497 = vunpack.c.l.b16 %v3463
    %v3498 = vunpack.c.l.b16 %v3464
    %v3499 = vunpack.c.l.b16 %v3465
    %v3500 = vunpack.c.l.b16 %v3466
    %v3501 = vunpack.c.l.b16 %v3467
    %v3502 = vunpack.c.l.b16 %v3468
    %v3503 = vunpack.c.l.b16 %v3469
    %v3504 = vunpack.c.l.b16 %v3470
    %v3505 = vpack.c.b16 %v3490, %v3489
    %v3506 = vpack.c.b16 %v3492, %v3491
    %v3507 = vpack.c.b16 %v3494, %v3493
    %v3508 = vpack.c.b16 %v3496, %v3495
    %v3509 = vpack.c.b16 %v3498, %v3497
    %v3510 = vpack.c.b16 %v3500, %v3499
    %v3511 = vpack.c.b16 %v3502, %v3501
    %v3512 = vpack.c.b16 %v3504, %v3503
    %3521 = vmatprep.subr.bf16.mxu0 0
    %3522 = vmatpush1.bf16.msra.mxu0 %v3512
    %3523 = vmatprep.subr.bf16.mxu0 0
    %3524 = vmatpush1.bf16.msra.mxu0 %v3511
    %3525 = vmatprep.subr.bf16.mxu0 0
    %3526 = vmatpush1.bf16.msra.mxu0 %v3510
    %3527 = vmatprep.subr.bf16.mxu0 0
    %3528 = vmatpush1.bf16.msra.mxu0 %v3509
    %3529 = vmatprep.subr.bf16.mxu0 0
    %3530 = vmatpush1.bf16.msra.mxu0 %v3508
    %3531 = vmatprep.subr.bf16.mxu0 0
    %3532 = vmatpush1.bf16.msra.mxu0 %v3507
    %3533 = vmatprep.subr.bf16.mxu0 0
    %3534 = vmatpush1.bf16.msra.mxu0 %v3506
    %3535 = vmatprep.subr.bf16.mxu0 0
    %3536 = vmatpush1.bf16.msra.mxu0 %v3505
    %3537 = vmatprep.subr.bf16.mxu0 0
    %3538 = vmatpush2.bf16.msra.mxu0 0
    %3539 = vmatprep.subr.bf16.mxu0 0
    %3540 = vmatpush2.bf16.msra.mxu0 0
    %3541 = vmatprep.subr.bf16.mxu0 0
    %3542 = vmatpush2.bf16.msra.mxu0 0
    %3543 = vmatprep.subr.bf16.mxu0 0
    %3544 = vmatpush2.bf16.msra.mxu0 0
    %3545 = vmatprep.subr.bf16.mxu0 0
    %3546 = vmatpush2.bf16.msra.mxu0 0
    %3547 = vmatprep.subr.bf16.mxu0 0
    %3548 = vmatpush2.bf16.msra.mxu0 0
    %3549 = vmatprep.subr.bf16.mxu0 0
    %3550 = vmatpush2.bf16.msra.mxu0 0
    %3551 = vmatprep.subr.bf16.mxu0 0
    %3552 = vmatpush2.bf16.msra.mxu0 0
    %3553 = vmatprep.mubr.bf16.mxu0 0
    %3554 = vmatmul.mubr.bf16.gmra.mxu0 %v3472
    %v3555 = vpop.f32.mrf.mxu0
    %v3556 = vadd.f32 %v3471, %v3555
    %v3557 = vpop.f32.mrf.mxu0
    %v3558 = vpop.f32.mrf.mxu0
    %v3559 = vadd.f32 %v3471, %v3558
    %v3560 = vpop.f32.mrf.mxu0
    %3561 = vdwg.mxu0
    %v3562 = vld [vmem:[%s3] sm:$0xff]
    %v3563 = vld [vmem:[%s3 + $0x8] sm:$0xff]
    %v3564 = vxor.u32 %v3556, 2147483648
    %v3565 = vxor.u32 %v3559, 2147483648
    %v3566 = vmul.f32 %v3564, 1.442695
    %v3567 = vpow.pop %v3566
    %v3568 = vmul.f32 %v3565, 1.442695
    %v3569 = vpow.pop %v3568
    %v3570 = vadd.f32 %v3567, 1.0
    %v3571 = vadd.f32 %v3569, 1.0
    %v3572 = vrcp.pop %v3570
    %v3573 = vmul.f32 1.0, %v3572
    %v3574 = vrcp.pop %v3571
    %v3575 = vmul.f32 1.0, %v3574
    %v3576 = vrcp.pop 10.0
    %v3577 = vmul.f32 %v3573, %v3576
    %v3578 = vmul.f32 %v3575, %v3576
    %v3579 = vmul.f32 %v3577, 2.35
    %v3580 = vmul.f32 %v3578, 2.35
    %v3581 = vadd.f32 %v3579, 1.0
    %v3582 = vadd.f32 %v3580, 1.0
    %v3583 = vmul.f32 %v3581, 0.2
    %v3584 = vmul.f32 %v3582, 0.2
    %v3585 = vadd.f32 %v3562, 273.15
    %v3586 = vadd.f32 %v3563, 273.15
    %v3587 = vmul.f32 %v3585, 62.36367
    %v3588 = vmul.f32 %v3586, 62.36367
    %v3589 = vrcp.pop %v3587
    %v3590 = vrcp.pop %v3588
    %3593 = vrot.lane.b32.xlu0 %v3589, 1
    %v3594 = vpop.permute.xlu0 %3593
    %3595 = vrot.lane.b32.xlu0 %v3590, 1
    %v3596 = vpop.permute.xlu0 %3595
    %v3599 = vmul.f32 %v3556, %v3594
    %v3600 = vmul.f32 %v3559, %v3596
    %3601 = vrot.lane.b32.xlu0 %v3589, 2
    %v3602 = vpop.permute.xlu0 %3601
    %3603 = vrot.lane.b32.xlu0 %v3590, 2
    %v3604 = vpop.permute.xlu0 %3603
    %v3607 = vmul.f32 %v3556, %v3602
    %v3608 = vmul.f32 %v3559, %v3604
    %v3609 = vsub.f32 0.0, %v3599
    %v3610 = vsub.f32 0.0, %v3600
    %3613 = vrot.lane.b32.xlu0 %v3583, 1
    %v3614 = vpop.permute.xlu0 %3613
    %3615 = vrot.lane.b32.xlu0 %v3584, 1
    %v3616 = vpop.permute.xlu0 %3615
    %v3619 = vmul.f32 %v3609, %v3614
    %v3620 = vmul.f32 %v3610, %v3616
    %v3621 = vmul.f32 %v3619, 1.442695
    %v3622 = vpow.pop %v3621
    %v3623 = vmul.f32 %v3620, 1.442695
    %v3624 = vpow.pop %v3623
    %v3625 = vsub.f32 0.0, %v3607
    %v3626 = vsub.f32 0.0, %v3608
    %3627 = vrot.lane.b32.xlu0 %v3583, 2
    %v3628 = vpop.permute.xlu0 %3627
    %3629 = vrot.lane.b32.xlu0 %v3584, 2
    %v3630 = vpop.permute.xlu0 %3629
    %v3633 = vmul.f32 %v3625, %v3628
    %v3634 = vmul.f32 %v3626, %v3630
    %v3635 = vmul.f32 %v3633, 1.442695
    %v3636 = vpow.pop %v3635
    %v3637 = vmul.f32 %v3634, 1.442695
    %v3638 = vpow.pop %v3637
    %v3639 = vmul.f32 %v3562, %v3636
    %v3640 = vmul.f32 %v3563, %v3638
    %3643 = vrot.lane.b32.xlu0 %v3639, 127
    %v3644 = vpop.permute.xlu0 %3643
    %3645 = vrot.lane.b32.xlu0 %v3640, 127
    %v3646 = vpop.permute.xlu0 %3645
    %v3649 = vadd.f32 %v3562, %v3644
    %v3650 = vadd.f32 %v3563, %v3646
    %v3651 = vmul.f32 %v3562, %v3622
    %v3652 = vmul.f32 %v3563, %v3624
    %3655 = vrot.lane.b32.xlu0 %v3651, 1
    %v3656 = vpop.permute.xlu0 %3655
    %3657 = vrot.lane.b32.xlu0 %v3652, 1
    %v3658 = vpop.permute.xlu0 %3657
    %v3661 = vadd.f32 %v3562, %v3656
    %v3662 = vadd.f32 %v3563, %v3658
    %v3663 = vmul.f32 %v3562, %v3562
    %v3664 = vmul.f32 %v3563, %v3563
    %3667 = vrot.lane.b32.xlu0 %v3649, 1
    %v3668 = vpop.permute.xlu0 %3667
    %3669 = vrot.lane.b32.xlu0 %v3650, 1
    %v3670 = vpop.permute.xlu0 %3669
    %v3673 = vrcp.pop %v3668
    %v3674 = vmul.f32 %v3636, %v3673
    %v3675 = vrcp.pop %v3670
    %v3676 = vmul.f32 %v3638, %v3675
    %v3677 = vmul.f32 %v3674, %v3674
    %v3678 = vmul.f32 %v3676, %v3676
    %v3679 = vmul.f32 %v3607, %v3677
    %v3680 = vmul.f32 %v3608, %v3678
    %v3681 = vmul.f32 %v3599, %v3622
    %v3682 = vmul.f32 %v3600, %v3624
    %v3683 = vmul.f32 %v3661, %v3661
    %v3684 = vmul.f32 %v3662, %v3662
    %3687 = vrot.lane.b32.xlu0 %v3683, 127
    %v3688 = vpop.permute.xlu0 %3687
    %3689 = vrot.lane.b32.xlu0 %v3684, 127
    %v3690 = vpop.permute.xlu0 %3689
    %v3693 = vrcp.pop %v3688
    %v3694 = vmul.f32 %v3681, %v3693
    %v3695 = vrcp.pop %v3690
    %v3696 = vmul.f32 %v3682, %v3695
    %3699 = vrot.lane.b32.xlu0 %v3694, 1
    %v3700 = vpop.permute.xlu0 %3699
    %3701 = vrot.lane.b32.xlu0 %v3696, 1
    %v3702 = vpop.permute.xlu0 %3701
    %v3705 = vadd.f32 %v3679, %v3700
    %v3706 = vadd.f32 %v3680, %v3702
    %v3707 = vmul.f32 %v3663, %v3705
    %v3708 = vmul.f32 %v3664, %v3706
    %3711 = vrot.lane.b32.xlu0 %v3661, 127
    %v3712 = vpop.permute.xlu0 %3711
    %3713 = vrot.lane.b32.xlu0 %v3662, 127
    %v3714 = vpop.permute.xlu0 %3713
    %v3717 = vrcp.pop %v3712
    %v3718 = vmul.f32 %v3622, %v3717
    %v3719 = vrcp.pop %v3714
    %v3720 = vmul.f32 %v3624, %v3719
    %v3721 = vmul.f32 %v3718, %v3718
    %v3722 = vmul.f32 %v3720, %v3720
    %v3723 = vmul.f32 %v3599, %v3721
    %v3724 = vmul.f32 %v3600, %v3722
    %v3725 = vmul.f32 %v3607, %v3636
    %v3726 = vmul.f32 %v3608, %v3638
    %v3727 = vmul.f32 %v3649, %v3649
    %v3728 = vmul.f32 %v3650, %v3650
    %3731 = vrot.lane.b32.xlu0 %v3727, 1
    %v3732 = vpop.permute.xlu0 %3731
    %3733 = vrot.lane.b32.xlu0 %v3728, 1
    %v3734 = vpop.permute.xlu0 %3733
    %v3737 = vrcp.pop %v3732
    %v3738 = vmul.f32 %v3725, %v3737
    %v3739 = vrcp.pop %v3734
    %v3740 = vmul.f32 %v3726, %v3739
    %3743 = vrot.lane.b32.xlu0 %v3738, 127
    %v3744 = vpop.permute.xlu0 %3743
    %3745 = vrot.lane.b32.xlu0 %v3740, 127
    %v3746 = vpop.permute.xlu0 %3745
    %v3749 = vadd.f32 %v3723, %v3744
    %v3750 = vadd.f32 %v3724, %v3746
    %v3751 = vmul.f32 %v3663, %v3749
    %v3752 = vmul.f32 %v3664, %v3750
    %v3753 = vlaneseq
    %v3754 = vand.u32 %v3753, 127
    %vm3755 = vcmp.eq.s32.totalorder %v3754, 0
    %vm3756 = vcmp.eq.s32.totalorder %v3754, 1
    %3758 = vset.pattern.permute.xlu0 1
    %3759 = vperm.xlu0 %3758, %v3751
    %v3760 = vpop.permute.xlu0 %3759
    %3763 = vset.pattern.permute.xlu0 1
    %3764 = vperm.xlu0 %3763, %v3752
    %v3765 = vpop.permute.xlu0 %3764
    %v3767 = vsel %vm3756, %v3760, 0.0
    %v3768 = vsel %vm3756, %v3765, 0.0
    %3770 = vset.pattern.permute.xlu0 2
    %3771 = vperm.xlu0 %3770, %v3707
    %v3772 = vpop.permute.xlu0 %3771
    %3775 = vset.pattern.permute.xlu0 2
    %3776 = vperm.xlu0 %3775, %v3708
    %v3777 = vpop.permute.xlu0 %3776
    %v3779 = vsel %vm3755, %v3772, %v3767
    %v3780 = vsel %vm3755, %v3777, %v3768
    %3781 = vst [vmem:[%s9] sm:$0xff] %v3779
    %3782 = vst [vmem:[%s9 + $0x8] sm:$0xff] %v3780
    // Predicated region
    $region54: #{gnn_activity_coeff.1} parent=1 // pred_check
      _
    $region55: #{gnn_activity_coeff.1} parent=1 // pred_check_branch
      %3784 = sbr.rel (0) target = $region57
    $region56: #{gnn_activity_coeff.1} parent=1 // pred_region
      _
    $region57: #{gnn_activity_coeff.1} parent=1 // pred_fallthru
      _
    // Predicated region
    $region58: #{gnn_activity_coeff.1} parent=1 // pred_check
      _
    $region59: #{gnn_activity_coeff.1} parent=1 // pred_check_branch
      %3786 = sbr.rel (0) target = $region61
    $region60: #{gnn_activity_coeff.1} parent=1 // pred_region
      _
    $region61: #{gnn_activity_coeff.1} parent=1 // pred_fallthru
      _
    %3787 = vsyncpa [#allocation3], 1
    %3788 = vsyncpa [#allocation5], 1
    %3789 = vsyncpa [#allocation8], 1

</llo_original>
